<compile_context>
chip_gen: v7x
topology: tpu7x:2x2x1
jax: 0.10.0
libtpu: 0.0.40
codegen_flags: <defaults>
</compile_context>

<pallas_src>
import functools

import jax
import jax.numpy as jnp
from jax.experimental import pallas as pl
from jax.experimental.pallas import tpu as pltpu


# ----------------------------------------------------------------------------
# Pallas kernel: one batch block (batch packed along lanes, nodes along rows).
# ----------------------------------------------------------------------------
def _dcgru_cell_kernel(sup_ref, x_ref, h_ref,
                       wgx_ref, wgh_ref, wcx_ref, wch_ref,
                       bg_ref, bc_ref,
                       out_ref, *, num_supports, max_diffusion_step,
                       num_units, input_dim, batch_block):
    S = num_supports
    K = max_diffusion_step
    U = num_units
    Din = input_dim
    bb = batch_block

    # Hoisted support loads: reused across the x, h and r*h diffusions.
    sups = [sup_ref[s] for s in range(S)]            # each (N, N) bf16

    x = x_ref[0]                                     # (N, bb*Din) f32, lane-packed batch
    h = h_ref[0]                                     # (N, bb*U)   f32, lane-packed batch
    n_rows = x.shape[0]

    def lane_slice(z, e, fdim):
        return z if bb == 1 else z[:, e * fdim:(e + 1) * fdim]

    def lane_pack(parts):
        return parts[0] if len(parts) == 1 else jnp.concatenate(parts, axis=1)

    def cheb_apply(z0, fdim, targets):
        """Fused Chebyshev recursion + weight accumulation.

        z0      : (N, bb*fdim) f32, batch packed along lanes.
        fdim    : per-batch-element feature width of z0.
        targets : list of (w_ref, accs); w_ref is an (M, fdim, out) bf16 ref,
                  accs a list of bb float32 accumulators of shape (N, out).
        Each Chebyshev term is cast to bf16 exactly once and consumed
        immediately; only z_{k-1}/z_{k-2} stay live (no per-term list).
        """
        def apply_term(z_bf, m, targets):
            updated = []
            for w_ref, accs in targets:
                w = w_ref[m]                          # (fdim, out) bf16
                updated.append((w_ref, [
                    acc + jnp.dot(lane_slice(z_bf, e, fdim), w,
                                  preferred_element_type=jnp.float32)
                    for e, acc in enumerate(accs)]))
            return updated

        z0_bf = z0.astype(jnp.bfloat16)
        targets = apply_term(z0_bf, 0, targets)
        m = 1
        if K >= 1:
            for s in range(S):
                sup = sups[s]
                # One matmul diffuses the whole batch block (no block-diag waste).
                z1 = jnp.dot(sup, z0_bf, preferred_element_type=jnp.float32)
                z1_bf = z1.astype(jnp.bfloat16)
                targets = apply_term(z1_bf, m, targets)
                m += 1
                zk2, zk1, zk1_bf = z0, z1, z1_bf
                for _ in range(2, K + 1):
                    z2 = (2.0 * jnp.dot(sup, zk1_bf,
                                        preferred_element_type=jnp.float32) - zk2)
                    z2_bf = z2.astype(jnp.bfloat16)
                    targets = apply_term(z2_bf, m, targets)
                    m += 1
                    zk2, zk1, zk1_bf = zk1, z2, z2_bf
        return [accs for _, accs in targets]

    def zeros_list(width):
        return [jnp.zeros((n_rows, width), jnp.float32) for _ in range(bb)]

    gate_accs = zeros_list(2 * U)                    # merged [r | u] columns
    cand_accs = zeros_list(U)

    # Input-feature diffusion: computed once, feeds BOTH gate and candidate convs.
    gate_accs, cand_accs = cheb_apply(x, Din, [(wgx_ref, gate_accs),
                                               (wcx_ref, cand_accs)])

    # Gate path: diffusion of the state h.
    (gate_accs,) = cheb_apply(h, U, [(wgh_ref, gate_accs)])

    bg = bg_ref[...]                                 # (1, 2U) f32
    r_parts, u_parts = [], []
    for e in range(bb):
        g = jax.nn.sigmoid(gate_accs[e] + bg)        # (N, 2U): columns [r | u]
        r_parts.append(g[:, :U])
        u_parts.append(g[:, U:])

    # Candidate path: diffusion of the reset-gated state r*h (re-packed to lanes).
    rh = lane_pack([r_parts[e] * lane_slice(h, e, U) for e in range(bb)])
    (cand_accs,) = cheb_apply(rh, U, [(wch_ref, cand_accs)])

    bc = bc_ref[...]                                 # (1, U) f32
    outs = []
    for e in range(bb):
        he = lane_slice(h, e, U)
        u = u_parts[e]
        c = jnp.tanh(cand_accs[e] + bc)
        outs.append(u * he + (1.0 - u) * c)          # GRU blend, f32 on the VPU
    out_ref[0] = lane_pack(outs)                     # (N, bb*U), lane-packed batch


# ----------------------------------------------------------------------------
# One-time construction: weight reorder/split/cast + pallas_call plumbing.
# ----------------------------------------------------------------------------
def make_dcgru_cell(supports, w_gate, b_gate, w_cand, b_cand, *,
                    input_dim, num_units, num_nodes, max_diffusion_step,
                    batch_size, batch_block=None):
    """Builds a jitted step function (inputs, state) -> new_state.

    supports : (S, N, N) float32 dense diffusion supports
    w_gate   : (F*M, 2U) PyTorch row order (row = f*M + m), cols [0,U)=r, [U,2U)=u
    b_gate   : (2U,)
    w_cand   : (F*M, U)
    b_cand   : (U,)
    inputs   : (B, N*input_dim)   state: (B, N*num_units)
    returns  : (B, N*num_units)   (== both elements of PyTorch's (output, new_state))

    batch_block: batch elements per grid step, packed along the lane axis inside the
                 kernel.  Default B//2 (when B is even) so the 'parallel' grid axis
                 has >= 2 steps and feeds both v7x TensorCores.
    """
    S, N, _ = supports.shape
    assert N == num_nodes
    Din, U, K, B = input_dim, num_units, max_diffusion_step, batch_size
    F = Din + U
    M = S * K + 1

    if batch_block is None:
        batch_block = B // 2 if (B >= 2 and B % 2 == 0) else 1
    assert B % batch_block == 0
    bb = batch_block
    nb = B // bb

    # --- supports: plain (S, N, N), bf16 MXU operand (no block-diag expansion) ----
    sup_bf = supports.astype(jnp.bfloat16)

    # --- weight reorder (rows f*M+m -> (M, F, out)) and input/state split ----------
    def split_weight(w, out_dim):
        w3 = w.reshape(F, M, out_dim).transpose(1, 0, 2)       # (M, F, out)
        return (w3[:, :Din, :].astype(jnp.bfloat16),           # input part
                w3[:, Din:, :].astype(jnp.bfloat16))           # state part

    wgx, wgh = split_weight(w_gate, 2 * U)     # (M, Din, 2U), (M, U, 2U)  merged r|u
    wcx, wch = split_weight(w_cand, U)         # (M, Din, U),  (M, U, U)

    bg = b_gate.reshape(1, 2 * U).astype(jnp.float32)
    bc = b_cand.reshape(1, U).astype(jnp.float32)

    kernel = functools.partial(
        _dcgru_cell_kernel,
        num_supports=S, max_diffusion_step=K, num_units=U,
        input_dim=Din, batch_block=bb)

    # Rough VMEM budget: single-buffered invariants + double-buffered x/h/out blocks,
    # generous headroom for in-kernel f32 intermediates; clamp to a v7x-safe cap.
    est = (S * N * N * 2
           + (M * Din * 3 * U + M * U * 3 * U) * 2
           + 2 * (N * bb * Din + 2 * N * bb * U) * 4)
    vmem_limit = int(min(max(6 * est, 32 * 2 ** 20), 64 * 2 ** 20))

    def build_pallas(single_buffer_invariants):
        def const_spec(shape):
            index_map = lambda i, _n=len(shape): (0,) * _n
            if single_buffer_invariants:
                try:
                    # Grid-invariant operand: no double-buffering needed.
                    return pl.BlockSpec(shape, index_map,
                                        pipeline_mode=pl.Buffered(1))
                except (TypeError, AttributeError):
                    pass
            return pl.BlockSpec(shape, index_map)

        in_specs = [
            const_spec((S, N, N)),                                   # supports (bf16)
            pl.BlockSpec((1, N, bb * Din), lambda i: (i, 0, 0)),     # x block  (f32)
            pl.BlockSpec((1, N, bb * U), lambda i: (i, 0, 0)),       # h block  (f32)
            const_spec((M, Din, 2 * U)),                             # W gate, input part
            const_spec((M, U, 2 * U)),                               # W gate, state part
            const_spec((M, Din, U)),                                 # W cand, input part
            const_spec((M, U, U)),                                   # W cand, state part
            const_spec((1, 2 * U)),                                  # gate bias
            const_spec((1, U)),                                      # cand bias
        ]
        return pl.pallas_call(
            kernel,
            out_shape=jax.ShapeDtypeStruct((nb, N, bb * U), jnp.float32),
            grid_spec=pltpu.PrefetchScalarGridSpec(
                num_scalar_prefetch=0,
                grid=(nb,),
                in_specs=in_specs,
                out_specs=pl.BlockSpec((1, N, bb * U), lambda i: (i, 0, 0)),
            ),
            compiler_params=pltpu.CompilerParams(
                dimension_semantics=("parallel",),
                vmem_limit_bytes=vmem_limit),
        )

    def make_step(pallas_step):
        @jax.jit
        def step(inputs, state):
            # (B, N*f) -> (nb, N, bb*f): nodes on rows, batch packed along lanes.
            x = inputs.astype(jnp.float32).reshape(nb, bb, N, Din)
            x = x.transpose(0, 2, 1, 3).reshape(nb, N, bb * Din)
            h = state.astype(jnp.float32).reshape(nb, bb, N, U)
            h = h.transpose(0, 2, 1, 3).reshape(nb, N, bb * U)
            out = pallas_step(sup_bf, x, h, wgx, wgh, wcx, wch, bg, bc)
            out = out.reshape(nb, N, bb, U).transpose(0, 2, 1, 3)
            return out.reshape(B, N * U)
        return step

    step = make_step(build_pallas(True))
    try:
        # Force one compile so an unsupported pipeline_mode falls back cleanly to
        # default double-buffering instead of failing at call time.
        jax.block_until_ready(step(jnp.zeros((B, N * Din), jnp.float32),
                                   jnp.zeros((B, N * U), jnp.float32)))
    except Exception:  # graceful degradation only; semantics are identical
        step = make_step(build_pallas(False))
    return step


# ----------------------------------------------------------------------------
# Pure-JAX float32 reference matching the PyTorch semantics (for verification).
# ----------------------------------------------------------------------------
def dcgru_cell_ref(supports, inputs, state, w_gate, b_gate, w_cand, b_cand,
                   *, num_nodes, max_diffusion_step):
    S, N, _ = supports.shape
    B = inputs.shape[0]
    U = state.shape[1] // N
    K = max_diffusion_step
    inp = inputs.reshape(B, N, -1)

    def dconv(state_flat, W, bias, out_dim):
        st = state_flat.reshape(B, N, -1)
        x0 = jnp.concatenate([inp, st], axis=2)                # (B, N, F)
        mats = [x0]
        for s in range(S):
            sup = supports[s]
            x1 = jnp.einsum('nm,bmf->bnf', sup, x0)
            mats.append(x1)
            xk2, xk1 = x0, x1
            for _k in range(2, K + 1):
                x2 = 2.0 * jnp.einsum('nm,bmf->bnf', sup, xk1) - xk2
                mats.append(x2)
                xk2, xk1 = xk1, x2
        X = jnp.stack(mats, axis=1)                            # (B, M, N, F)
        X = jnp.transpose(X, (0, 2, 3, 1)).reshape(B * N, -1)  # row order f*M + m
        out = X @ W + bias
        return out.reshape(B, N * out_dim)

    gate = jax.nn.sigmoid(dconv(state, w_gate, b_gate, 2 * U))
    gate = gate.reshape(B, N, 2 * U)
    r = gate[..., :U].reshape(B, N * U)
    u = gate[..., U:].reshape(B, N * U)
    c = jnp.tanh(dconv(r * state, w_cand, b_cand, U))
    return u * state + (1.0 - u) * c


# ----------------------------------------------------------------------------
if __name__ == "__main__":
    def xavier_normal(k, shape, gain=1.414):
        fan_in, fan_out = shape
        std = gain * (2.0 / (fan_in + fan_out)) ** 0.5
        return std * jax.random.normal(k, shape, dtype=jnp.float32)

    def run_case(*, S, B, N, Din, U, K, batch_block):
        F = Din + U
        M = S * K + 1
        key = jax.random.PRNGKey(0)
        ks = jax.random.split(key, 7)

        # Dense support matrices (stand-ins for scaled Laplacian / random walks).
        supports = 0.1 * jax.random.normal(ks[0], (S, N, N), dtype=jnp.float32)
        inputs = jax.random.normal(ks[1], (B, N * Din), dtype=jnp.float32)
        state = jax.random.normal(ks[2], (B, N * U), dtype=jnp.float32)

        # Xavier-normal init (gain=1.414), PyTorch row ordering (f*M + m, out).
        w_gate = xavier_normal(ks[3], (F * M, 2 * U))
        w_cand = xavier_normal(ks[4], (F * M, U))
        # Non-zero biases to exercise the bias path (PyTorch inits them to 0.0).
        b_gate = 0.1 * jax.random.normal(ks[5], (2 * U,), dtype=jnp.float32)
        b_cand = 0.1 * jax.random.normal(ks[6], (U,), dtype=jnp.float32)

        step = make_dcgru_cell(supports, w_gate, b_gate, w_cand, b_cand,
                               input_dim=Din, num_units=U, num_nodes=N,
                               max_diffusion_step=K, batch_size=B,
                               batch_block=batch_block)

        out = jax.block_until_ready(step(inputs, state))
        ref = dcgru_cell_ref(supports, inputs, state, w_gate, b_gate,
                             w_cand, b_cand, num_nodes=N, max_diffusion_step=K)

        assert out.shape == (B, N * U)
        # bf16 MXU operands with f32 accumulation vs the pure-f32 reference.
        assert jnp.allclose(out, ref, atol=4e-2, rtol=4e-2), (
            "mismatch vs reference, max abs diff = "
            f"{float(jnp.max(jnp.abs(out - ref)))}")

    # Case 1: 'laplacian' filter (S=1), default batch_block -> bb=1, 2 parallel grid
    # steps (both v7x TensorCores busy).
    run_case(S=1, B=2, N=16, Din=4, U=32, K=2, batch_block=None)
    # Case 2: 'dual_random_walk' filter (S=2), whole batch lane-packed into one grid
    # step (exercises the bb>1 lane-packed path).
    run_case(S=2, B=2, N=16, Din=4, U=32, K=2, batch_block=2)

    print("KERNEL_OK")
</pallas_src>

<mosaic_0001>
module attributes {stable_mosaic.version = 11 : i64} {
  func.func @_dcgru_cell_kernel(%arg0: i32, %arg1: memref<1x16x16xbf16, #tpu.memory_space<vmem>>, %arg2: memref<1x16x4xf32, #tpu.memory_space<vmem>>, %arg3: memref<1x16x32xf32, #tpu.memory_space<vmem>>, %arg4: memref<3x4x64xbf16, #tpu.memory_space<vmem>>, %arg5: memref<3x32x64xbf16, #tpu.memory_space<vmem>>, %arg6: memref<3x4x32xbf16, #tpu.memory_space<vmem>>, %arg7: memref<3x32x32xbf16, #tpu.memory_space<vmem>>, %arg8: memref<1x64xf32, #tpu.memory_space<vmem>>, %arg9: memref<1x32xf32, #tpu.memory_space<vmem>>, %arg10: memref<1x16x32xf32, #tpu.memory_space<vmem>>) attributes {dimension_semantics = [#tpu.dimension_semantics<parallel>], iteration_bounds = array<i64: 2>, scalar_prefetch = 0 : i64, scratch_operands = 0 : i64, tpu.core_type = #tpu.core_type<tc>, window_params = [{pipeline_mode = #tpu.pipeline_mode<synchronous>, transform_indices = @transform_0, window_bounds = array<i64: 1, 16, 16>}, {transform_indices = @transform_1, window_bounds = array<i64: 1, 16, 4>}, {transform_indices = @transform_2, window_bounds = array<i64: 1, 16, 32>}, {pipeline_mode = #tpu.pipeline_mode<synchronous>, transform_indices = @transform_3, window_bounds = array<i64: 3, 4, 64>}, {pipeline_mode = #tpu.pipeline_mode<synchronous>, transform_indices = @transform_4, window_bounds = array<i64: 3, 32, 64>}, {pipeline_mode = #tpu.pipeline_mode<synchronous>, transform_indices = @transform_5, window_bounds = array<i64: 3, 4, 32>}, {pipeline_mode = #tpu.pipeline_mode<synchronous>, transform_indices = @transform_6, window_bounds = array<i64: 3, 32, 32>}, {pipeline_mode = #tpu.pipeline_mode<synchronous>, transform_indices = @transform_7, window_bounds = array<i64: 1, 64>}, {pipeline_mode = #tpu.pipeline_mode<synchronous>, transform_indices = @transform_8, window_bounds = array<i64: 1, 32>}, {transform_indices = @transform_9, window_bounds = array<i64: 1, 16, 32>}]} {
    %c0 = arith.constant 0 : index
    %c0_0 = arith.constant 0 : index
    %c0_1 = arith.constant 0 : index
    %0 = vector.load %arg1[%c0, %c0_0, %c0_1] : memref<1x16x16xbf16, #tpu.memory_space<vmem>>, vector<1x16x16xbf16>
    %1 = vector.shape_cast %0 : vector<1x16x16xbf16> to vector<16x16xbf16>
    %c0_2 = arith.constant 0 : index
    %c0_3 = arith.constant 0 : index
    %c0_4 = arith.constant 0 : index
    %2 = vector.load %arg2[%c0_2, %c0_3, %c0_4] : memref<1x16x4xf32, #tpu.memory_space<vmem>>, vector<1x16x4xf32>
    %3 = vector.shape_cast %2 : vector<1x16x4xf32> to vector<16x4xf32>
    %c0_5 = arith.constant 0 : index
    %c0_6 = arith.constant 0 : index
    %c0_7 = arith.constant 0 : index
    %4 = vector.load %arg3[%c0_5, %c0_6, %c0_7] : memref<1x16x32xf32, #tpu.memory_space<vmem>>, vector<1x16x32xf32>
    %5 = vector.shape_cast %4 : vector<1x16x32xf32> to vector<16x32xf32>
    %cst = arith.constant 0.000000e+00 : f32
    %6 = vector.broadcast %cst : f32 to vector<16x64xf32>
    %cst_8 = arith.constant 0.000000e+00 : f32
    %7 = vector.broadcast %cst_8 : f32 to vector<16x32xf32>
    %8 = arith.truncf %3 : vector<16x4xf32> to vector<16x4xbf16>
    %c0_9 = arith.constant 0 : index
    %c0_10 = arith.constant 0 : index
    %c0_11 = arith.constant 0 : index
    %9 = vector.load %arg4[%c0_9, %c0_10, %c0_11] : memref<3x4x64xbf16, #tpu.memory_space<vmem>>, vector<1x4x64xbf16>
    %10 = vector.shape_cast %9 : vector<1x4x64xbf16> to vector<4x64xbf16>
    %cst_12 = arith.constant dense<0.000000e+00> : vector<16x64xf32>
    %11 = tpu.matmul %8, %10, %cst_12 {dimension_numbers = #tpu.dot_dimension_numbers<[1], [0], [0], [1], [0, 0, 1, 1], [], []>} : vector<16x4xbf16>, vector<4x64xbf16>, vector<16x64xf32> -> vector<16x64xf32>
    %12 = arith.addf %6, %11 : vector<16x64xf32>
    %c0_13 = arith.constant 0 : index
    %c0_14 = arith.constant 0 : index
    %c0_15 = arith.constant 0 : index
    %13 = vector.load %arg6[%c0_13, %c0_14, %c0_15] : memref<3x4x32xbf16, #tpu.memory_space<vmem>>, vector<1x4x32xbf16>
    %14 = vector.shape_cast %13 : vector<1x4x32xbf16> to vector<4x32xbf16>
    %cst_16 = arith.constant dense<0.000000e+00> : vector<16x32xf32>
    %15 = tpu.matmul %8, %14, %cst_16 {dimension_numbers = #tpu.dot_dimension_numbers<[1], [0], [0], [1], [0, 0, 1, 1], [], []>} : vector<16x4xbf16>, vector<4x32xbf16>, vector<16x32xf32> -> vector<16x32xf32>
    %16 = arith.addf %7, %15 : vector<16x32xf32>
    %cst_17 = arith.constant dense<0.000000e+00> : vector<16x4xf32>
    %17 = tpu.matmul %1, %8, %cst_17 {dimension_numbers = #tpu.dot_dimension_numbers<[1], [0], [0], [1], [0, 0, 1, 1], [], []>} : vector<16x16xbf16>, vector<16x4xbf16>, vector<16x4xf32> -> vector<16x4xf32>
    %18 = arith.truncf %17 : vector<16x4xf32> to vector<16x4xbf16>
    %c1 = arith.constant 1 : index
    %c0_18 = arith.constant 0 : index
    %c0_19 = arith.constant 0 : index
    %19 = vector.load %arg4[%c1, %c0_18, %c0_19] : memref<3x4x64xbf16, #tpu.memory_space<vmem>>, vector<1x4x64xbf16>
    %20 = vector.shape_cast %19 : vector<1x4x64xbf16> to vector<4x64xbf16>
    %cst_20 = arith.constant dense<0.000000e+00> : vector<16x64xf32>
    %21 = tpu.matmul %18, %20, %cst_20 {dimension_numbers = #tpu.dot_dimension_numbers<[1], [0], [0], [1], [0, 0, 1, 1], [], []>} : vector<16x4xbf16>, vector<4x64xbf16>, vector<16x64xf32> -> vector<16x64xf32>
    %22 = arith.addf %12, %21 : vector<16x64xf32>
    %c1_21 = arith.constant 1 : index
    %c0_22 = arith.constant 0 : index
    %c0_23 = arith.constant 0 : index
    %23 = vector.load %arg6[%c1_21, %c0_22, %c0_23] : memref<3x4x32xbf16, #tpu.memory_space<vmem>>, vector<1x4x32xbf16>
    %24 = vector.shape_cast %23 : vector<1x4x32xbf16> to vector<4x32xbf16>
    %cst_24 = arith.constant dense<0.000000e+00> : vector<16x32xf32>
    %25 = tpu.matmul %18, %24, %cst_24 {dimension_numbers = #tpu.dot_dimension_numbers<[1], [0], [0], [1], [0, 0, 1, 1], [], []>} : vector<16x4xbf16>, vector<4x32xbf16>, vector<16x32xf32> -> vector<16x32xf32>
    %26 = arith.addf %16, %25 : vector<16x32xf32>
    %cst_25 = arith.constant dense<0.000000e+00> : vector<16x4xf32>
    %27 = tpu.matmul %1, %18, %cst_25 {dimension_numbers = #tpu.dot_dimension_numbers<[1], [0], [0], [1], [0, 0, 1, 1], [], []>} : vector<16x16xbf16>, vector<16x4xbf16>, vector<16x4xf32> -> vector<16x4xf32>
    %cst_26 = arith.constant 2.000000e+00 : f32
    %28 = vector.broadcast %cst_26 : f32 to vector<16x4xf32>
    %29 = arith.mulf %28, %27 : vector<16x4xf32>
    %30 = arith.subf %29, %3 : vector<16x4xf32>
    %31 = arith.truncf %30 : vector<16x4xf32> to vector<16x4xbf16>
    %c2 = arith.constant 2 : index
    %c0_27 = arith.constant 0 : index
    %c0_28 = arith.constant 0 : index
    %32 = vector.load %arg4[%c2, %c0_27, %c0_28] : memref<3x4x64xbf16, #tpu.memory_space<vmem>>, vector<1x4x64xbf16>
    %33 = vector.shape_cast %32 : vector<1x4x64xbf16> to vector<4x64xbf16>
    %cst_29 = arith.constant dense<0.000000e+00> : vector<16x64xf32>
    %34 = tpu.matmul %31, %33, %cst_29 {dimension_numbers = #tpu.dot_dimension_numbers<[1], [0], [0], [1], [0, 0, 1, 1], [], []>} : vector<16x4xbf16>, vector<4x64xbf16>, vector<16x64xf32> -> vector<16x64xf32>
    %35 = arith.addf %22, %34 : vector<16x64xf32>
    %c2_30 = arith.constant 2 : index
    %c0_31 = arith.constant 0 : index
    %c0_32 = arith.constant 0 : index
    %36 = vector.load %arg6[%c2_30, %c0_31, %c0_32] : memref<3x4x32xbf16, #tpu.memory_space<vmem>>, vector<1x4x32xbf16>
    %37 = vector.shape_cast %36 : vector<1x4x32xbf16> to vector<4x32xbf16>
    %cst_33 = arith.constant dense<0.000000e+00> : vector<16x32xf32>
    %38 = tpu.matmul %31, %37, %cst_33 {dimension_numbers = #tpu.dot_dimension_numbers<[1], [0], [0], [1], [0, 0, 1, 1], [], []>} : vector<16x4xbf16>, vector<4x32xbf16>, vector<16x32xf32> -> vector<16x32xf32>
    %39 = arith.addf %26, %38 : vector<16x32xf32>
    %40 = arith.truncf %5 : vector<16x32xf32> to vector<16x32xbf16>
    %c0_34 = arith.constant 0 : index
    %c0_35 = arith.constant 0 : index
    %c0_36 = arith.constant 0 : index
    %41 = vector.load %arg5[%c0_34, %c0_35, %c0_36] : memref<3x32x64xbf16, #tpu.memory_space<vmem>>, vector<1x32x64xbf16>
    %42 = vector.shape_cast %41 : vector<1x32x64xbf16> to vector<32x64xbf16>
    %cst_37 = arith.constant dense<0.000000e+00> : vector<16x64xf32>
    %43 = tpu.matmul %40, %42, %cst_37 {dimension_numbers = #tpu.dot_dimension_numbers<[1], [0], [0], [1], [0, 0, 1, 1], [], []>} : vector<16x32xbf16>, vector<32x64xbf16>, vector<16x64xf32> -> vector<16x64xf32>
    %44 = arith.addf %35, %43 : vector<16x64xf32>
    %cst_38 = arith.constant dense<0.000000e+00> : vector<16x32xf32>
    %45 = tpu.matmul %1, %40, %cst_38 {dimension_numbers = #tpu.dot_dimension_numbers<[1], [0], [0], [1], [0, 0, 1, 1], [], []>} : vector<16x16xbf16>, vector<16x32xbf16>, vector<16x32xf32> -> vector<16x32xf32>
    %46 = arith.truncf %45 : vector<16x32xf32> to vector<16x32xbf16>
    %c1_39 = arith.constant 1 : index
    %c0_40 = arith.constant 0 : index
    %c0_41 = arith.constant 0 : index
    %47 = vector.load %arg5[%c1_39, %c0_40, %c0_41] : memref<3x32x64xbf16, #tpu.memory_space<vmem>>, vector<1x32x64xbf16>
    %48 = vector.shape_cast %47 : vector<1x32x64xbf16> to vector<32x64xbf16>
    %cst_42 = arith.constant dense<0.000000e+00> : vector<16x64xf32>
    %49 = tpu.matmul %46, %48, %cst_42 {dimension_numbers = #tpu.dot_dimension_numbers<[1], [0], [0], [1], [0, 0, 1, 1], [], []>} : vector<16x32xbf16>, vector<32x64xbf16>, vector<16x64xf32> -> vector<16x64xf32>
    %50 = arith.addf %44, %49 : vector<16x64xf32>
    %cst_43 = arith.constant dense<0.000000e+00> : vector<16x32xf32>
    %51 = tpu.matmul %1, %46, %cst_43 {dimension_numbers = #tpu.dot_dimension_numbers<[1], [0], [0], [1], [0, 0, 1, 1], [], []>} : vector<16x16xbf16>, vector<16x32xbf16>, vector<16x32xf32> -> vector<16x32xf32>
    %cst_44 = arith.constant 2.000000e+00 : f32
    %52 = vector.broadcast %cst_44 : f32 to vector<16x32xf32>
    %53 = arith.mulf %52, %51 : vector<16x32xf32>
    %54 = arith.subf %53, %5 : vector<16x32xf32>
    %55 = arith.truncf %54 : vector<16x32xf32> to vector<16x32xbf16>
    %c2_45 = arith.constant 2 : index
    %c0_46 = arith.constant 0 : index
    %c0_47 = arith.constant 0 : index
    %56 = vector.load %arg5[%c2_45, %c0_46, %c0_47] : memref<3x32x64xbf16, #tpu.memory_space<vmem>>, vector<1x32x64xbf16>
    %57 = vector.shape_cast %56 : vector<1x32x64xbf16> to vector<32x64xbf16>
    %cst_48 = arith.constant dense<0.000000e+00> : vector<16x64xf32>
    %58 = tpu.matmul %55, %57, %cst_48 {dimension_numbers = #tpu.dot_dimension_numbers<[1], [0], [0], [1], [0, 0, 1, 1], [], []>} : vector<16x32xbf16>, vector<32x64xbf16>, vector<16x64xf32> -> vector<16x64xf32>
    %59 = arith.addf %50, %58 : vector<16x64xf32>
    %c0_49 = arith.constant 0 : index
    %c0_50 = arith.constant 0 : index
    %60 = vector.load %arg8[%c0_49, %c0_50] : memref<1x64xf32, #tpu.memory_space<vmem>>, vector<1x64xf32>
    %61 = vector.broadcast %60 : vector<1x64xf32> to vector<16x64xf32>
    %62 = arith.addf %59, %61 : vector<16x64xf32>
    %63 = arith.negf %62 : vector<16x64xf32>
    %64 = math.exp %63 : vector<16x64xf32>
    %cst_51 = arith.constant 1.000000e+00 : f32
    %65 = vector.broadcast %cst_51 : f32 to vector<16x64xf32>
    %66 = arith.addf %65, %64 : vector<16x64xf32>
    %67 = arith.divf %65, %66 : vector<16x64xf32>
    %68 = vector.extract_strided_slice %67 {offsets = [0, 0], sizes = [16, 32], strides = [1, 1]} : vector<16x64xf32> to vector<16x32xf32>
    %69 = vector.extract_strided_slice %67 {offsets = [0, 32], sizes = [16, 32], strides = [1, 1]} : vector<16x64xf32> to vector<16x32xf32>
    %70 = arith.mulf %68, %5 : vector<16x32xf32>
    %71 = arith.truncf %70 : vector<16x32xf32> to vector<16x32xbf16>
    %c0_52 = arith.constant 0 : index
    %c0_53 = arith.constant 0 : index
    %c0_54 = arith.constant 0 : index
    %72 = vector.load %arg7[%c0_52, %c0_53, %c0_54] : memref<3x32x32xbf16, #tpu.memory_space<vmem>>, vector<1x32x32xbf16>
    %73 = vector.shape_cast %72 : vector<1x32x32xbf16> to vector<32x32xbf16>
    %cst_55 = arith.constant dense<0.000000e+00> : vector<16x32xf32>
    %74 = tpu.matmul %71, %73, %cst_55 {dimension_numbers = #tpu.dot_dimension_numbers<[1], [0], [0], [1], [0, 0, 1, 1], [], []>} : vector<16x32xbf16>, vector<32x32xbf16>, vector<16x32xf32> -> vector<16x32xf32>
    %75 = arith.addf %39, %74 : vector<16x32xf32>
    %cst_56 = arith.constant dense<0.000000e+00> : vector<16x32xf32>
    %76 = tpu.matmul %1, %71, %cst_56 {dimension_numbers = #tpu.dot_dimension_numbers<[1], [0], [0], [1], [0, 0, 1, 1], [], []>} : vector<16x16xbf16>, vector<16x32xbf16>, vector<16x32xf32> -> vector<16x32xf32>
    %77 = arith.truncf %76 : vector<16x32xf32> to vector<16x32xbf16>
    %c1_57 = arith.constant 1 : index
    %c0_58 = arith.constant 0 : index
    %c0_59 = arith.constant 0 : index
    %78 = vector.load %arg7[%c1_57, %c0_58, %c0_59] : memref<3x32x32xbf16, #tpu.memory_space<vmem>>, vector<1x32x32xbf16>
    %79 = vector.shape_cast %78 : vector<1x32x32xbf16> to vector<32x32xbf16>
    %cst_60 = arith.constant dense<0.000000e+00> : vector<16x32xf32>
    %80 = tpu.matmul %77, %79, %cst_60 {dimension_numbers = #tpu.dot_dimension_numbers<[1], [0], [0], [1], [0, 0, 1, 1], [], []>} : vector<16x32xbf16>, vector<32x32xbf16>, vector<16x32xf32> -> vector<16x32xf32>
    %81 = arith.addf %75, %80 : vector<16x32xf32>
    %cst_61 = arith.constant dense<0.000000e+00> : vector<16x32xf32>
    %82 = tpu.matmul %1, %77, %cst_61 {dimension_numbers = #tpu.dot_dimension_numbers<[1], [0], [0], [1], [0, 0, 1, 1], [], []>} : vector<16x16xbf16>, vector<16x32xbf16>, vector<16x32xf32> -> vector<16x32xf32>
    %cst_62 = arith.constant 2.000000e+00 : f32
    %83 = vector.broadcast %cst_62 : f32 to vector<16x32xf32>
    %84 = arith.mulf %83, %82 : vector<16x32xf32>
    %85 = arith.subf %84, %70 : vector<16x32xf32>
    %86 = arith.truncf %85 : vector<16x32xf32> to vector<16x32xbf16>
    %c2_63 = arith.constant 2 : index
    %c0_64 = arith.constant 0 : index
    %c0_65 = arith.constant 0 : index
    %87 = vector.load %arg7[%c2_63, %c0_64, %c0_65] : memref<3x32x32xbf16, #tpu.memory_space<vmem>>, vector<1x32x32xbf16>
    %88 = vector.shape_cast %87 : vector<1x32x32xbf16> to vector<32x32xbf16>
    %cst_66 = arith.constant dense<0.000000e+00> : vector<16x32xf32>
    %89 = tpu.matmul %86, %88, %cst_66 {dimension_numbers = #tpu.dot_dimension_numbers<[1], [0], [0], [1], [0, 0, 1, 1], [], []>} : vector<16x32xbf16>, vector<32x32xbf16>, vector<16x32xf32> -> vector<16x32xf32>
    %90 = arith.addf %81, %89 : vector<16x32xf32>
    %c0_67 = arith.constant 0 : index
    %c0_68 = arith.constant 0 : index
    %91 = vector.load %arg9[%c0_67, %c0_68] : memref<1x32xf32, #tpu.memory_space<vmem>>, vector<1x32xf32>
    %92 = vector.broadcast %91 : vector<1x32xf32> to vector<16x32xf32>
    %93 = arith.addf %90, %92 : vector<16x32xf32>
    %94 = math.tanh %93 : vector<16x32xf32>
    %95 = arith.mulf %69, %5 : vector<16x32xf32>
    %cst_69 = arith.constant 1.000000e+00 : f32
    %96 = vector.broadcast %cst_69 : f32 to vector<16x32xf32>
    %97 = arith.subf %96, %69 : vector<16x32xf32>
    %98 = arith.mulf %97, %94 : vector<16x32xf32>
    %99 = arith.addf %95, %98 : vector<16x32xf32>
    %c0_70 = arith.constant 0 : index
    %c0_71 = arith.constant 0 : index
    %c0_72 = arith.constant 0 : index
    %100 = vector.load %arg10[%c0_70, %c0_71, %c0_72] : memref<1x16x32xf32, #tpu.memory_space<vmem>>, vector<1x16x32xf32>
    %101 = vector.shape_cast %100 : vector<1x16x32xf32> to vector<16x32xf32>
    %102 = vector.shape_cast %99 : vector<16x32xf32> to vector<1x16x32xf32>
    tpu.vector_store %arg10[%c0_70, %c0_71, %c0_72], %102 {strides = array<i32>} : memref<1x16x32xf32, #tpu.memory_space<vmem>>, vector<1x16x32xf32>,
    return
  }
  func.func @transform_0(%arg0: i32) -> (i32, i32, i32) {
    %c0_i32 = arith.constant 0 : i32
    %c0_i32_0 = arith.constant 0 : i32
    %c0_i32_1 = arith.constant 0 : i32
    %c0_i32_2 = arith.constant 0 : i32
    return %c0_i32, %c0_i32_0, %c0_i32_1 : i32, i32, i32
  }
  func.func @transform_1(%arg0: i32) -> (i32, i32, i32) {
    %c0_i32 = arith.constant 0 : i32
    %c0_i32_0 = arith.constant 0 : i32
    %c0_i32_1 = arith.constant 0 : i32
    return %arg0, %c0_i32, %c0_i32_0 : i32, i32, i32
  }
  func.func @transform_2(%arg0: i32) -> (i32, i32, i32) {
    %c0_i32 = arith.constant 0 : i32
    %c0_i32_0 = arith.constant 0 : i32
    %c0_i32_1 = arith.constant 0 : i32
    return %arg0, %c0_i32, %c0_i32_0 : i32, i32, i32
  }
  func.func @transform_3(%arg0: i32) -> (i32, i32, i32) {
    %c0_i32 = arith.constant 0 : i32
    %c0_i32_0 = arith.constant 0 : i32
    %c0_i32_1 = arith.constant 0 : i32
    %c0_i32_2 = arith.constant 0 : i32
    return %c0_i32, %c0_i32_0, %c0_i32_1 : i32, i32, i32
  }
  func.func @transform_4(%arg0: i32) -> (i32, i32, i32) {
    %c0_i32 = arith.constant 0 : i32
    %c0_i32_0 = arith.constant 0 : i32
    %c0_i32_1 = arith.constant 0 : i32
    %c0_i32_2 = arith.constant 0 : i32
    return %c0_i32, %c0_i32_0, %c0_i32_1 : i32, i32, i32
  }
  func.func @transform_5(%arg0: i32) -> (i32, i32, i32) {
    %c0_i32 = arith.constant 0 : i32
    %c0_i32_0 = arith.constant 0 : i32
    %c0_i32_1 = arith.constant 0 : i32
    %c0_i32_2 = arith.constant 0 : i32
    return %c0_i32, %c0_i32_0, %c0_i32_1 : i32, i32, i32
  }
  func.func @transform_6(%arg0: i32) -> (i32, i32, i32) {
    %c0_i32 = arith.constant 0 : i32
    %c0_i32_0 = arith.constant 0 : i32
    %c0_i32_1 = arith.constant 0 : i32
    %c0_i32_2 = arith.constant 0 : i32
    return %c0_i32, %c0_i32_0, %c0_i32_1 : i32, i32, i32
  }
  func.func @transform_7(%arg0: i32) -> (i32, i32) {
    %c0_i32 = arith.constant 0 : i32
    %c0_i32_0 = arith.constant 0 : i32
    %c0_i32_1 = arith.constant 0 : i32
    return %c0_i32, %c0_i32_0 : i32, i32
  }
  func.func @transform_8(%arg0: i32) -> (i32, i32) {
    %c0_i32 = arith.constant 0 : i32
    %c0_i32_0 = arith.constant 0 : i32
    %c0_i32_1 = arith.constant 0 : i32
    return %c0_i32, %c0_i32_0 : i32, i32
  }
  func.func @transform_9(%arg0: i32) -> (i32, i32, i32) {
    %c0_i32 = arith.constant 0 : i32
    %c0_i32_0 = arith.constant 0 : i32
    %c0_i32_1 = arith.constant 0 : i32
    return %arg0, %c0_i32, %c0_i32_0 : i32, i32, i32
  }
}

module attributes {stable_mosaic.version = 11 : i64} {
  func.func @_dcgru_cell_kernel(%arg0: i32, %arg1: memref<1x16x16xbf16, #tpu.memory_space<vmem>>, %arg2: memref<1x16x4xf32, #tpu.memory_space<vmem>>, %arg3: memref<1x16x32xf32, #tpu.memory_space<vmem>>, %arg4: memref<3x4x64xbf16, #tpu.memory_space<vmem>>, %arg5: memref<3x32x64xbf16, #tpu.memory_space<vmem>>, %arg6: memref<3x4x32xbf16, #tpu.memory_space<vmem>>, %arg7: memref<3x32x32xbf16, #tpu.memory_space<vmem>>, %arg8: memref<1x64xf32, #tpu.memory_space<vmem>>, %arg9: memref<1x32xf32, #tpu.memory_space<vmem>>, %arg10: memref<1x16x32xf32, #tpu.memory_space<vmem>>) attributes {dimension_semantics = [#tpu.dimension_semantics<parallel>], iteration_bounds = array<i64: 2>, scalar_prefetch = 0 : i64, scratch_operands = 0 : i64, tpu.core_type = #tpu.core_type<tc>, window_params = [{pipeline_mode = #tpu.pipeline_mode<synchronous>, transform_indices = @transform_0, window_bounds = array<i64: 1, 16, 16>}, {transform_indices = @transform_1, window_bounds = array<i64: 1, 16, 4>}, {transform_indices = @transform_2, window_bounds = array<i64: 1, 16, 32>}, {pipeline_mode = #tpu.pipeline_mode<synchronous>, transform_indices = @transform_3, window_bounds = array<i64: 3, 4, 64>}, {pipeline_mode = #tpu.pipeline_mode<synchronous>, transform_indices = @transform_4, window_bounds = array<i64: 3, 32, 64>}, {pipeline_mode = #tpu.pipeline_mode<synchronous>, transform_indices = @transform_5, window_bounds = array<i64: 3, 4, 32>}, {pipeline_mode = #tpu.pipeline_mode<synchronous>, transform_indices = @transform_6, window_bounds = array<i64: 3, 32, 32>}, {pipeline_mode = #tpu.pipeline_mode<synchronous>, transform_indices = @transform_7, window_bounds = array<i64: 1, 64>}, {pipeline_mode = #tpu.pipeline_mode<synchronous>, transform_indices = @transform_8, window_bounds = array<i64: 1, 32>}, {transform_indices = @transform_9, window_bounds = array<i64: 1, 16, 32>}]} {
    %c0 = arith.constant 0 : index
    %c0_0 = arith.constant 0 : index
    %c0_1 = arith.constant 0 : index
    %0 = vector.load %arg1[%c0, %c0_0, %c0_1] : memref<1x16x16xbf16, #tpu.memory_space<vmem>>, vector<1x16x16xbf16>
    %1 = vector.shape_cast %0 : vector<1x16x16xbf16> to vector<16x16xbf16>
    %c0_2 = arith.constant 0 : index
    %c0_3 = arith.constant 0 : index
    %c0_4 = arith.constant 0 : index
    %2 = vector.load %arg2[%c0_2, %c0_3, %c0_4] : memref<1x16x4xf32, #tpu.memory_space<vmem>>, vector<1x16x4xf32>
    %3 = vector.shape_cast %2 : vector<1x16x4xf32> to vector<16x4xf32>
    %c0_5 = arith.constant 0 : index
    %c0_6 = arith.constant 0 : index
    %c0_7 = arith.constant 0 : index
    %4 = vector.load %arg3[%c0_5, %c0_6, %c0_7] : memref<1x16x32xf32, #tpu.memory_space<vmem>>, vector<1x16x32xf32>
    %5 = vector.shape_cast %4 : vector<1x16x32xf32> to vector<16x32xf32>
    %cst = arith.constant 0.000000e+00 : f32
    %6 = vector.broadcast %cst : f32 to vector<16x64xf32>
    %cst_8 = arith.constant 0.000000e+00 : f32
    %7 = vector.broadcast %cst_8 : f32 to vector<16x32xf32>
    %8 = arith.truncf %3 : vector<16x4xf32> to vector<16x4xbf16>
    %c0_9 = arith.constant 0 : index
    %c0_10 = arith.constant 0 : index
    %c0_11 = arith.constant 0 : index
    %9 = vector.load %arg4[%c0_9, %c0_10, %c0_11] : memref<3x4x64xbf16, #tpu.memory_space<vmem>>, vector<1x4x64xbf16>
    %10 = vector.shape_cast %9 : vector<1x4x64xbf16> to vector<4x64xbf16>
    %cst_12 = arith.constant dense<0.000000e+00> : vector<16x64xf32>
    %11 = tpu.matmul %8, %10, %cst_12 {dimension_numbers = #tpu.dot_dimension_numbers<[1], [0], [0], [1], [0, 0, 1, 1], [], []>} : vector<16x4xbf16>, vector<4x64xbf16>, vector<16x64xf32> -> vector<16x64xf32>
    %12 = arith.addf %6, %11 : vector<16x64xf32>
    %c0_13 = arith.constant 0 : index
    %c0_14 = arith.constant 0 : index
    %c0_15 = arith.constant 0 : index
    %13 = vector.load %arg6[%c0_13, %c0_14, %c0_15] : memref<3x4x32xbf16, #tpu.memory_space<vmem>>, vector<1x4x32xbf16>
    %14 = vector.shape_cast %13 : vector<1x4x32xbf16> to vector<4x32xbf16>
    %cst_16 = arith.constant dense<0.000000e+00> : vector<16x32xf32>
    %15 = tpu.matmul %8, %14, %cst_16 {dimension_numbers = #tpu.dot_dimension_numbers<[1], [0], [0], [1], [0, 0, 1, 1], [], []>} : vector<16x4xbf16>, vector<4x32xbf16>, vector<16x32xf32> -> vector<16x32xf32>
    %16 = arith.addf %7, %15 : vector<16x32xf32>
    %cst_17 = arith.constant dense<0.000000e+00> : vector<16x4xf32>
    %17 = tpu.matmul %1, %8, %cst_17 {dimension_numbers = #tpu.dot_dimension_numbers<[1], [0], [0], [1], [0, 0, 1, 1], [], []>} : vector<16x16xbf16>, vector<16x4xbf16>, vector<16x4xf32> -> vector<16x4xf32>
    %18 = arith.truncf %17 : vector<16x4xf32> to vector<16x4xbf16>
    %c1 = arith.constant 1 : index
    %c0_18 = arith.constant 0 : index
    %c0_19 = arith.constant 0 : index
    %19 = vector.load %arg4[%c1, %c0_18, %c0_19] : memref<3x4x64xbf16, #tpu.memory_space<vmem>>, vector<1x4x64xbf16>
    %20 = vector.shape_cast %19 : vector<1x4x64xbf16> to vector<4x64xbf16>
    %cst_20 = arith.constant dense<0.000000e+00> : vector<16x64xf32>
    %21 = tpu.matmul %18, %20, %cst_20 {dimension_numbers = #tpu.dot_dimension_numbers<[1], [0], [0], [1], [0, 0, 1, 1], [], []>} : vector<16x4xbf16>, vector<4x64xbf16>, vector<16x64xf32> -> vector<16x64xf32>
    %22 = arith.addf %12, %21 : vector<16x64xf32>
    %c1_21 = arith.constant 1 : index
    %c0_22 = arith.constant 0 : index
    %c0_23 = arith.constant 0 : index
    %23 = vector.load %arg6[%c1_21, %c0_22, %c0_23] : memref<3x4x32xbf16, #tpu.memory_space<vmem>>, vector<1x4x32xbf16>
    %24 = vector.shape_cast %23 : vector<1x4x32xbf16> to vector<4x32xbf16>
    %cst_24 = arith.constant dense<0.000000e+00> : vector<16x32xf32>
    %25 = tpu.matmul %18, %24, %cst_24 {dimension_numbers = #tpu.dot_dimension_numbers<[1], [0], [0], [1], [0, 0, 1, 1], [], []>} : vector<16x4xbf16>, vector<4x32xbf16>, vector<16x32xf32> -> vector<16x32xf32>
    %26 = arith.addf %16, %25 : vector<16x32xf32>
    %cst_25 = arith.constant dense<0.000000e+00> : vector<16x4xf32>
    %27 = tpu.matmul %1, %18, %cst_25 {dimension_numbers = #tpu.dot_dimension_numbers<[1], [0], [0], [1], [0, 0, 1, 1], [], []>} : vector<16x16xbf16>, vector<16x4xbf16>, vector<16x4xf32> -> vector<16x4xf32>
    %cst_26 = arith.constant 2.000000e+00 : f32
    %28 = vector.broadcast %cst_26 : f32 to vector<16x4xf32>
    %29 = arith.mulf %28, %27 : vector<16x4xf32>
    %30 = arith.subf %29, %3 : vector<16x4xf32>
    %31 = arith.truncf %30 : vector<16x4xf32> to vector<16x4xbf16>
    %c2 = arith.constant 2 : index
    %c0_27 = arith.constant 0 : index
    %c0_28 = arith.constant 0 : index
    %32 = vector.load %arg4[%c2, %c0_27, %c0_28] : memref<3x4x64xbf16, #tpu.memory_space<vmem>>, vector<1x4x64xbf16>
    %33 = vector.shape_cast %32 : vector<1x4x64xbf16> to vector<4x64xbf16>
    %cst_29 = arith.constant dense<0.000000e+00> : vector<16x64xf32>
    %34 = tpu.matmul %31, %33, %cst_29 {dimension_numbers = #tpu.dot_dimension_numbers<[1], [0], [0], [1], [0, 0, 1, 1], [], []>} : vector<16x4xbf16>, vector<4x64xbf16>, vector<16x64xf32> -> vector<16x64xf32>
    %35 = arith.addf %22, %34 : vector<16x64xf32>
    %c2_30 = arith.constant 2 : index
    %c0_31 = arith.constant 0 : index
    %c0_32 = arith.constant 0 : index
    %36 = vector.load %arg6[%c2_30, %c0_31, %c0_32] : memref<3x4x32xbf16, #tpu.memory_space<vmem>>, vector<1x4x32xbf16>
    %37 = vector.shape_cast %36 : vector<1x4x32xbf16> to vector<4x32xbf16>
    %cst_33 = arith.constant dense<0.000000e+00> : vector<16x32xf32>
    %38 = tpu.matmul %31, %37, %cst_33 {dimension_numbers = #tpu.dot_dimension_numbers<[1], [0], [0], [1], [0, 0, 1, 1], [], []>} : vector<16x4xbf16>, vector<4x32xbf16>, vector<16x32xf32> -> vector<16x32xf32>
    %39 = arith.addf %26, %38 : vector<16x32xf32>
    %40 = arith.truncf %5 : vector<16x32xf32> to vector<16x32xbf16>
    %c0_34 = arith.constant 0 : index
    %c0_35 = arith.constant 0 : index
    %c0_36 = arith.constant 0 : index
    %41 = vector.load %arg5[%c0_34, %c0_35, %c0_36] : memref<3x32x64xbf16, #tpu.memory_space<vmem>>, vector<1x32x64xbf16>
    %42 = vector.shape_cast %41 : vector<1x32x64xbf16> to vector<32x64xbf16>
    %cst_37 = arith.constant dense<0.000000e+00> : vector<16x64xf32>
    %43 = tpu.matmul %40, %42, %cst_37 {dimension_numbers = #tpu.dot_dimension_numbers<[1], [0], [0], [1], [0, 0, 1, 1], [], []>} : vector<16x32xbf16>, vector<32x64xbf16>, vector<16x64xf32> -> vector<16x64xf32>
    %44 = arith.addf %35, %43 : vector<16x64xf32>
    %cst_38 = arith.constant dense<0.000000e+00> : vector<16x32xf32>
    %45 = tpu.matmul %1, %40, %cst_38 {dimension_numbers = #tpu.dot_dimension_numbers<[1], [0], [0], [1], [0, 0, 1, 1], [], []>} : vector<16x16xbf16>, vector<16x32xbf16>, vector<16x32xf32> -> vector<16x32xf32>
    %46 = arith.truncf %45 : vector<16x32xf32> to vector<16x32xbf16>
    %c1_39 = arith.constant 1 : index
    %c0_40 = arith.constant 0 : index
    %c0_41 = arith.constant 0 : index
    %47 = vector.load %arg5[%c1_39, %c0_40, %c0_41] : memref<3x32x64xbf16, #tpu.memory_space<vmem>>, vector<1x32x64xbf16>
    %48 = vector.shape_cast %47 : vector<1x32x64xbf16> to vector<32x64xbf16>
    %cst_42 = arith.constant dense<0.000000e+00> : vector<16x64xf32>
    %49 = tpu.matmul %46, %48, %cst_42 {dimension_numbers = #tpu.dot_dimension_numbers<[1], [0], [0], [1], [0, 0, 1, 1], [], []>} : vector<16x32xbf16>, vector<32x64xbf16>, vector<16x64xf32> -> vector<16x64xf32>
    %50 = arith.addf %44, %49 : vector<16x64xf32>
    %cst_43 = arith.constant dense<0.000000e+00> : vector<16x32xf32>
    %51 = tpu.matmul %1, %46, %cst_43 {dimension_numbers = #tpu.dot_dimension_numbers<[1], [0], [0], [1], [0, 0, 1, 1], [], []>} : vector<16x16xbf16>, vector<16x32xbf16>, vector<16x32xf32> -> vector<16x32xf32>
    %cst_44 = arith.constant 2.000000e+00 : f32
    %52 = vector.broadcast %cst_44 : f32 to vector<16x32xf32>
    %53 = arith.mulf %52, %51 : vector<16x32xf32>
    %54 = arith.subf %53, %5 : vector<16x32xf32>
    %55 = arith.truncf %54 : vector<16x32xf32> to vector<16x32xbf16>
    %c2_45 = arith.constant 2 : index
    %c0_46 = arith.constant 0 : index
    %c0_47 = arith.constant 0 : index
    %56 = vector.load %arg5[%c2_45, %c0_46, %c0_47] : memref<3x32x64xbf16, #tpu.memory_space<vmem>>, vector<1x32x64xbf16>
    %57 = vector.shape_cast %56 : vector<1x32x64xbf16> to vector<32x64xbf16>
    %cst_48 = arith.constant dense<0.000000e+00> : vector<16x64xf32>
    %58 = tpu.matmul %55, %57, %cst_48 {dimension_numbers = #tpu.dot_dimension_numbers<[1], [0], [0], [1], [0, 0, 1, 1], [], []>} : vector<16x32xbf16>, vector<32x64xbf16>, vector<16x64xf32> -> vector<16x64xf32>
    %59 = arith.addf %50, %58 : vector<16x64xf32>
    %c0_49 = arith.constant 0 : index
    %c0_50 = arith.constant 0 : index
    %60 = vector.load %arg8[%c0_49, %c0_50] : memref<1x64xf32, #tpu.memory_space<vmem>>, vector<1x64xf32>
    %61 = vector.broadcast %60 : vector<1x64xf32> to vector<16x64xf32>
    %62 = arith.addf %59, %61 : vector<16x64xf32>
    %63 = arith.negf %62 : vector<16x64xf32>
    %64 = math.exp %63 : vector<16x64xf32>
    %cst_51 = arith.constant 1.000000e+00 : f32
    %65 = vector.broadcast %cst_51 : f32 to vector<16x64xf32>
    %66 = arith.addf %65, %64 : vector<16x64xf32>
    %67 = arith.divf %65, %66 : vector<16x64xf32>
    %68 = vector.extract_strided_slice %67 {offsets = [0, 0], sizes = [16, 32], strides = [1, 1]} : vector<16x64xf32> to vector<16x32xf32>
    %69 = vector.extract_strided_slice %67 {offsets = [0, 32], sizes = [16, 32], strides = [1, 1]} : vector<16x64xf32> to vector<16x32xf32>
    %70 = arith.mulf %68, %5 : vector<16x32xf32>
    %71 = arith.truncf %70 : vector<16x32xf32> to vector<16x32xbf16>
    %c0_52 = arith.constant 0 : index
    %c0_53 = arith.constant 0 : index
    %c0_54 = arith.constant 0 : index
    %72 = vector.load %arg7[%c0_52, %c0_53, %c0_54] : memref<3x32x32xbf16, #tpu.memory_space<vmem>>, vector<1x32x32xbf16>
    %73 = vector.shape_cast %72 : vector<1x32x32xbf16> to vector<32x32xbf16>
    %cst_55 = arith.constant dense<0.000000e+00> : vector<16x32xf32>
    %74 = tpu.matmul %71, %73, %cst_55 {dimension_numbers = #tpu.dot_dimension_numbers<[1], [0], [0], [1], [0, 0, 1, 1], [], []>} : vector<16x32xbf16>, vector<32x32xbf16>, vector<16x32xf32> -> vector<16x32xf32>
    %75 = arith.addf %39, %74 : vector<16x32xf32>
    %cst_56 = arith.constant dense<0.000000e+00> : vector<16x32xf32>
    %76 = tpu.matmul %1, %71, %cst_56 {dimension_numbers = #tpu.dot_dimension_numbers<[1], [0], [0], [1], [0, 0, 1, 1], [], []>} : vector<16x16xbf16>, vector<16x32xbf16>, vector<16x32xf32> -> vector<16x32xf32>
    %77 = arith.truncf %76 : vector<16x32xf32> to vector<16x32xbf16>
    %c1_57 = arith.constant 1 : index
    %c0_58 = arith.constant 0 : index
    %c0_59 = arith.constant 0 : index
    %78 = vector.load %arg7[%c1_57, %c0_58, %c0_59] : memref<3x32x32xbf16, #tpu.memory_space<vmem>>, vector<1x32x32xbf16>
    %79 = vector.shape_cast %78 : vector<1x32x32xbf16> to vector<32x32xbf16>
    %cst_60 = arith.constant dense<0.000000e+00> : vector<16x32xf32>
    %80 = tpu.matmul %77, %79, %cst_60 {dimension_numbers = #tpu.dot_dimension_numbers<[1], [0], [0], [1], [0, 0, 1, 1], [], []>} : vector<16x32xbf16>, vector<32x32xbf16>, vector<16x32xf32> -> vector<16x32xf32>
    %81 = arith.addf %75, %80 : vector<16x32xf32>
    %cst_61 = arith.constant dense<0.000000e+00> : vector<16x32xf32>
    %82 = tpu.matmul %1, %77, %cst_61 {dimension_numbers = #tpu.dot_dimension_numbers<[1], [0], [0], [1], [0, 0, 1, 1], [], []>} : vector<16x16xbf16>, vector<16x32xbf16>, vector<16x32xf32> -> vector<16x32xf32>
    %cst_62 = arith.constant 2.000000e+00 : f32
    %83 = vector.broadcast %cst_62 : f32 to vector<16x32xf32>
    %84 = arith.mulf %83, %82 : vector<16x32xf32>
    %85 = arith.subf %84, %70 : vector<16x32xf32>
    %86 = arith.truncf %85 : vector<16x32xf32> to vector<16x32xbf16>
    %c2_63 = arith.constant 2 : index
    %c0_64 = arith.constant 0 : index
    %c0_65 = arith.constant 0 : index
    %87 = vector.load %arg7[%c2_63, %c0_64, %c0_65] : memref<3x32x32xbf16, #tpu.memory_space<vmem>>, vector<1x32x32xbf16>
    %88 = vector.shape_cast %87 : vector<1x32x32xbf16> to vector<32x32xbf16>
    %cst_66 = arith.constant dense<0.000000e+00> : vector<16x32xf32>
    %89 = tpu.matmul %86, %88, %cst_66 {dimension_numbers = #tpu.dot_dimension_numbers<[1], [0], [0], [1], [0, 0, 1, 1], [], []>} : vector<16x32xbf16>, vector<32x32xbf16>, vector<16x32xf32> -> vector<16x32xf32>
    %90 = arith.addf %81, %89 : vector<16x32xf32>
    %c0_67 = arith.constant 0 : index
    %c0_68 = arith.constant 0 : index
    %91 = vector.load %arg9[%c0_67, %c0_68] : memref<1x32xf32, #tpu.memory_space<vmem>>, vector<1x32xf32>
    %92 = vector.broadcast %91 : vector<1x32xf32> to vector<16x32xf32>
    %93 = arith.addf %90, %92 : vector<16x32xf32>
    %94 = math.tanh %93 : vector<16x32xf32>
    %95 = arith.mulf %69, %5 : vector<16x32xf32>
    %cst_69 = arith.constant 1.000000e+00 : f32
    %96 = vector.broadcast %cst_69 : f32 to vector<16x32xf32>
    %97 = arith.subf %96, %69 : vector<16x32xf32>
    %98 = arith.mulf %97, %94 : vector<16x32xf32>
    %99 = arith.addf %95, %98 : vector<16x32xf32>
    %c0_70 = arith.constant 0 : index
    %c0_71 = arith.constant 0 : index
    %c0_72 = arith.constant 0 : index
    %100 = vector.load %arg10[%c0_70, %c0_71, %c0_72] : memref<1x16x32xf32, #tpu.memory_space<vmem>>, vector<1x16x32xf32>
    %101 = vector.shape_cast %100 : vector<1x16x32xf32> to vector<16x32xf32>
    %102 = vector.shape_cast %99 : vector<16x32xf32> to vector<1x16x32xf32>
    tpu.vector_store %arg10[%c0_70, %c0_71, %c0_72], %102 {strides = array<i32>} : memref<1x16x32xf32, #tpu.memory_space<vmem>>, vector<1x16x32xf32>,
    return
  }
  func.func @transform_0(%arg0: i32) -> (i32, i32, i32) {
    %c0_i32 = arith.constant 0 : i32
    %c0_i32_0 = arith.constant 0 : i32
    %c0_i32_1 = arith.constant 0 : i32
    %c0_i32_2 = arith.constant 0 : i32
    return %c0_i32, %c0_i32_0, %c0_i32_1 : i32, i32, i32
  }
  func.func @transform_1(%arg0: i32) -> (i32, i32, i32) {
    %c0_i32 = arith.constant 0 : i32
    %c0_i32_0 = arith.constant 0 : i32
    %c0_i32_1 = arith.constant 0 : i32
    return %arg0, %c0_i32, %c0_i32_0 : i32, i32, i32
  }
  func.func @transform_2(%arg0: i32) -> (i32, i32, i32) {
    %c0_i32 = arith.constant 0 : i32
    %c0_i32_0 = arith.constant 0 : i32
    %c0_i32_1 = arith.constant 0 : i32
    return %arg0, %c0_i32, %c0_i32_0 : i32, i32, i32
  }
  func.func @transform_3(%arg0: i32) -> (i32, i32, i32) {
    %c0_i32 = arith.constant 0 : i32
    %c0_i32_0 = arith.constant 0 : i32
    %c0_i32_1 = arith.constant 0 : i32
    %c0_i32_2 = arith.constant 0 : i32
    return %c0_i32, %c0_i32_0, %c0_i32_1 : i32, i32, i32
  }
  func.func @transform_4(%arg0: i32) -> (i32, i32, i32) {
    %c0_i32 = arith.constant 0 : i32
    %c0_i32_0 = arith.constant 0 : i32
    %c0_i32_1 = arith.constant 0 : i32
    %c0_i32_2 = arith.constant 0 : i32
    return %c0_i32, %c0_i32_0, %c0_i32_1 : i32, i32, i32
  }
  func.func @transform_5(%arg0: i32) -> (i32, i32, i32) {
    %c0_i32 = arith.constant 0 : i32
    %c0_i32_0 = arith.constant 0 : i32
    %c0_i32_1 = arith.constant 0 : i32
    %c0_i32_2 = arith.constant 0 : i32
    return %c0_i32, %c0_i32_0, %c0_i32_1 : i32, i32, i32
  }
  func.func @transform_6(%arg0: i32) -> (i32, i32, i32) {
    %c0_i32 = arith.constant 0 : i32
    %c0_i32_0 = arith.constant 0 : i32
    %c0_i32_1 = arith.constant 0 : i32
    %c0_i32_2 = arith.constant 0 : i32
    return %c0_i32, %c0_i32_0, %c0_i32_1 : i32, i32, i32
  }
  func.func @transform_7(%arg0: i32) -> (i32, i32) {
    %c0_i32 = arith.constant 0 : i32
    %c0_i32_0 = arith.constant 0 : i32
    %c0_i32_1 = arith.constant 0 : i32
    return %c0_i32, %c0_i32_0 : i32, i32
  }
  func.func @transform_8(%arg0: i32) -> (i32, i32) {
    %c0_i32 = arith.constant 0 : i32
    %c0_i32_0 = arith.constant 0 : i32
    %c0_i32_1 = arith.constant 0 : i32
    return %c0_i32, %c0_i32_0 : i32, i32
  }
  func.func @transform_9(%arg0: i32) -> (i32, i32, i32) {
    %c0_i32 = arith.constant 0 : i32
    %c0_i32_0 = arith.constant 0 : i32
    %c0_i32_1 = arith.constant 0 : i32
    return %arg0, %c0_i32, %c0_i32_0 : i32, i32, i32
  }
}

</mosaic_0001>

<llo_original>
// kernel: step.1
$region0: #{step.1}
  #allocation0 [shape = 'u32[]', space=smem, size = 0x4, offset = 0x4, fixed_abs, tag = 'smem constant byte address 0x4 - core index']
  #allocation1 [shape = 'u32[144,128]{1,0:T(1,128)}', space=vmem, size = 0x12000, scoped, tag = 'internal scratch']
  %s0 = inlined_call_operand.vmem [shape: bf16[1,16,16], index: 0, kind: input, shape index: {}]
  %s1 = inlined_call_operand.vmem [shape: f32[2,16,4], index: 1, kind: input, shape index: {}]
  %s2 = inlined_call_operand.vmem [shape: f32[2,16,32], index: 2, kind: input, shape index: {}]
  %s3 = inlined_call_operand.hbm [shape: bf16[3,4,64], index: 3, kind: input, shape index: {}]
  %s4 = inlined_call_operand.vmem [shape: bf16[3,32,64], index: 4, kind: input, shape index: {}]
  %s5 = inlined_call_operand.hbm [shape: bf16[3,4,32], index: 5, kind: input, shape index: {}]
  %s6 = inlined_call_operand.vmem [shape: bf16[3,32,32], index: 6, kind: input, shape index: {}]
  %s7 = inlined_call_operand.hbm [shape: f32[1,64], index: 7, kind: input, shape index: {}]
  %s8 = inlined_call_operand.hbm [shape: f32[1,32], index: 8, kind: input, shape index: {}]
  %s9 = inlined_call_operand.vmem [shape: f32[2,16,32], index: 9, kind: output, shape index: {}]
  %s10 = sld [smem:[#allocation0]]
  $region85: #{step.1} parent=0
    _
  %s12 = ssub.s32 1, %s10
  %s13 = scalar_select 0, %s12, %s10
  $region1: #{step.1} parent=0
    #allocation2 [shape = 'u8[3072]{0}', space=vmem, size = 0xc00, scoped, tag = 'input window, operand 3, single buffered']
    #allocation3 [shape = 's32[2]{0}', space=sflag, size = 0x8, scoped, tag = 'scoped memory for step.1']
    #allocation4 [shape = 'u8[3072]{0}', space=vmem, size = 0xc00, scoped, tag = 'input window, operand 5, single buffered']
    #allocation5 [shape = 's32[1]{0}', space=sflag, size = 0x4, scoped, tag = 'scoped memory for step.1']
    #allocation6 [shape = 'u8[512]{0}', space=vmem, size = 0x400, scoped, tag = 'input window, operand 7, single buffered']
    #allocation7 [shape = 'u8[512]{0}', space=vmem, size = 0x400, scoped, tag = 'input window, operand 8, single buffered']
    #allocation8 [shape = 's32[1]{0}', space=sflag, size = 0x4, scoped, tag = 'scoped memory for step.1']
    %14 = vsyncpa [#allocation3], 0
    %15 = vsyncpa [#allocation5], 0
    %16 = vsyncpa [#allocation8], 0
    loop: start=0, step=1, limit=4
    $region2: #{step.1} parent=1 // loop_pre_header
      _
    $region3: #{step.1} parent=1 // loop_header
      %s18 = sphi 0, %s22
      %p19 = scmp.ge.s32.totalorder %s18, 4
      %s26 = sphi 0, %s26
      %s28 = sphi 0, %s26
      %s29 = sphi 0, %s28
      %s43 = sphi 0, %s29
      %s49 = sphi 0, %s51
      %s52 = sphi 0, %s49
      %s53 = sphi 0, %s52
      %s69 = sphi 0, %s53
      %s75 = sphi 0, %s77
      %s78 = sphi 0, %s75
      %s79 = sphi 0, %s78
      %s95 = sphi 0, %s79
      %s99 = sphi 0, %s99
      %s101 = sphi 0, %s99
      %s102 = sphi 0, %s101
      %s116 = sphi 0, %s102
      %s120 = sphi 0, %s120
      %s122 = sphi 0, %s120
      %s123 = sphi 0, %s122
      %s137 = sphi 0, %s123
      %s141 = sphi 0, %s141
      %s143 = sphi 0, %s141
      %s144 = sphi 0, %s143
      %s158 = sphi 0, %s144
      %s162 = sphi 0, %s162
      %s164 = sphi 0, %s162
      %s165 = sphi 0, %s164
      %s179 = sphi 0, %s165
      %s183 = sphi 0, %s183
      %s185 = sphi 0, %s183
      %s186 = sphi 0, %s185
      %s200 = sphi 0, %s186
      %s204 = sphi 0, %s204
      %s206 = sphi 0, %s204
      %s207 = sphi 0, %s206
      %s221 = sphi 0, %s207
      %s227 = sphi 0, %s229
      %s230 = sphi 0, %s227
      %s231 = sphi 0, %s230
      %s247 = sphi 0, %s231
    $region4: #{step.1} parent=1 // loop_header_branch
      %21 = sbr.rel (%p19) target = $region8
    $region5: #{step.1} parent=1 // loop_body
      %s23 = ssub.s32 %s18, 1
      %s24 = ssub.s32 %s18, 2
      %s25 = sadd.s32 %s18, 1
      %s27 = sadd.s32 %s26, 1
      %p30 = scmp.eq.s32.totalorder %s18, 1
      %p31 = scmp.ne.s32.totalorder %s26, %s28
      %p32 = scmp.eq.s32.totalorder %s18, 0
      %p33 = por %p31, %p32
      %p34 = scmp.ne.s32.totalorder %s26, %s28
      %p35 = scmp.eq.s32.totalorder %s23, 1
      %p36 = por %p34, %p35
      %p37 = scmp.ne.s32.totalorder %s28, %s29
      %p38 = scmp.eq.s32.totalorder %s23, 0
      %p39 = por %p37, %p38
      %p40 = scmp.ne.s32.totalorder %s28, %s29
      %p41 = scmp.eq.s32.totalorder %s24, 1
      %p42 = por %p40, %p41
      %p44 = scmp.ne.s32.totalorder %s29, %s43
      %p45 = scmp.eq.s32.totalorder %s24, 0
      %p46 = por %p44, %p45
      %s47 = ssub.s32 %s18, %s25
      %p48 = scmp.eq.s32.totalorder %s47, 0
      %s50 = sadd.s32 %s49, 1
      %s51 = scalar_select %p48, %s49, %s50
      %p54 = pneg %p48
      %p55 = scmp.eq.s32.totalorder %s18, 1
      %p56 = por %p54, %p55
      %p57 = scmp.ne.s32.totalorder %s49, %s52
      %p58 = scmp.eq.s32.totalorder %s18, 0
      %p59 = por %p57, %p58
      %p60 = scmp.ne.s32.totalorder %s49, %s52
      %p61 = scmp.eq.s32.totalorder %s23, 1
      %p62 = por %p60, %p61
      %p63 = scmp.ne.s32.totalorder %s52, %s53
      %p64 = scmp.eq.s32.totalorder %s23, 0
      %p65 = por %p63, %p64
      %p66 = scmp.ne.s32.totalorder %s52, %s53
      %p67 = scmp.eq.s32.totalorder %s24, 1
      %p68 = por %p66, %p67
      %p70 = scmp.ne.s32.totalorder %s53, %s69
      %p71 = scmp.eq.s32.totalorder %s24, 0
      %p72 = por %p70, %p71
      %s73 = ssub.s32 %s18, %s25
      %p74 = scmp.eq.s32.totalorder %s73, 0
      %s76 = sadd.s32 %s75, 1
      %s77 = scalar_select %p74, %s75, %s76
      %p80 = pneg %p74
      %p81 = scmp.eq.s32.totalorder %s18, 1
      %p82 = por %p80, %p81
      %p83 = scmp.ne.s32.totalorder %s75, %s78
      %p84 = scmp.eq.s32.totalorder %s18, 0
      %p85 = por %p83, %p84
      %p86 = scmp.ne.s32.totalorder %s75, %s78
      %p87 = scmp.eq.s32.totalorder %s23, 1
      %p88 = por %p86, %p87
      %p89 = scmp.ne.s32.totalorder %s78, %s79
      %p90 = scmp.eq.s32.totalorder %s23, 0
      %p91 = por %p89, %p90
      %p92 = scmp.ne.s32.totalorder %s78, %s79
      %p93 = scmp.eq.s32.totalorder %s24, 1
      %p94 = por %p92, %p93
      %p96 = scmp.ne.s32.totalorder %s79, %s95
      %p97 = scmp.eq.s32.totalorder %s24, 0
      %p98 = por %p96, %p97
      %s100 = sadd.s32 %s99, 1
      %p103 = scmp.eq.s32.totalorder %s18, 1
      %p104 = scmp.ne.s32.totalorder %s99, %s101
      %p105 = scmp.eq.s32.totalorder %s18, 0
      %p106 = por %p104, %p105
      %p107 = scmp.ne.s32.totalorder %s99, %s101
      %p108 = scmp.eq.s32.totalorder %s23, 1
      %p109 = por %p107, %p108
      %p110 = scmp.ne.s32.totalorder %s101, %s102
      %p111 = scmp.eq.s32.totalorder %s23, 0
      %p112 = por %p110, %p111
      %p113 = scmp.ne.s32.totalorder %s101, %s102
      %p114 = scmp.eq.s32.totalorder %s24, 1
      %p115 = por %p113, %p114
      %p117 = scmp.ne.s32.totalorder %s102, %s116
      %p118 = scmp.eq.s32.totalorder %s24, 0
      %p119 = por %p117, %p118
      %s121 = sadd.s32 %s120, 1
      %p124 = scmp.eq.s32.totalorder %s18, 1
      %p125 = scmp.ne.s32.totalorder %s120, %s122
      %p126 = scmp.eq.s32.totalorder %s18, 0
      %p127 = por %p125, %p126
      %p128 = scmp.ne.s32.totalorder %s120, %s122
      %p129 = scmp.eq.s32.totalorder %s23, 1
      %p130 = por %p128, %p129
      %p131 = scmp.ne.s32.totalorder %s122, %s123
      %p132 = scmp.eq.s32.totalorder %s23, 0
      %p133 = por %p131, %p132
      %p134 = scmp.ne.s32.totalorder %s122, %s123
      %p135 = scmp.eq.s32.totalorder %s24, 1
      %p136 = por %p134, %p135
      %p138 = scmp.ne.s32.totalorder %s123, %s137
      %p139 = scmp.eq.s32.totalorder %s24, 0
      %p140 = por %p138, %p139
      %s142 = sadd.s32 %s141, 1
      %p145 = scmp.eq.s32.totalorder %s18, 1
      %p146 = scmp.ne.s32.totalorder %s141, %s143
      %p147 = scmp.eq.s32.totalorder %s18, 0
      %p148 = por %p146, %p147
      %p149 = scmp.ne.s32.totalorder %s141, %s143
      %p150 = scmp.eq.s32.totalorder %s23, 1
      %p151 = por %p149, %p150
      %p152 = scmp.ne.s32.totalorder %s143, %s144
      %p153 = scmp.eq.s32.totalorder %s23, 0
      %p154 = por %p152, %p153
      %p155 = scmp.ne.s32.totalorder %s143, %s144
      %p156 = scmp.eq.s32.totalorder %s24, 1
      %p157 = por %p155, %p156
      %p159 = scmp.ne.s32.totalorder %s144, %s158
      %p160 = scmp.eq.s32.totalorder %s24, 0
      %p161 = por %p159, %p160
      %s163 = sadd.s32 %s162, 1
      %p166 = scmp.eq.s32.totalorder %s18, 1
      %p167 = scmp.ne.s32.totalorder %s162, %s164
      %p168 = scmp.eq.s32.totalorder %s18, 0
      %p169 = por %p167, %p168
      %p170 = scmp.ne.s32.totalorder %s162, %s164
      %p171 = scmp.eq.s32.totalorder %s23, 1
      %p172 = por %p170, %p171
      %p173 = scmp.ne.s32.totalorder %s164, %s165
      %p174 = scmp.eq.s32.totalorder %s23, 0
      %p175 = por %p173, %p174
      %p176 = scmp.ne.s32.totalorder %s164, %s165
      %p177 = scmp.eq.s32.totalorder %s24, 1
      %p178 = por %p176, %p177
      %p180 = scmp.ne.s32.totalorder %s165, %s179
      %p181 = scmp.eq.s32.totalorder %s24, 0
      %p182 = por %p180, %p181
      %s184 = sadd.s32 %s183, 1
      %p187 = scmp.eq.s32.totalorder %s18, 1
      %p188 = scmp.ne.s32.totalorder %s183, %s185
      %p189 = scmp.eq.s32.totalorder %s18, 0
      %p190 = por %p188, %p189
      %p191 = scmp.ne.s32.totalorder %s183, %s185
      %p192 = scmp.eq.s32.totalorder %s23, 1
      %p193 = por %p191, %p192
      %p194 = scmp.ne.s32.totalorder %s185, %s186
      %p195 = scmp.eq.s32.totalorder %s23, 0
      %p196 = por %p194, %p195
      %p197 = scmp.ne.s32.totalorder %s185, %s186
      %p198 = scmp.eq.s32.totalorder %s24, 1
      %p199 = por %p197, %p198
      %p201 = scmp.ne.s32.totalorder %s186, %s200
      %p202 = scmp.eq.s32.totalorder %s24, 0
      %p203 = por %p201, %p202
      %s205 = sadd.s32 %s204, 1
      %p208 = scmp.eq.s32.totalorder %s18, 1
      %p209 = scmp.ne.s32.totalorder %s204, %s206
      %p210 = scmp.eq.s32.totalorder %s18, 0
      %p211 = por %p209, %p210
      %p212 = scmp.ne.s32.totalorder %s204, %s206
      %p213 = scmp.eq.s32.totalorder %s23, 1
      %p214 = por %p212, %p213
      %p215 = scmp.ne.s32.totalorder %s206, %s207
      %p216 = scmp.eq.s32.totalorder %s23, 0
      %p217 = por %p215, %p216
      %p218 = scmp.ne.s32.totalorder %s206, %s207
      %p219 = scmp.eq.s32.totalorder %s24, 1
      %p220 = por %p218, %p219
      %p222 = scmp.ne.s32.totalorder %s207, %s221
      %p223 = scmp.eq.s32.totalorder %s24, 0
      %p224 = por %p222, %p223
      %s225 = ssub.s32 %s18, %s25
      %p226 = scmp.eq.s32.totalorder %s225, 0
      %s228 = sadd.s32 %s227, 1
      %s229 = scalar_select %p226, %s227, %s228
      %p232 = pneg %p226
      %p233 = scmp.eq.s32.totalorder %s18, 1
      %p234 = por %p232, %p233
      %p235 = scmp.ne.s32.totalorder %s227, %s230
      %p236 = scmp.eq.s32.totalorder %s18, 0
      %p237 = por %p235, %p236
      %p238 = scmp.ne.s32.totalorder %s227, %s230
      %p239 = scmp.eq.s32.totalorder %s23, 1
      %p240 = por %p238, %p239
      %p241 = scmp.ne.s32.totalorder %s230, %s231
      %p242 = scmp.eq.s32.totalorder %s23, 0
      %p243 = por %p241, %p242
      %p244 = scmp.ne.s32.totalorder %s230, %s231
      %p245 = scmp.eq.s32.totalorder %s24, 1
      %p246 = por %p244, %p245
      %p248 = scmp.ne.s32.totalorder %s231, %s247
      %p249 = scmp.eq.s32.totalorder %s24, 0
      %p250 = por %p248, %p249
      %p251 = scmp.le.s32.totalorder 1, %s18
      %p252 = scmp.lt.s32.totalorder %s18, 3
      %p253 = pnand %p251, %p252
      %p254 = pneg %p253
      // Predicated region
      $region9: #{step.1} parent=5 // pred_check
        _
      $region10: #{step.1} parent=5 // pred_check_branch
        %256 = sbr.rel (%p253) target = $region12
      $region11: #{step.1} parent=5 // pred_region
        %s257 = ssub.s32 %s18, 1
        // Predicated region
        $region13: #{step.1} parent=11 // pred_check
          %p258 = pneg %p39
        $region14: #{step.1} parent=11 // pred_check_branch
          %260 = sbr.rel (%p258) target = $region16
        $region15: #{step.1} parent=11 // pred_region
          _
        $region16: #{step.1} parent=11 // pred_fallthru
          _
        // Predicated region
        $region17: #{step.1} parent=11 // pred_check
          %p261 = pneg %p112
        $region18: #{step.1} parent=11 // pred_check_branch
          %263 = sbr.rel (%p261) target = $region20
        $region19: #{step.1} parent=11 // pred_region
          %s265 = ssub.s32 96, 96
          %266 = vsyncadd [#allocation3], %s265
          %s267 = sshll.u32 [#allocation2], 4
          %s268 = int_to_ptr.vmem [resolvable:$true] %s267
          %273 = dma.hbm_to_vmem [thread:$0]  %s3, 96, %s268, [#allocation3], 32, 32, 2
        $region20: #{step.1} parent=11 // pred_fallthru
          _
        // Predicated region
        $region21: #{step.1} parent=11 // pred_check
          %p274 = pneg %p133
        $region22: #{step.1} parent=11 // pred_check_branch
          %276 = sbr.rel (%p274) target = $region24
        $region23: #{step.1} parent=11 // pred_region
          _
        $region24: #{step.1} parent=11 // pred_fallthru
          _
        // Predicated region
        $region25: #{step.1} parent=11 // pred_check
          %p277 = pneg %p154
        $region26: #{step.1} parent=11 // pred_check_branch
          %279 = sbr.rel (%p277) target = $region28
        $region27: #{step.1} parent=11 // pred_region
          %s281 = ssub.s32 96, 96
          %282 = vsyncadd [#allocation5], %s281
          %s283 = sshll.u32 [#allocation4], 4
          %s284 = int_to_ptr.vmem [resolvable:$true] %s283
          %289 = dma.hbm_to_vmem [thread:$0]  %s5, 96, %s284, [#allocation5], 32, 32, 2
        $region28: #{step.1} parent=11 // pred_fallthru
          _
        // Predicated region
        $region29: #{step.1} parent=11 // pred_check
          %p290 = pneg %p175
        $region30: #{step.1} parent=11 // pred_check_branch
          %292 = sbr.rel (%p290) target = $region32
        $region31: #{step.1} parent=11 // pred_region
          _
        $region32: #{step.1} parent=11 // pred_fallthru
          _
        // Predicated region
        $region33: #{step.1} parent=11 // pred_check
          %p293 = pneg %p196
        $region34: #{step.1} parent=11 // pred_check_branch
          %295 = sbr.rel (%p293) target = $region36
        $region35: #{step.1} parent=11 // pred_region
          %s297 = ssub.s32 16, 16
          %298 = vsyncadd [#allocation5], %s297
          %s300 = sshll.u32 [#allocation6], 4
          %s301 = int_to_ptr.vmem [resolvable:$true] %s300
          %303 = dma.hbm_to_vmem [thread:$0]  %s7, 16, %s301, [#allocation5]
        $region36: #{step.1} parent=11 // pred_fallthru
          _
        // Predicated region
        $region37: #{step.1} parent=11 // pred_check
          %p304 = pneg %p217
        $region38: #{step.1} parent=11 // pred_check_branch
          %306 = sbr.rel (%p304) target = $region40
        $region39: #{step.1} parent=11 // pred_region
          %s308 = ssub.s32 16, 16
          %309 = vsyncadd [#allocation8], %s308
          %s311 = sshll.u32 [#allocation7], 4
          %s312 = int_to_ptr.vmem [resolvable:$true] %s311
          %314 = dma.hbm_to_vmem [thread:$0]  %s8, 16, %s312, [#allocation8]
        $region40: #{step.1} parent=11 // pred_fallthru
          _
      $region12: #{step.1} parent=5 // pred_fallthru
        _
      %p315 = scmp.lt.s32.totalorder %s18, 2
      // Predicated region
      $region41: #{step.1} parent=5 // pred_check
        %p316 = pneg %p315
      $region42: #{step.1} parent=5 // pred_check_branch
        %318 = sbr.rel (%p316) target = $region44
      $region43: #{step.1} parent=5 // pred_region
        // Predicated region
        $region45: #{step.1} parent=43 // pred_check
          %p319 = pneg %p59
        $region46: #{step.1} parent=43 // pred_check_branch
          %321 = sbr.rel (%p319) target = $region48
        $region47: #{step.1} parent=43 // pred_region
          %p322 = scmp.lt.s32.totalorder %s18, 1
          %s323 = scalar_select %p322, %s18, 1
          %s324 = smul.addr %s323, 2
          %s325 = smul.addr %s324, 8
          %s326 = scalar_lea.vmem %s1, %s325
        $region48: #{step.1} parent=43 // pred_fallthru
          _
        // Predicated region
        $region49: #{step.1} parent=43 // pred_check
          %p327 = pneg %p85
        $region50: #{step.1} parent=43 // pred_check_branch
          %329 = sbr.rel (%p327) target = $region52
        $region51: #{step.1} parent=43 // pred_region
          %p330 = scmp.lt.s32.totalorder %s18, 1
          %s331 = scalar_select %p330, %s18, 1
          %s332 = smul.addr %s331, 2
          %s333 = smul.addr %s332, 8
          %s334 = scalar_lea.vmem %s2, %s333
        $region52: #{step.1} parent=43 // pred_fallthru
          _
      $region44: #{step.1} parent=5 // pred_fallthru
        _
      %p335 = scmp.le.s32.totalorder 1, %s18
      %p336 = scmp.lt.s32.totalorder %s18, 3
      %p337 = pnand %p335, %p336
      %p338 = pneg %p337
      // Predicated region
      $region53: #{step.1} parent=5 // pred_check
        _
      $region54: #{step.1} parent=5 // pred_check_branch
        %340 = sbr.rel (%p337) target = $region56
      $region55: #{step.1} parent=5 // pred_region
        %s341 = ssub.s32 %s18, 1
        // Predicated region
        $region57: #{step.1} parent=55 // pred_check
          %p342 = pneg %p112
        $region58: #{step.1} parent=55 // pred_check_branch
          %344 = sbr.rel (%p342) target = $region60
        $region59: #{step.1} parent=55 // pred_region
          %345 = dma.done [#allocation3], 96
        $region60: #{step.1} parent=55 // pred_fallthru
          _
        // Predicated region
        $region61: #{step.1} parent=55 // pred_check
          %p346 = pneg %p154
        $region62: #{step.1} parent=55 // pred_check_branch
          %348 = sbr.rel (%p346) target = $region64
        $region63: #{step.1} parent=55 // pred_region
          %349 = dma.done [#allocation5], 96
        $region64: #{step.1} parent=55 // pred_fallthru
          _
        // Predicated region
        $region65: #{step.1} parent=55 // pred_check
          %p350 = pneg %p196
        $region66: #{step.1} parent=55 // pred_check_branch
          %352 = sbr.rel (%p350) target = $region68
        $region67: #{step.1} parent=55 // pred_region
          %353 = dma.done [#allocation5], 16
        $region68: #{step.1} parent=55 // pred_fallthru
          _
        // Predicated region
        $region69: #{step.1} parent=55 // pred_check
          %p354 = pneg %p217
        $region70: #{step.1} parent=55 // pred_check_branch
          %356 = sbr.rel (%p354) target = $region72
        $region71: #{step.1} parent=55 // pred_region
          %357 = dma.done [#allocation8], 16
        $region72: #{step.1} parent=55 // pred_fallthru
          _
        %p358 = pneg %p39
        %p359 = pneg %p36
        %p360 = scmp.lt.s32.totalorder %s23, 1
        %s361 = scalar_select %p360, %s23, 1
        %s362 = smul.addr %s361, 2
        %s363 = smul.addr %s362, 8
        %s364 = scalar_lea.vmem %s1, %s363
        %p365 = pneg %p65
        %p366 = pneg %p62
        %p367 = scmp.lt.s32.totalorder %s23, 1
        %s368 = scalar_select %p367, %s23, 1
        %s369 = smul.addr %s368, 2
        %s370 = smul.addr %s369, 8
        %s371 = scalar_lea.vmem %s2, %s370
        %p372 = pneg %p91
        %p373 = pneg %p88
        %p374 = pneg %p112
        %p375 = pneg %p109
        %p376 = pneg %p133
        %p377 = pneg %p130
        %p378 = pneg %p154
        %p379 = pneg %p151
        %p380 = pneg %p175
        %p381 = pneg %p172
        %p382 = pneg %p196
        %p383 = pneg %p193
        %p384 = pneg %p217
        %p385 = pneg %p214
        %p386 = pneg %p243
        %p387 = pneg %p240
        %p388 = scmp.lt.s32.totalorder %s23, 1
        %s389 = scalar_select %p388, %s23, 1
        %s390 = smul.addr %s389, 2
        %s391 = smul.addr %s390, 8
        %s392 = scalar_lea.vmem %s9, %s391
        %p393 = scmp.lt.s32.totalorder %s23, 1
        %s394 = scalar_select %p393, %s23, 1
        %s395 = smul.addr %s394, 2
        %s396 = smul.addr %s395, 8
        %s397 = scalar_lea.vmem %s1, %s396
        %p398 = scmp.lt.s32.totalorder %s23, 1
        %s399 = scalar_select %p398, %s23, 1
        %s400 = smul.addr %s399, 2
        %s401 = smul.addr %s400, 8
        %s402 = scalar_lea.vmem %s2, %s401
        %p403 = scmp.lt.s32.totalorder %s23, 1
        %s404 = scalar_select %p403, %s23, 1
        %s405 = smul.addr %s404, 2
        %s406 = smul.addr %s405, 8
        %s407 = scalar_lea.vmem %s9, %s406
        %v409 = vld [vmem:[%s0] sm:$0xf]
        %v410 = vld [vmem:[%s0 + $0x4] sm:$0xf]
        %v411 = vld [vmem:[%s397] sm:$0xff]
        %v412 = vld [vmem:[%s397 + $0x8] sm:$0xff]
        %v413 = vld [vmem:[%s402] sm:$0xff]
        %v414 = vld [vmem:[%s402 + $0x8] sm:$0xff]
        %v415 = vpack.c.bf16 %v412, %v411
        %v416 = vld [vmem:[#allocation2] sm:$0x3]
        %v417 = vld [vmem:[#allocation4] sm:$0x3]
        %v420 = vunpack.c.l.b16 %v409
        %v421 = vunpack.c.l.b16 %v410
        %v422 = vpack.c.b16 %v421, %v420
        %vm423 = vcmask 130048
        %v425 = vsel %vm423, %v422, 0
        %427 = vmatprep.subr.bf16.mxu0 0
        %428 = vmatpush1.bf16.msra.mxu0 %v415
        %429 = vmatprep.subr.bf16.mxu0 0
        %430 = vmatpush1.bf16.msra.mxu0 0
        %431 = vmatprep.subr.bf16.mxu0 0
        %432 = vmatpush1.bf16.msra.mxu0 0
        %433 = vmatprep.subr.bf16.mxu0 0
        %434 = vmatpush1.bf16.msra.mxu0 0
        %435 = vmatprep.subr.bf16.mxu0 0
        %436 = vmatpush1.bf16.msra.mxu0 0
        %437 = vmatprep.subr.bf16.mxu0 0
        %438 = vmatpush1.bf16.msra.mxu0 0
        %439 = vmatprep.subr.bf16.mxu0 0
        %440 = vmatpush1.bf16.msra.mxu0 0
        %441 = vmatprep.subr.bf16.mxu0 0
        %442 = vmatpush1.bf16.msra.mxu0 0
        %443 = vmatprep.subr.bf16.mxu0 0
        %444 = vmatpush1.bf16.msra.mxu0 0
        %445 = vmatprep.subr.bf16.mxu0 0
        %446 = vmatpush1.bf16.msra.mxu0 0
        %447 = vmatprep.subr.bf16.mxu0 0
        %448 = vmatpush1.bf16.msra.mxu0 0
        %449 = vmatprep.subr.bf16.mxu0 0
        %450 = vmatpush1.bf16.msra.mxu0 0
        %451 = vmatprep.subr.bf16.mxu0 0
        %452 = vmatpush1.bf16.msra.mxu0 0
        %453 = vmatprep.subr.bf16.mxu0 0
        %454 = vmatpush1.bf16.msra.mxu0 0
        %455 = vmatprep.subr.bf16.mxu0 0
        %456 = vmatpush1.bf16.msra.mxu0 0
        %457 = vmatprep.subr.bf16.mxu0 0
        %458 = vmatpush1.bf16.msra.mxu0 0
        %459 = vmatprep.mubr.bf16.mxu0 0
        %460 = vmatmul.mubr.bf16.gmra.mrb[0].mxu0 %v425
        %v461 = vpop.f32.mrb[0].mxu0
        %v462 = vadd.f32 0.0, %v461
        %v463 = vpop.f32.mrb[0].mxu0
        %v464 = vpop.f32.mrb[0].mxu0
        %v465 = vadd.f32 0.0, %v464
        %v466 = vpop.f32.mrb[0].mxu0
        %467 = vdwg.mxu0
        %v468 = vpack.c.bf16 %v465, %v462
        %s469 = scalar_lea.vmem [#allocation2], 2
        %v470 = vld [vmem:[%s469] sm:$0x3]
        %vm471 = vcmask 31744
        %v473 = vsel %vm471, %v468, 0
        %vm475 = vcmask 1041408
        %v477 = vsel %vm475, %v470, 0
        %479 = vmatprep.subr.bf16.mxu0 0
        %480 = vmatpush1.bf16.msra.mxu0 %v477
        %481 = vmatprep.subr.bf16.mxu0 0
        %482 = vmatpush1.bf16.msra.mxu0 0
        %483 = vmatprep.subr.bf16.mxu0 0
        %484 = vmatpush1.bf16.msra.mxu0 0
        %485 = vmatprep.subr.bf16.mxu0 0
        %486 = vmatpush1.bf16.msra.mxu0 0
        %487 = vmatprep.subr.bf16.mxu0 0
        %488 = vmatpush1.bf16.msra.mxu0 0
        %489 = vmatprep.subr.bf16.mxu0 0
        %490 = vmatpush1.bf16.msra.mxu0 0
        %491 = vmatprep.subr.bf16.mxu0 0
        %492 = vmatpush1.bf16.msra.mxu0 0
        %493 = vmatprep.subr.bf16.mxu0 0
        %494 = vmatpush1.bf16.msra.mxu0 0
        %495 = vmatprep.subr.bf16.mxu0 0
        %496 = vmatpush1.bf16.msra.mxu0 0
        %497 = vmatprep.subr.bf16.mxu0 0
        %498 = vmatpush1.bf16.msra.mxu0 0
        %499 = vmatprep.subr.bf16.mxu0 0
        %500 = vmatpush1.bf16.msra.mxu0 0
        %501 = vmatprep.subr.bf16.mxu0 0
        %502 = vmatpush1.bf16.msra.mxu0 0
        %503 = vmatprep.subr.bf16.mxu0 0
        %504 = vmatpush1.bf16.msra.mxu0 0
        %505 = vmatprep.subr.bf16.mxu0 0
        %506 = vmatpush1.bf16.msra.mxu0 0
        %507 = vmatprep.subr.bf16.mxu0 0
        %508 = vmatpush1.bf16.msra.mxu0 0
        %509 = vmatprep.subr.bf16.mxu0 0
        %510 = vmatpush1.bf16.msra.mxu0 0
        %511 = vmatprep.mubr.bf16.mxu0 0
        %512 = vmatmul.mubr.bf16.gmra.mrb[0].mxu0 %v473
        %v513 = vpop.f32.mrb[0].mxu0
        %v514 = vadd.f32 0.0, %v513
        %v515 = vpop.f32.mrb[0].mxu0
        %v516 = vpop.f32.mrb[0].mxu0
        %v517 = vadd.f32 0.0, %v516
        %v518 = vpop.f32.mrb[0].mxu0
        %519 = vdwg.mxu0
        %v521 = vsel %vm471, %v415, 0
        %v524 = vsel %vm475, %v416, 0
        %526 = vmatprep.subr.bf16.mxu0 0
        %527 = vmatpush1.bf16.msra.mxu0 %v524
        %528 = vmatprep.subr.bf16.mxu0 0
        %529 = vmatpush1.bf16.msra.mxu0 0
        %530 = vmatprep.subr.bf16.mxu0 0
        %531 = vmatpush1.bf16.msra.mxu0 0
        %532 = vmatprep.subr.bf16.mxu0 0
        %533 = vmatpush1.bf16.msra.mxu0 0
        %534 = vmatprep.subr.bf16.mxu0 0
        %535 = vmatpush1.bf16.msra.mxu0 0
        %536 = vmatprep.subr.bf16.mxu0 0
        %537 = vmatpush1.bf16.msra.mxu0 0
        %538 = vmatprep.subr.bf16.mxu0 0
        %539 = vmatpush1.bf16.msra.mxu0 0
        %540 = vmatprep.subr.bf16.mxu0 0
        %541 = vmatpush1.bf16.msra.mxu0 0
        %542 = vmatprep.subr.bf16.mxu0 0
        %543 = vmatpush1.bf16.msra.mxu0 0
        %544 = vmatprep.subr.bf16.mxu0 0
        %545 = vmatpush1.bf16.msra.mxu0 0
        %546 = vmatprep.subr.bf16.mxu0 0
        %547 = vmatpush1.bf16.msra.mxu0 0
        %548 = vmatprep.subr.bf16.mxu0 0
        %549 = vmatpush1.bf16.msra.mxu0 0
        %550 = vmatprep.subr.bf16.mxu0 0
        %551 = vmatpush1.bf16.msra.mxu0 0
        %552 = vmatprep.subr.bf16.mxu0 0
        %553 = vmatpush1.bf16.msra.mxu0 0
        %554 = vmatprep.subr.bf16.mxu0 0
        %555 = vmatpush1.bf16.msra.mxu0 0
        %556 = vmatprep.subr.bf16.mxu0 0
        %557 = vmatpush1.bf16.msra.mxu0 0
        %558 = vmatprep.mubr.bf16.mxu0 0
        %559 = vmatmul.mubr.bf16.gmra.mrb[0].mxu0 %v521
        %v560 = vpop.f32.mrb[0].mxu0
        %v561 = vadd.f32 %v514, %v560
        %v562 = vpop.f32.mrb[0].mxu0
        %v563 = vpop.f32.mrb[0].mxu0
        %v564 = vadd.f32 %v517, %v563
        %v565 = vpop.f32.mrb[0].mxu0
        %566 = vdwg.mxu0
        %s567 = scalar_lea.vmem [#allocation4], 2
        %v568 = vld [vmem:[%s567] sm:$0x3]
        %v570 = vsel %vm475, %v568, 0
        %572 = vmatprep.subr.bf16.mxu0 0
        %573 = vmatpush1.bf16.msra.mxu0 %v570
        %574 = vmatprep.subr.bf16.mxu0 0
        %575 = vmatpush1.bf16.msra.mxu0 0
        %576 = vmatprep.subr.bf16.mxu0 0
        %577 = vmatpush1.bf16.msra.mxu0 0
        %578 = vmatprep.subr.bf16.mxu0 0
        %579 = vmatpush1.bf16.msra.mxu0 0
        %580 = vmatprep.subr.bf16.mxu0 0
        %581 = vmatpush1.bf16.msra.mxu0 0
        %582 = vmatprep.subr.bf16.mxu0 0
        %583 = vmatpush1.bf16.msra.mxu0 0
        %584 = vmatprep.subr.bf16.mxu0 0
        %585 = vmatpush1.bf16.msra.mxu0 0
        %586 = vmatprep.subr.bf16.mxu0 0
        %587 = vmatpush1.bf16.msra.mxu0 0
        %588 = vmatprep.subr.bf16.mxu0 0
        %589 = vmatpush1.bf16.msra.mxu0 0
        %590 = vmatprep.subr.bf16.mxu0 0
        %591 = vmatpush1.bf16.msra.mxu0 0
        %592 = vmatprep.subr.bf16.mxu0 0
        %593 = vmatpush1.bf16.msra.mxu0 0
        %594 = vmatprep.subr.bf16.mxu0 0
        %595 = vmatpush1.bf16.msra.mxu0 0
        %596 = vmatprep.subr.bf16.mxu0 0
        %597 = vmatpush1.bf16.msra.mxu0 0
        %598 = vmatprep.subr.bf16.mxu0 0
        %599 = vmatpush1.bf16.msra.mxu0 0
        %600 = vmatprep.subr.bf16.mxu0 0
        %601 = vmatpush1.bf16.msra.mxu0 0
        %602 = vmatprep.subr.bf16.mxu0 0
        %603 = vmatpush1.bf16.msra.mxu0 0
        %604 = vmatprep.mubr.bf16.mxu0 0
        %605 = vmatmul.mubr.bf16.gmra.mrb[0].mxu0 %v473
        %v606 = vpop.f32.mrb[0].mxu0
        %v607 = vadd.f32 0.0, %v606
        %v608 = vpop.f32.mrb[0].mxu0
        %v609 = vpop.f32.mrb[0].mxu0
        %v610 = vadd.f32 0.0, %v609
        %v611 = vpop.f32.mrb[0].mxu0
        %612 = vdwg.mxu0
        %v614 = vsel %vm475, %v417, 0
        %616 = vmatprep.subr.bf16.mxu0 0
        %617 = vmatpush1.bf16.msra.mxu0 %v614
        %618 = vmatprep.subr.bf16.mxu0 0
        %619 = vmatpush1.bf16.msra.mxu0 0
        %620 = vmatprep.subr.bf16.mxu0 0
        %621 = vmatpush1.bf16.msra.mxu0 0
        %622 = vmatprep.subr.bf16.mxu0 0
        %623 = vmatpush1.bf16.msra.mxu0 0
        %624 = vmatprep.subr.bf16.mxu0 0
        %625 = vmatpush1.bf16.msra.mxu0 0
        %626 = vmatprep.subr.bf16.mxu0 0
        %627 = vmatpush1.bf16.msra.mxu0 0
        %628 = vmatprep.subr.bf16.mxu0 0
        %629 = vmatpush1.bf16.msra.mxu0 0
        %630 = vmatprep.subr.bf16.mxu0 0
        %631 = vmatpush1.bf16.msra.mxu0 0
        %632 = vmatprep.subr.bf16.mxu0 0
        %633 = vmatpush1.bf16.msra.mxu0 0
        %634 = vmatprep.subr.bf16.mxu0 0
        %635 = vmatpush1.bf16.msra.mxu0 0
        %636 = vmatprep.subr.bf16.mxu0 0
        %637 = vmatpush1.bf16.msra.mxu0 0
        %638 = vmatprep.subr.bf16.mxu0 0
        %639 = vmatpush1.bf16.msra.mxu0 0
        %640 = vmatprep.subr.bf16.mxu0 0
        %641 = vmatpush1.bf16.msra.mxu0 0
        %642 = vmatprep.subr.bf16.mxu0 0
        %643 = vmatpush1.bf16.msra.mxu0 0
        %644 = vmatprep.subr.bf16.mxu0 0
        %645 = vmatpush1.bf16.msra.mxu0 0
        %646 = vmatprep.subr.bf16.mxu0 0
        %647 = vmatpush1.bf16.msra.mxu0 0
        %648 = vmatprep.mubr.bf16.mxu0 0
        %649 = vmatmul.mubr.bf16.gmra.mrb[0].mxu0 %v521
        %v650 = vpop.f32.mrb[0].mxu0
        %v651 = vadd.f32 %v607, %v650
        %v652 = vpop.f32.mrb[0].mxu0
        %v653 = vpop.f32.mrb[0].mxu0
        %v654 = vadd.f32 %v610, %v653
        %v655 = vpop.f32.mrb[0].mxu0
        %656 = vdwg.mxu0
        %657 = vmatprep.subr.bf16.mxu0 0
        %658 = vmatpush1.bf16.msra.mxu0 %v468
        %659 = vmatprep.subr.bf16.mxu0 0
        %660 = vmatpush1.bf16.msra.mxu0 0
        %661 = vmatprep.subr.bf16.mxu0 0
        %662 = vmatpush1.bf16.msra.mxu0 0
        %663 = vmatprep.subr.bf16.mxu0 0
        %664 = vmatpush1.bf16.msra.mxu0 0
        %665 = vmatprep.subr.bf16.mxu0 0
        %666 = vmatpush1.bf16.msra.mxu0 0
        %667 = vmatprep.subr.bf16.mxu0 0
        %668 = vmatpush1.bf16.msra.mxu0 0
        %669 = vmatprep.subr.bf16.mxu0 0
        %670 = vmatpush1.bf16.msra.mxu0 0
        %671 = vmatprep.subr.bf16.mxu0 0
        %672 = vmatpush1.bf16.msra.mxu0 0
        %673 = vmatprep.subr.bf16.mxu0 0
        %674 = vmatpush1.bf16.msra.mxu0 0
        %675 = vmatprep.subr.bf16.mxu0 0
        %676 = vmatpush1.bf16.msra.mxu0 0
        %677 = vmatprep.subr.bf16.mxu0 0
        %678 = vmatpush1.bf16.msra.mxu0 0
        %679 = vmatprep.subr.bf16.mxu0 0
        %680 = vmatpush1.bf16.msra.mxu0 0
        %681 = vmatprep.subr.bf16.mxu0 0
        %682 = vmatpush1.bf16.msra.mxu0 0
        %683 = vmatprep.subr.bf16.mxu0 0
        %684 = vmatpush1.bf16.msra.mxu0 0
        %685 = vmatprep.subr.bf16.mxu0 0
        %686 = vmatpush1.bf16.msra.mxu0 0
        %687 = vmatprep.subr.bf16.mxu0 0
        %688 = vmatpush1.bf16.msra.mxu0 0
        %689 = vmatprep.mubr.bf16.mxu0 0
        %690 = vmatmul.mubr.bf16.gmra.mrb[0].mxu0 %v425
        %v691 = vpop.f32.mrb[0].mxu0
        %v692 = vadd.f32 0.0, %v691
        %v693 = vpop.f32.mrb[0].mxu0
        %v694 = vpop.f32.mrb[0].mxu0
        %v695 = vadd.f32 0.0, %v694
        %v696 = vpop.f32.mrb[0].mxu0
        %697 = vdwg.mxu0
        %v698 = vmul.f32 %v692, 2.0
        %v699 = vmul.f32 %v695, 2.0
        %v700 = vsub.f32 %v698, %v411
        %v701 = vsub.f32 %v699, %v412
        %v702 = vpack.c.bf16 %v701, %v700
        %s703 = scalar_lea.vmem [#allocation2], 4
        %v704 = vld [vmem:[%s703] sm:$0x3]
        %v706 = vsel %vm471, %v702, 0
        %v709 = vsel %vm475, %v704, 0
        %711 = vmatprep.subr.bf16.mxu0 0
        %712 = vmatpush1.bf16.msra.mxu0 %v709
        %713 = vmatprep.subr.bf16.mxu0 0
        %714 = vmatpush1.bf16.msra.mxu0 0
        %715 = vmatprep.subr.bf16.mxu0 0
        %716 = vmatpush1.bf16.msra.mxu0 0
        %717 = vmatprep.subr.bf16.mxu0 0
        %718 = vmatpush1.bf16.msra.mxu0 0
        %719 = vmatprep.subr.bf16.mxu0 0
        %720 = vmatpush1.bf16.msra.mxu0 0
        %721 = vmatprep.subr.bf16.mxu0 0
        %722 = vmatpush1.bf16.msra.mxu0 0
        %723 = vmatprep.subr.bf16.mxu0 0
        %724 = vmatpush1.bf16.msra.mxu0 0
        %725 = vmatprep.subr.bf16.mxu0 0
        %726 = vmatpush1.bf16.msra.mxu0 0
        %727 = vmatprep.subr.bf16.mxu0 0
        %728 = vmatpush1.bf16.msra.mxu0 0
        %729 = vmatprep.subr.bf16.mxu0 0
        %730 = vmatpush1.bf16.msra.mxu0 0
        %731 = vmatprep.subr.bf16.mxu0 0
        %732 = vmatpush1.bf16.msra.mxu0 0
        %733 = vmatprep.subr.bf16.mxu0 0
        %734 = vmatpush1.bf16.msra.mxu0 0
        %735 = vmatprep.subr.bf16.mxu0 0
        %736 = vmatpush1.bf16.msra.mxu0 0
        %737 = vmatprep.subr.bf16.mxu0 0
        %738 = vmatpush1.bf16.msra.mxu0 0
        %739 = vmatprep.subr.bf16.mxu0 0
        %740 = vmatpush1.bf16.msra.mxu0 0
        %741 = vmatprep.subr.bf16.mxu0 0
        %742 = vmatpush1.bf16.msra.mxu0 0
        %743 = vmatprep.mubr.bf16.mxu0 0
        %744 = vmatmul.mubr.bf16.gmra.mrb[0].mxu0 %v706
        %v745 = vpop.f32.mrb[0].mxu0
        %v746 = vadd.f32 0.0, %v745
        %v747 = vpop.f32.mrb[0].mxu0
        %v748 = vpop.f32.mrb[0].mxu0
        %v749 = vadd.f32 0.0, %v748
        %v750 = vpop.f32.mrb[0].mxu0
        %751 = vdwg.mxu0
        %v752 = vadd.f32 %v561, %v746
        %v753 = vadd.f32 %v564, %v749
        %s754 = scalar_lea.vmem [#allocation4], 4
        %v755 = vld [vmem:[%s754] sm:$0x3]
        %v757 = vsel %vm475, %v755, 0
        %759 = vmatprep.subr.bf16.mxu0 0
        %760 = vmatpush1.bf16.msra.mxu0 %v757
        %761 = vmatprep.subr.bf16.mxu0 0
        %762 = vmatpush1.bf16.msra.mxu0 0
        %763 = vmatprep.subr.bf16.mxu0 0
        %764 = vmatpush1.bf16.msra.mxu0 0
        %765 = vmatprep.subr.bf16.mxu0 0
        %766 = vmatpush1.bf16.msra.mxu0 0
        %767 = vmatprep.subr.bf16.mxu0 0
        %768 = vmatpush1.bf16.msra.mxu0 0
        %769 = vmatprep.subr.bf16.mxu0 0
        %770 = vmatpush1.bf16.msra.mxu0 0
        %771 = vmatprep.subr.bf16.mxu0 0
        %772 = vmatpush1.bf16.msra.mxu0 0
        %773 = vmatprep.subr.bf16.mxu0 0
        %774 = vmatpush1.bf16.msra.mxu0 0
        %775 = vmatprep.subr.bf16.mxu0 0
        %776 = vmatpush1.bf16.msra.mxu0 0
        %777 = vmatprep.subr.bf16.mxu0 0
        %778 = vmatpush1.bf16.msra.mxu0 0
        %779 = vmatprep.subr.bf16.mxu0 0
        %780 = vmatpush1.bf16.msra.mxu0 0
        %781 = vmatprep.subr.bf16.mxu0 0
        %782 = vmatpush1.bf16.msra.mxu0 0
        %783 = vmatprep.subr.bf16.mxu0 0
        %784 = vmatpush1.bf16.msra.mxu0 0
        %785 = vmatprep.subr.bf16.mxu0 0
        %786 = vmatpush1.bf16.msra.mxu0 0
        %787 = vmatprep.subr.bf16.mxu0 0
        %788 = vmatpush1.bf16.msra.mxu0 0
        %789 = vmatprep.subr.bf16.mxu0 0
        %790 = vmatpush1.bf16.msra.mxu0 0
        %791 = vmatprep.mubr.bf16.mxu0 0
        %792 = vmatmul.mubr.bf16.gmra.mrb[0].mxu0 %v706
        %v793 = vpop.f32.mrb[0].mxu0
        %v794 = vadd.f32 0.0, %v793
        %v795 = vpop.f32.mrb[0].mxu0
        %v796 = vpop.f32.mrb[0].mxu0
        %v797 = vadd.f32 0.0, %v796
        %v798 = vpop.f32.mrb[0].mxu0
        %799 = vdwg.mxu0
        %v800 = vadd.f32 %v651, %v794
        %v801 = vadd.f32 %v654, %v797
        %v802 = vpack.c.bf16 %v414, %v413
        %v803 = vld [vmem:[%s4] sm:$0xf]
        %v804 = vld [vmem:[%s4 + $0x4] sm:$0xf]
        %v805 = vld [vmem:[%s4 + $0x8] sm:$0xf]
        %v806 = vld [vmem:[%s4 + $0xc] sm:$0xf]
        %v811 = vunpack.c.l.b16 %v803
        %v812 = vunpack.c.l.b16 %v804
        %v813 = vunpack.c.l.b16 %v805
        %v814 = vunpack.c.l.b16 %v806
        %v815 = vpack.c.b16 %v812, %v811
        %v816 = vpack.c.b16 %v814, %v813
        %vm819 = vcmask 261120
        %v821 = vsel %vm819, %v802, 0
        %823 = vmatprep.subr.bf16.mxu0 0
        %824 = vmatpush1.bf16.msra.mxu0 %v815
        %825 = vmatprep.subr.bf16.mxu0 0
        %826 = vmatpush1.bf16.msra.mxu0 %v816
        %827 = vmatprep.subr.bf16.mxu0 0
        %828 = vmatpush1.bf16.msra.mxu0 0
        %829 = vmatprep.subr.bf16.mxu0 0
        %830 = vmatpush1.bf16.msra.mxu0 0
        %831 = vmatprep.subr.bf16.mxu0 0
        %832 = vmatpush1.bf16.msra.mxu0 0
        %833 = vmatprep.subr.bf16.mxu0 0
        %834 = vmatpush1.bf16.msra.mxu0 0
        %835 = vmatprep.subr.bf16.mxu0 0
        %836 = vmatpush1.bf16.msra.mxu0 0
        %837 = vmatprep.subr.bf16.mxu0 0
        %838 = vmatpush1.bf16.msra.mxu0 0
        %839 = vmatprep.subr.bf16.mxu0 0
        %840 = vmatpush1.bf16.msra.mxu0 0
        %841 = vmatprep.subr.bf16.mxu0 0
        %842 = vmatpush1.bf16.msra.mxu0 0
        %843 = vmatprep.subr.bf16.mxu0 0
        %844 = vmatpush1.bf16.msra.mxu0 0
        %845 = vmatprep.subr.bf16.mxu0 0
        %846 = vmatpush1.bf16.msra.mxu0 0
        %847 = vmatprep.subr.bf16.mxu0 0
        %848 = vmatpush1.bf16.msra.mxu0 0
        %849 = vmatprep.subr.bf16.mxu0 0
        %850 = vmatpush1.bf16.msra.mxu0 0
        %851 = vmatprep.subr.bf16.mxu0 0
        %852 = vmatpush1.bf16.msra.mxu0 0
        %853 = vmatprep.subr.bf16.mxu0 0
        %854 = vmatpush1.bf16.msra.mxu0 0
        %855 = vmatprep.mubr.bf16.mxu0 0
        %856 = vmatmul.mubr.bf16.gmra.mrb[0].mxu0 %v821
        %v857 = vpop.f32.mrb[0].mxu0
        %v858 = vadd.f32 0.0, %v857
        %v859 = vpop.f32.mrb[0].mxu0
        %v860 = vpop.f32.mrb[0].mxu0
        %v861 = vadd.f32 0.0, %v860
        %v862 = vpop.f32.mrb[0].mxu0
        %863 = vdwg.mxu0
        %v864 = vadd.f32 %v752, %v858
        %v865 = vadd.f32 %v753, %v861
        %866 = vmatprep.subr.bf16.mxu0 0
        %867 = vmatpush1.bf16.msra.mxu0 %v802
        %868 = vmatprep.subr.bf16.mxu0 0
        %869 = vmatpush1.bf16.msra.mxu0 0
        %870 = vmatprep.subr.bf16.mxu0 0
        %871 = vmatpush1.bf16.msra.mxu0 0
        %872 = vmatprep.subr.bf16.mxu0 0
        %873 = vmatpush1.bf16.msra.mxu0 0
        %874 = vmatprep.subr.bf16.mxu0 0
        %875 = vmatpush1.bf16.msra.mxu0 0
        %876 = vmatprep.subr.bf16.mxu0 0
        %877 = vmatpush1.bf16.msra.mxu0 0
        %878 = vmatprep.subr.bf16.mxu0 0
        %879 = vmatpush1.bf16.msra.mxu0 0
        %880 = vmatprep.subr.bf16.mxu0 0
        %881 = vmatpush1.bf16.msra.mxu0 0
        %882 = vmatprep.subr.bf16.mxu0 0
        %883 = vmatpush1.bf16.msra.mxu0 0
        %884 = vmatprep.subr.bf16.mxu0 0
        %885 = vmatpush1.bf16.msra.mxu0 0
        %886 = vmatprep.subr.bf16.mxu0 0
        %887 = vmatpush1.bf16.msra.mxu0 0
        %888 = vmatprep.subr.bf16.mxu0 0
        %889 = vmatpush1.bf16.msra.mxu0 0
        %890 = vmatprep.subr.bf16.mxu0 0
        %891 = vmatpush1.bf16.msra.mxu0 0
        %892 = vmatprep.subr.bf16.mxu0 0
        %893 = vmatpush1.bf16.msra.mxu0 0
        %894 = vmatprep.subr.bf16.mxu0 0
        %895 = vmatpush1.bf16.msra.mxu0 0
        %896 = vmatprep.subr.bf16.mxu0 0
        %897 = vmatpush1.bf16.msra.mxu0 0
        %898 = vmatprep.mubr.bf16.mxu0 0
        %899 = vmatmul.mubr.bf16.gmra.mrb[0].mxu0 %v425
        %v900 = vpop.f32.mrb[0].mxu0
        %v901 = vadd.f32 0.0, %v900
        %v902 = vpop.f32.mrb[0].mxu0
        %v903 = vpop.f32.mrb[0].mxu0
        %v904 = vadd.f32 0.0, %v903
        %v905 = vpop.f32.mrb[0].mxu0
        %906 = vdwg.mxu0
        %v907 = vpack.c.bf16 %v904, %v901
        %s908 = scalar_lea.vmem %s4, 16
        %v909 = vld [vmem:[%s908] sm:$0xf]
        %v910 = vld [vmem:[%s908 + $0x4] sm:$0xf]
        %v911 = vld [vmem:[%s908 + $0x8] sm:$0xf]
        %v912 = vld [vmem:[%s908 + $0xc] sm:$0xf]
        %v917 = vunpack.c.l.b16 %v909
        %v918 = vunpack.c.l.b16 %v910
        %v919 = vunpack.c.l.b16 %v911
        %v920 = vunpack.c.l.b16 %v912
        %v921 = vpack.c.b16 %v918, %v917
        %v922 = vpack.c.b16 %v920, %v919
        %v926 = vsel %vm819, %v907, 0
        %928 = vmatprep.subr.bf16.mxu0 0
        %929 = vmatpush1.bf16.msra.mxu0 %v921
        %930 = vmatprep.subr.bf16.mxu0 0
        %931 = vmatpush1.bf16.msra.mxu0 %v922
        %932 = vmatprep.subr.bf16.mxu0 0
        %933 = vmatpush1.bf16.msra.mxu0 0
        %934 = vmatprep.subr.bf16.mxu0 0
        %935 = vmatpush1.bf16.msra.mxu0 0
        %936 = vmatprep.subr.bf16.mxu0 0
        %937 = vmatpush1.bf16.msra.mxu0 0
        %938 = vmatprep.subr.bf16.mxu0 0
        %939 = vmatpush1.bf16.msra.mxu0 0
        %940 = vmatprep.subr.bf16.mxu0 0
        %941 = vmatpush1.bf16.msra.mxu0 0
        %942 = vmatprep.subr.bf16.mxu0 0
        %943 = vmatpush1.bf16.msra.mxu0 0
        %944 = vmatprep.subr.bf16.mxu0 0
        %945 = vmatpush1.bf16.msra.mxu0 0
        %946 = vmatprep.subr.bf16.mxu0 0
        %947 = vmatpush1.bf16.msra.mxu0 0
        %948 = vmatprep.subr.bf16.mxu0 0
        %949 = vmatpush1.bf16.msra.mxu0 0
        %950 = vmatprep.subr.bf16.mxu0 0
        %951 = vmatpush1.bf16.msra.mxu0 0
        %952 = vmatprep.subr.bf16.mxu0 0
        %953 = vmatpush1.bf16.msra.mxu0 0
        %954 = vmatprep.subr.bf16.mxu0 0
        %955 = vmatpush1.bf16.msra.mxu0 0
        %956 = vmatprep.subr.bf16.mxu0 0
        %957 = vmatpush1.bf16.msra.mxu0 0
        %958 = vmatprep.subr.bf16.mxu0 0
        %959 = vmatpush1.bf16.msra.mxu0 0
        %960 = vmatprep.mubr.bf16.mxu0 0
        %961 = vmatmul.mubr.bf16.gmra.mrb[0].mxu0 %v926
        %v962 = vpop.f32.mrb[0].mxu0
        %v963 = vadd.f32 0.0, %v962
        %v964 = vpop.f32.mrb[0].mxu0
        %v965 = vpop.f32.mrb[0].mxu0
        %v966 = vadd.f32 0.0, %v965
        %v967 = vpop.f32.mrb[0].mxu0
        %968 = vdwg.mxu0
        %v969 = vadd.f32 %v864, %v963
        %v970 = vadd.f32 %v865, %v966
        %971 = vmatprep.subr.bf16.mxu0 0
        %972 = vmatpush1.bf16.msra.mxu0 %v907
        %973 = vmatprep.subr.bf16.mxu0 0
        %974 = vmatpush1.bf16.msra.mxu0 0
        %975 = vmatprep.subr.bf16.mxu0 0
        %976 = vmatpush1.bf16.msra.mxu0 0
        %977 = vmatprep.subr.bf16.mxu0 0
        %978 = vmatpush1.bf16.msra.mxu0 0
        %979 = vmatprep.subr.bf16.mxu0 0
        %980 = vmatpush1.bf16.msra.mxu0 0
        %981 = vmatprep.subr.bf16.mxu0 0
        %982 = vmatpush1.bf16.msra.mxu0 0
        %983 = vmatprep.subr.bf16.mxu0 0
        %984 = vmatpush1.bf16.msra.mxu0 0
        %985 = vmatprep.subr.bf16.mxu0 0
        %986 = vmatpush1.bf16.msra.mxu0 0
        %987 = vmatprep.subr.bf16.mxu0 0
        %988 = vmatpush1.bf16.msra.mxu0 0
        %989 = vmatprep.subr.bf16.mxu0 0
        %990 = vmatpush1.bf16.msra.mxu0 0
        %991 = vmatprep.subr.bf16.mxu0 0
        %992 = vmatpush1.bf16.msra.mxu0 0
        %993 = vmatprep.subr.bf16.mxu0 0
        %994 = vmatpush1.bf16.msra.mxu0 0
        %995 = vmatprep.subr.bf16.mxu0 0
        %996 = vmatpush1.bf16.msra.mxu0 0
        %997 = vmatprep.subr.bf16.mxu0 0
        %998 = vmatpush1.bf16.msra.mxu0 0
        %999 = vmatprep.subr.bf16.mxu0 0
        %1000 = vmatpush1.bf16.msra.mxu0 0
        %1001 = vmatprep.subr.bf16.mxu0 0
        %1002 = vmatpush1.bf16.msra.mxu0 0
        %1003 = vmatprep.mubr.bf16.mxu0 0
        %1004 = vmatmul.mubr.bf16.gmra.mrb[0].mxu0 %v425
        %v1005 = vpop.f32.mrb[0].mxu0
        %v1006 = vadd.f32 0.0, %v1005
        %v1007 = vpop.f32.mrb[0].mxu0
        %v1008 = vpop.f32.mrb[0].mxu0
        %v1009 = vadd.f32 0.0, %v1008
        %v1010 = vpop.f32.mrb[0].mxu0
        %1011 = vdwg.mxu0
        %v1012 = vmul.f32 %v1006, 2.0
        %v1013 = vmul.f32 %v1009, 2.0
        %v1014 = vsub.f32 %v1012, %v413
        %v1015 = vsub.f32 %v1013, %v414
        %v1016 = vpack.c.bf16 %v1015, %v1014
        %s1017 = scalar_lea.vmem %s4, 32
        %v1018 = vld [vmem:[%s1017] sm:$0xf]
        %v1019 = vld [vmem:[%s1017 + $0x4] sm:$0xf]
        %v1020 = vld [vmem:[%s1017 + $0x8] sm:$0xf]
        %v1021 = vld [vmem:[%s1017 + $0xc] sm:$0xf]
        %v1026 = vunpack.c.l.b16 %v1018
        %v1027 = vunpack.c.l.b16 %v1019
        %v1028 = vunpack.c.l.b16 %v1020
        %v1029 = vunpack.c.l.b16 %v1021
        %v1030 = vpack.c.b16 %v1027, %v1026
        %v1031 = vpack.c.b16 %v1029, %v1028
        %v1035 = vsel %vm819, %v1016, 0
        %1037 = vmatprep.subr.bf16.mxu0 0
        %1038 = vmatpush1.bf16.msra.mxu0 %v1030
        %1039 = vmatprep.subr.bf16.mxu0 0
        %1040 = vmatpush1.bf16.msra.mxu0 %v1031
        %1041 = vmatprep.subr.bf16.mxu0 0
        %1042 = vmatpush1.bf16.msra.mxu0 0
        %1043 = vmatprep.subr.bf16.mxu0 0
        %1044 = vmatpush1.bf16.msra.mxu0 0
        %1045 = vmatprep.subr.bf16.mxu0 0
        %1046 = vmatpush1.bf16.msra.mxu0 0
        %1047 = vmatprep.subr.bf16.mxu0 0
        %1048 = vmatpush1.bf16.msra.mxu0 0
        %1049 = vmatprep.subr.bf16.mxu0 0
        %1050 = vmatpush1.bf16.msra.mxu0 0
        %1051 = vmatprep.subr.bf16.mxu0 0
        %1052 = vmatpush1.bf16.msra.mxu0 0
        %1053 = vmatprep.subr.bf16.mxu0 0
        %1054 = vmatpush1.bf16.msra.mxu0 0
        %1055 = vmatprep.subr.bf16.mxu0 0
        %1056 = vmatpush1.bf16.msra.mxu0 0
        %1057 = vmatprep.subr.bf16.mxu0 0
        %1058 = vmatpush1.bf16.msra.mxu0 0
        %1059 = vmatprep.subr.bf16.mxu0 0
        %1060 = vmatpush1.bf16.msra.mxu0 0
        %1061 = vmatprep.subr.bf16.mxu0 0
        %1062 = vmatpush1.bf16.msra.mxu0 0
        %1063 = vmatprep.subr.bf16.mxu0 0
        %1064 = vmatpush1.bf16.msra.mxu0 0
        %1065 = vmatprep.subr.bf16.mxu0 0
        %1066 = vmatpush1.bf16.msra.mxu0 0
        %1067 = vmatprep.subr.bf16.mxu0 0
        %1068 = vmatpush1.bf16.msra.mxu0 0
        %1069 = vmatprep.mubr.bf16.mxu0 0
        %1070 = vmatmul.mubr.bf16.gmra.mrb[0].mxu0 %v1035
        %v1071 = vpop.f32.mrb[0].mxu0
        %v1072 = vadd.f32 0.0, %v1071
        %v1073 = vpop.f32.mrb[0].mxu0
        %v1074 = vpop.f32.mrb[0].mxu0
        %v1075 = vadd.f32 0.0, %v1074
        %v1076 = vpop.f32.mrb[0].mxu0
        %1077 = vdwg.mxu0
        %v1078 = vadd.f32 %v969, %v1072
        %v1079 = vadd.f32 %v970, %v1075
        %v1080 = vld [vmem:[#allocation6] sm:$0x1]
        %v1082 = vlaneseq
        %v1083 = vshrl.u32 %v1082, 7
        %v1084 = vsub.s32 0, %v1083
        %v1085 = vrot.slane %v1080, %v1084
        %v1087 = vadd.f32 %v1078, %v1085
        %v1088 = vadd.f32 %v1079, %v1085
        %v1089 = vxor.u32 %v1087, 2147483648
        %v1090 = vxor.u32 %v1088, 2147483648
        %v1091 = vmul.f32 %v1089, 1.442695
        %v1092 = vpow.pop %v1091
        %v1093 = vmul.f32 %v1090, 1.442695
        %v1094 = vpow.pop %v1093
        %v1095 = vadd.f32 %v1092, 1.0
        %v1096 = vadd.f32 %v1094, 1.0
        %v1097 = vrcp.pop %v1095
        %v1098 = vmul.f32 1.0, %v1097
        %v1099 = vrcp.pop %v1096
        %v1100 = vmul.f32 1.0, %v1099
        %v1101 = vmul.f32 %v1098, %v413
        %v1102 = vmul.f32 %v1100, %v414
        %v1103 = vpack.c.bf16 %v1102, %v1101
        %v1104 = vld [vmem:[%s6] sm:$0xf]
        %v1105 = vld [vmem:[%s6 + $0x4] sm:$0xf]
        %v1106 = vld [vmem:[%s6 + $0x8] sm:$0xf]
        %v1107 = vld [vmem:[%s6 + $0xc] sm:$0xf]
        %v1112 = vunpack.c.l.b16 %v1104
        %v1113 = vunpack.c.l.b16 %v1105
        %v1114 = vunpack.c.l.b16 %v1106
        %v1115 = vunpack.c.l.b16 %v1107
        %v1116 = vpack.c.b16 %v1113, %v1112
        %v1117 = vpack.c.b16 %v1115, %v1114
        %v1121 = vsel %vm819, %v1103, 0
        %1123 = vmatprep.subr.bf16.mxu0 0
        %1124 = vmatpush1.bf16.msra.mxu0 %v1116
        %1125 = vmatprep.subr.bf16.mxu0 0
        %1126 = vmatpush1.bf16.msra.mxu0 %v1117
        %1127 = vmatprep.subr.bf16.mxu0 0
        %1128 = vmatpush1.bf16.msra.mxu0 0
        %1129 = vmatprep.subr.bf16.mxu0 0
        %1130 = vmatpush1.bf16.msra.mxu0 0
        %1131 = vmatprep.subr.bf16.mxu0 0
        %1132 = vmatpush1.bf16.msra.mxu0 0
        %1133 = vmatprep.subr.bf16.mxu0 0
        %1134 = vmatpush1.bf16.msra.mxu0 0
        %1135 = vmatprep.subr.bf16.mxu0 0
        %1136 = vmatpush1.bf16.msra.mxu0 0
        %1137 = vmatprep.subr.bf16.mxu0 0
        %1138 = vmatpush1.bf16.msra.mxu0 0
        %1139 = vmatprep.subr.bf16.mxu0 0
        %1140 = vmatpush1.bf16.msra.mxu0 0
        %1141 = vmatprep.subr.bf16.mxu0 0
        %1142 = vmatpush1.bf16.msra.mxu0 0
        %1143 = vmatprep.subr.bf16.mxu0 0
        %1144 = vmatpush1.bf16.msra.mxu0 0
        %1145 = vmatprep.subr.bf16.mxu0 0
        %1146 = vmatpush1.bf16.msra.mxu0 0
        %1147 = vmatprep.subr.bf16.mxu0 0
        %1148 = vmatpush1.bf16.msra.mxu0 0
        %1149 = vmatprep.subr.bf16.mxu0 0
        %1150 = vmatpush1.bf16.msra.mxu0 0
        %1151 = vmatprep.subr.bf16.mxu0 0
        %1152 = vmatpush1.bf16.msra.mxu0 0
        %1153 = vmatprep.subr.bf16.mxu0 0
        %1154 = vmatpush1.bf16.msra.mxu0 0
        %1155 = vmatprep.mubr.bf16.mxu0 0
        %1156 = vmatmul.mubr.bf16.gmra.mrb[0].mxu0 %v1121
        %v1157 = vpop.f32.mrb[0].mxu0
        %v1158 = vadd.f32 0.0, %v1157
        %v1159 = vpop.f32.mrb[0].mxu0
        %v1160 = vpop.f32.mrb[0].mxu0
        %v1161 = vadd.f32 0.0, %v1160
        %v1162 = vpop.f32.mrb[0].mxu0
        %1163 = vdwg.mxu0
        %v1164 = vadd.f32 %v800, %v1158
        %v1165 = vadd.f32 %v801, %v1161
        %1166 = vmatprep.subr.bf16.mxu0 0
        %1167 = vmatpush1.bf16.msra.mxu0 %v1103
        %1168 = vmatprep.subr.bf16.mxu0 0
        %1169 = vmatpush1.bf16.msra.mxu0 0
        %1170 = vmatprep.subr.bf16.mxu0 0
        %1171 = vmatpush1.bf16.msra.mxu0 0
        %1172 = vmatprep.subr.bf16.mxu0 0
        %1173 = vmatpush1.bf16.msra.mxu0 0
        %1174 = vmatprep.subr.bf16.mxu0 0
        %1175 = vmatpush1.bf16.msra.mxu0 0
        %1176 = vmatprep.subr.bf16.mxu0 0
        %1177 = vmatpush1.bf16.msra.mxu0 0
        %1178 = vmatprep.subr.bf16.mxu0 0
        %1179 = vmatpush1.bf16.msra.mxu0 0
        %1180 = vmatprep.subr.bf16.mxu0 0
        %1181 = vmatpush1.bf16.msra.mxu0 0
        %1182 = vmatprep.subr.bf16.mxu0 0
        %1183 = vmatpush1.bf16.msra.mxu0 0
        %1184 = vmatprep.subr.bf16.mxu0 0
        %1185 = vmatpush1.bf16.msra.mxu0 0
        %1186 = vmatprep.subr.bf16.mxu0 0
        %1187 = vmatpush1.bf16.msra.mxu0 0
        %1188 = vmatprep.subr.bf16.mxu0 0
        %1189 = vmatpush1.bf16.msra.mxu0 0
        %1190 = vmatprep.subr.bf16.mxu0 0
        %1191 = vmatpush1.bf16.msra.mxu0 0
        %1192 = vmatprep.subr.bf16.mxu0 0
        %1193 = vmatpush1.bf16.msra.mxu0 0
        %1194 = vmatprep.subr.bf16.mxu0 0
        %1195 = vmatpush1.bf16.msra.mxu0 0
        %1196 = vmatprep.subr.bf16.mxu0 0
        %1197 = vmatpush1.bf16.msra.mxu0 0
        %1198 = vmatprep.mubr.bf16.mxu0 0
        %1199 = vmatmul.mubr.bf16.gmra.mrb[0].mxu0 %v425
        %v1200 = vpop.f32.mrb[0].mxu0
        %v1201 = vadd.f32 0.0, %v1200
        %v1202 = vpop.f32.mrb[0].mxu0
        %v1203 = vpop.f32.mrb[0].mxu0
        %v1204 = vadd.f32 0.0, %v1203
        %v1205 = vpop.f32.mrb[0].mxu0
        %1206 = vdwg.mxu0
        %v1207 = vpack.c.bf16 %v1204, %v1201
        %s1208 = scalar_lea.vmem %s6, 16
        %v1209 = vld [vmem:[%s1208] sm:$0xf]
        %v1210 = vld [vmem:[%s1208 + $0x4] sm:$0xf]
        %v1211 = vld [vmem:[%s1208 + $0x8] sm:$0xf]
        %v1212 = vld [vmem:[%s1208 + $0xc] sm:$0xf]
        %v1217 = vunpack.c.l.b16 %v1209
        %v1218 = vunpack.c.l.b16 %v1210
        %v1219 = vunpack.c.l.b16 %v1211
        %v1220 = vunpack.c.l.b16 %v1212
        %v1221 = vpack.c.b16 %v1218, %v1217
        %v1222 = vpack.c.b16 %v1220, %v1219
        %v1226 = vsel %vm819, %v1207, 0
        %1228 = vmatprep.subr.bf16.mxu0 0
        %1229 = vmatpush1.bf16.msra.mxu0 %v1221
        %1230 = vmatprep.subr.bf16.mxu0 0
        %1231 = vmatpush1.bf16.msra.mxu0 %v1222
        %1232 = vmatprep.subr.bf16.mxu0 0
        %1233 = vmatpush1.bf16.msra.mxu0 0
        %1234 = vmatprep.subr.bf16.mxu0 0
        %1235 = vmatpush1.bf16.msra.mxu0 0
        %1236 = vmatprep.subr.bf16.mxu0 0
        %1237 = vmatpush1.bf16.msra.mxu0 0
        %1238 = vmatprep.subr.bf16.mxu0 0
        %1239 = vmatpush1.bf16.msra.mxu0 0
        %1240 = vmatprep.subr.bf16.mxu0 0
        %1241 = vmatpush1.bf16.msra.mxu0 0
        %1242 = vmatprep.subr.bf16.mxu0 0
        %1243 = vmatpush1.bf16.msra.mxu0 0
        %1244 = vmatprep.subr.bf16.mxu0 0
        %1245 = vmatpush1.bf16.msra.mxu0 0
        %1246 = vmatprep.subr.bf16.mxu0 0
        %1247 = vmatpush1.bf16.msra.mxu0 0
        %1248 = vmatprep.subr.bf16.mxu0 0
        %1249 = vmatpush1.bf16.msra.mxu0 0
        %1250 = vmatprep.subr.bf16.mxu0 0
        %1251 = vmatpush1.bf16.msra.mxu0 0
        %1252 = vmatprep.subr.bf16.mxu0 0
        %1253 = vmatpush1.bf16.msra.mxu0 0
        %1254 = vmatprep.subr.bf16.mxu0 0
        %1255 = vmatpush1.bf16.msra.mxu0 0
        %1256 = vmatprep.subr.bf16.mxu0 0
        %1257 = vmatpush1.bf16.msra.mxu0 0
        %1258 = vmatprep.subr.bf16.mxu0 0
        %1259 = vmatpush1.bf16.msra.mxu0 0
        %1260 = vmatprep.mubr.bf16.mxu0 0
        %1261 = vmatmul.mubr.bf16.gmra.mrb[0].mxu0 %v1226
        %v1262 = vpop.f32.mrb[0].mxu0
        %v1263 = vadd.f32 0.0, %v1262
        %v1264 = vpop.f32.mrb[0].mxu0
        %v1265 = vpop.f32.mrb[0].mxu0
        %v1266 = vadd.f32 0.0, %v1265
        %v1267 = vpop.f32.mrb[0].mxu0
        %1268 = vdwg.mxu0
        %v1269 = vadd.f32 %v1164, %v1263
        %v1270 = vadd.f32 %v1165, %v1266
        %1271 = vmatprep.subr.bf16.mxu0 0
        %1272 = vmatpush1.bf16.msra.mxu0 %v1207
        %1273 = vmatprep.subr.bf16.mxu0 0
        %1274 = vmatpush1.bf16.msra.mxu0 0
        %1275 = vmatprep.subr.bf16.mxu0 0
        %1276 = vmatpush1.bf16.msra.mxu0 0
        %1277 = vmatprep.subr.bf16.mxu0 0
        %1278 = vmatpush1.bf16.msra.mxu0 0
        %1279 = vmatprep.subr.bf16.mxu0 0
        %1280 = vmatpush1.bf16.msra.mxu0 0
        %1281 = vmatprep.subr.bf16.mxu0 0
        %1282 = vmatpush1.bf16.msra.mxu0 0
        %1283 = vmatprep.subr.bf16.mxu0 0
        %1284 = vmatpush1.bf16.msra.mxu0 0
        %1285 = vmatprep.subr.bf16.mxu0 0
        %1286 = vmatpush1.bf16.msra.mxu0 0
        %1287 = vmatprep.subr.bf16.mxu0 0
        %1288 = vmatpush1.bf16.msra.mxu0 0
        %1289 = vmatprep.subr.bf16.mxu0 0
        %1290 = vmatpush1.bf16.msra.mxu0 0
        %1291 = vmatprep.subr.bf16.mxu0 0
        %1292 = vmatpush1.bf16.msra.mxu0 0
        %1293 = vmatprep.subr.bf16.mxu0 0
        %1294 = vmatpush1.bf16.msra.mxu0 0
        %1295 = vmatprep.subr.bf16.mxu0 0
        %1296 = vmatpush1.bf16.msra.mxu0 0
        %1297 = vmatprep.subr.bf16.mxu0 0
        %1298 = vmatpush1.bf16.msra.mxu0 0
        %1299 = vmatprep.subr.bf16.mxu0 0
        %1300 = vmatpush1.bf16.msra.mxu0 0
        %1301 = vmatprep.subr.bf16.mxu0 0
        %1302 = vmatpush1.bf16.msra.mxu0 0
        %1303 = vmatprep.mubr.bf16.mxu0 0
        %1304 = vmatmul.mubr.bf16.gmra.mrb[0].mxu0 %v425
        %v1305 = vpop.f32.mrb[0].mxu0
        %v1306 = vadd.f32 0.0, %v1305
        %v1307 = vpop.f32.mrb[0].mxu0
        %v1308 = vpop.f32.mrb[0].mxu0
        %v1309 = vadd.f32 0.0, %v1308
        %v1310 = vpop.f32.mrb[0].mxu0
        %1311 = vdwg.mxu0
        %v1312 = vmul.f32 %v1306, 2.0
        %v1313 = vmul.f32 %v1309, 2.0
        %v1314 = vsub.f32 %v1312, %v1101
        %v1315 = vsub.f32 %v1313, %v1102
        %v1316 = vpack.c.bf16 %v1315, %v1314
        %s1317 = scalar_lea.vmem %s6, 32
        %v1318 = vld [vmem:[%s1317] sm:$0xf]
        %v1319 = vld [vmem:[%s1317 + $0x4] sm:$0xf]
        %v1320 = vld [vmem:[%s1317 + $0x8] sm:$0xf]
        %v1321 = vld [vmem:[%s1317 + $0xc] sm:$0xf]
        %v1326 = vunpack.c.l.b16 %v1318
        %v1327 = vunpack.c.l.b16 %v1319
        %v1328 = vunpack.c.l.b16 %v1320
        %v1329 = vunpack.c.l.b16 %v1321
        %v1330 = vpack.c.b16 %v1327, %v1326
        %v1331 = vpack.c.b16 %v1329, %v1328
        %v1335 = vsel %vm819, %v1316, 0
        %1337 = vmatprep.subr.bf16.mxu0 0
        %1338 = vmatpush1.bf16.msra.mxu0 %v1330
        %1339 = vmatprep.subr.bf16.mxu0 0
        %1340 = vmatpush1.bf16.msra.mxu0 %v1331
        %1341 = vmatprep.subr.bf16.mxu0 0
        %1342 = vmatpush1.bf16.msra.mxu0 0
        %1343 = vmatprep.subr.bf16.mxu0 0
        %1344 = vmatpush1.bf16.msra.mxu0 0
        %1345 = vmatprep.subr.bf16.mxu0 0
        %1346 = vmatpush1.bf16.msra.mxu0 0
        %1347 = vmatprep.subr.bf16.mxu0 0
        %1348 = vmatpush1.bf16.msra.mxu0 0
        %1349 = vmatprep.subr.bf16.mxu0 0
        %1350 = vmatpush1.bf16.msra.mxu0 0
        %1351 = vmatprep.subr.bf16.mxu0 0
        %1352 = vmatpush1.bf16.msra.mxu0 0
        %1353 = vmatprep.subr.bf16.mxu0 0
        %1354 = vmatpush1.bf16.msra.mxu0 0
        %1355 = vmatprep.subr.bf16.mxu0 0
        %1356 = vmatpush1.bf16.msra.mxu0 0
        %1357 = vmatprep.subr.bf16.mxu0 0
        %1358 = vmatpush1.bf16.msra.mxu0 0
        %1359 = vmatprep.subr.bf16.mxu0 0
        %1360 = vmatpush1.bf16.msra.mxu0 0
        %1361 = vmatprep.subr.bf16.mxu0 0
        %1362 = vmatpush1.bf16.msra.mxu0 0
        %1363 = vmatprep.subr.bf16.mxu0 0
        %1364 = vmatpush1.bf16.msra.mxu0 0
        %1365 = vmatprep.subr.bf16.mxu0 0
        %1366 = vmatpush1.bf16.msra.mxu0 0
        %1367 = vmatprep.subr.bf16.mxu0 0
        %1368 = vmatpush1.bf16.msra.mxu0 0
        %1369 = vmatprep.mubr.bf16.mxu0 0
        %1370 = vmatmul.mubr.bf16.gmra.mrb[0].mxu0 %v1335
        %v1371 = vpop.f32.mrb[0].mxu0
        %v1372 = vadd.f32 0.0, %v1371
        %v1373 = vpop.f32.mrb[0].mxu0
        %v1374 = vpop.f32.mrb[0].mxu0
        %v1375 = vadd.f32 0.0, %v1374
        %v1376 = vpop.f32.mrb[0].mxu0
        %1377 = vdwg.mxu0
        %v1378 = vadd.f32 %v1269, %v1372
        %v1379 = vadd.f32 %v1270, %v1375
        %v1380 = vld [vmem:[#allocation7] sm:$0x1]
        %v1382 = vlaneseq
        %v1383 = vshrl.u32 %v1382, 7
        %v1384 = vsub.s32 0, %v1383
        %v1385 = vrot.slane %v1380, %v1384
        %v1387 = vadd.f32 %v1378, %v1385
        %v1388 = vadd.f32 %v1379, %v1385
        %v1389 = vtanh.pop %v1387
        %v1390 = vtanh.pop %v1388
        %1393 = vrot.lane.b32.xlu0 %v413, 32
        %v1394 = vpop.permute.xlu0 %1393
        %1395 = vrot.lane.b32.xlu0 %v414, 32
        %v1396 = vpop.permute.xlu0 %1395
        %v1399 = vmul.f32 %v1098, %v1394
        %v1400 = vmul.f32 %v1100, %v1396
        %v1401 = vsub.f32 1.0, %v1098
        %v1402 = vsub.f32 1.0, %v1100
        %1405 = vrot.lane.b32.xlu0 %v1389, 32
        %v1406 = vpop.permute.xlu0 %1405
        %1407 = vrot.lane.b32.xlu0 %v1390, 32
        %v1408 = vpop.permute.xlu0 %1407
        %v1411 = vmul.f32 %v1401, %v1406
        %v1412 = vmul.f32 %v1402, %v1408
        %v1413 = vadd.f32 %v1399, %v1411
        %v1414 = vadd.f32 %v1400, %v1412
        %1417 = vrot.lane.b32.xlu0 %v1413, 96
        %v1418 = vpop.permute.xlu0 %1417
        %1419 = vrot.lane.b32.xlu0 %v1414, 96
        %v1420 = vpop.permute.xlu0 %1419
        %1423 = vst.msk [vmem:[%s407] sm:$0xff] %vm819, %v1418
        %1424 = vst.msk [vmem:[%s407 + $0x8] sm:$0xff] %vm819, %v1420
        %p1425 = scmp.lt.s32.totalorder %s23, 1
        %s1426 = scalar_select %p1425, %s23, 1
        %s1427 = smul.addr %s1426, 2
        %s1428 = smul.addr %s1427, 8
        %s1429 = scalar_lea.vmem %s9, %s1428
        // Predicated region
        $region73: #{step.1} parent=55 // pred_check
          %p1430 = pneg %p240
        $region74: #{step.1} parent=55 // pred_check_branch
          %1432 = sbr.rel (%p1430) target = $region76
        $region75: #{step.1} parent=55 // pred_region
          _
        $region76: #{step.1} parent=55 // pred_fallthru
          _
      $region56: #{step.1} parent=5 // pred_fallthru
        _
      %p1433 = scmp.le.s32.totalorder 2, %s18
      // Predicated region
      $region77: #{step.1} parent=5 // pred_check
        %p1434 = pneg %p1433
      $region78: #{step.1} parent=5 // pred_check_branch
        %1436 = sbr.rel (%p1434) target = $region80
      $region79: #{step.1} parent=5 // pred_region
        %s1437 = ssub.s32 %s18, 2
        // Predicated region
        $region81: #{step.1} parent=79 // pred_check
          %p1438 = pneg %p246
        $region82: #{step.1} parent=79 // pred_check_branch
          %1440 = sbr.rel (%p1438) target = $region84
        $region83: #{step.1} parent=79 // pred_region
          %p1441 = scmp.lt.s32.totalorder %s24, 1
          %s1442 = scalar_select %p1441, %s24, 1
          %s1443 = smul.addr %s1442, 2
          %s1444 = smul.addr %s1443, 8
          %s1445 = scalar_lea.vmem %s9, %s1444
        $region84: #{step.1} parent=79 // pred_fallthru
          _
      $region80: #{step.1} parent=5 // pred_fallthru
        _
    $region6: #{step.1} parent=1 // loop_footer
      %s22 = sadd.s32 1, %s18
    $region7: #{step.1} parent=1 // loop_footer_branch
      %17 = sbr.rel target = $region3
    $region8: #{step.1} parent=1 // loop_exit
      _
    %1446 = vsyncpa [#allocation3], 1
    %s1447 = scalar_lea.sflag [#allocation3], 1
    %1448 = vsyncpa %s1447, 1
    %1449 = vsyncpa [#allocation5], 1
    %1450 = vsyncpa [#allocation8], 1

// kernel: step.1
$region0: #{step.1}
  #allocation0 [shape = 'u32[]', space=smem, size = 0x4, offset = 0x4, fixed_abs, tag = 'smem constant byte address 0x4 - core index']
  #allocation1 [shape = 'u32[144,128]{1,0:T(1,128)}', space=vmem, size = 0x12000, scoped, tag = 'internal scratch']
  %s0 = inlined_call_operand.vmem [shape: bf16[1,16,16], index: 0, kind: input, shape index: {}]
  %s1 = inlined_call_operand.vmem [shape: f32[2,16,4], index: 1, kind: input, shape index: {}]
  %s2 = inlined_call_operand.vmem [shape: f32[2,16,32], index: 2, kind: input, shape index: {}]
  %s3 = inlined_call_operand.hbm [shape: bf16[3,4,64], index: 3, kind: input, shape index: {}]
  %s4 = inlined_call_operand.vmem [shape: bf16[3,32,64], index: 4, kind: input, shape index: {}]
  %s5 = inlined_call_operand.hbm [shape: bf16[3,4,32], index: 5, kind: input, shape index: {}]
  %s6 = inlined_call_operand.vmem [shape: bf16[3,32,32], index: 6, kind: input, shape index: {}]
  %s7 = inlined_call_operand.hbm [shape: f32[1,64], index: 7, kind: input, shape index: {}]
  %s8 = inlined_call_operand.hbm [shape: f32[1,32], index: 8, kind: input, shape index: {}]
  %s9 = inlined_call_operand.vmem [shape: f32[2,16,32], index: 9, kind: output, shape index: {}]
  %s10 = sld [smem:[#allocation0]]
  $region85: #{step.1} parent=0
    _
  %s12 = ssub.s32 1, %s10
  %s13 = scalar_select 0, %s12, %s10
  $region1: #{step.1} parent=0
    #allocation2 [shape = 'u8[3072]{0}', space=vmem, size = 0xc00, scoped, tag = 'input window, operand 3, single buffered']
    #allocation3 [shape = 's32[2]{0}', space=sflag, size = 0x8, scoped, tag = 'scoped memory for step.1']
    #allocation4 [shape = 'u8[3072]{0}', space=vmem, size = 0xc00, scoped, tag = 'input window, operand 5, single buffered']
    #allocation5 [shape = 's32[1]{0}', space=sflag, size = 0x4, scoped, tag = 'scoped memory for step.1']
    #allocation6 [shape = 'u8[512]{0}', space=vmem, size = 0x400, scoped, tag = 'input window, operand 7, single buffered']
    #allocation7 [shape = 'u8[512]{0}', space=vmem, size = 0x400, scoped, tag = 'input window, operand 8, single buffered']
    #allocation8 [shape = 's32[1]{0}', space=sflag, size = 0x4, scoped, tag = 'scoped memory for step.1']
    %14 = vsyncpa [#allocation3], 0
    %15 = vsyncpa [#allocation5], 0
    %16 = vsyncpa [#allocation8], 0
    loop: start=0, step=1, limit=4
    $region2: #{step.1} parent=1 // loop_pre_header
      _
    $region3: #{step.1} parent=1 // loop_header
      %s18 = sphi 0, %s22
      %p19 = scmp.ge.s32.totalorder %s18, 4
      %s26 = sphi 0, %s26
      %s28 = sphi 0, %s26
      %s29 = sphi 0, %s28
      %s43 = sphi 0, %s29
      %s49 = sphi 0, %s51
      %s52 = sphi 0, %s49
      %s53 = sphi 0, %s52
      %s69 = sphi 0, %s53
      %s75 = sphi 0, %s77
      %s78 = sphi 0, %s75
      %s79 = sphi 0, %s78
      %s95 = sphi 0, %s79
      %s99 = sphi 0, %s99
      %s101 = sphi 0, %s99
      %s102 = sphi 0, %s101
      %s116 = sphi 0, %s102
      %s120 = sphi 0, %s120
      %s122 = sphi 0, %s120
      %s123 = sphi 0, %s122
      %s137 = sphi 0, %s123
      %s141 = sphi 0, %s141
      %s143 = sphi 0, %s141
      %s144 = sphi 0, %s143
      %s158 = sphi 0, %s144
      %s162 = sphi 0, %s162
      %s164 = sphi 0, %s162
      %s165 = sphi 0, %s164
      %s179 = sphi 0, %s165
      %s183 = sphi 0, %s183
      %s185 = sphi 0, %s183
      %s186 = sphi 0, %s185
      %s200 = sphi 0, %s186
      %s204 = sphi 0, %s204
      %s206 = sphi 0, %s204
      %s207 = sphi 0, %s206
      %s221 = sphi 0, %s207
      %s227 = sphi 0, %s229
      %s230 = sphi 0, %s227
      %s231 = sphi 0, %s230
      %s247 = sphi 0, %s231
    $region4: #{step.1} parent=1 // loop_header_branch
      %21 = sbr.rel (%p19) target = $region8
    $region5: #{step.1} parent=1 // loop_body
      %s23 = ssub.s32 %s18, 1
      %s24 = ssub.s32 %s18, 2
      %s25 = sadd.s32 %s18, 1
      %s27 = sadd.s32 %s26, 1
      %p30 = scmp.eq.s32.totalorder %s18, 1
      %p31 = scmp.ne.s32.totalorder %s26, %s28
      %p32 = scmp.eq.s32.totalorder %s18, 0
      %p33 = por %p31, %p32
      %p34 = scmp.ne.s32.totalorder %s26, %s28
      %p35 = scmp.eq.s32.totalorder %s23, 1
      %p36 = por %p34, %p35
      %p37 = scmp.ne.s32.totalorder %s28, %s29
      %p38 = scmp.eq.s32.totalorder %s23, 0
      %p39 = por %p37, %p38
      %p40 = scmp.ne.s32.totalorder %s28, %s29
      %p41 = scmp.eq.s32.totalorder %s24, 1
      %p42 = por %p40, %p41
      %p44 = scmp.ne.s32.totalorder %s29, %s43
      %p45 = scmp.eq.s32.totalorder %s24, 0
      %p46 = por %p44, %p45
      %s47 = ssub.s32 %s18, %s25
      %p48 = scmp.eq.s32.totalorder %s47, 0
      %s50 = sadd.s32 %s49, 1
      %s51 = scalar_select %p48, %s49, %s50
      %p54 = pneg %p48
      %p55 = scmp.eq.s32.totalorder %s18, 1
      %p56 = por %p54, %p55
      %p57 = scmp.ne.s32.totalorder %s49, %s52
      %p58 = scmp.eq.s32.totalorder %s18, 0
      %p59 = por %p57, %p58
      %p60 = scmp.ne.s32.totalorder %s49, %s52
      %p61 = scmp.eq.s32.totalorder %s23, 1
      %p62 = por %p60, %p61
      %p63 = scmp.ne.s32.totalorder %s52, %s53
      %p64 = scmp.eq.s32.totalorder %s23, 0
      %p65 = por %p63, %p64
      %p66 = scmp.ne.s32.totalorder %s52, %s53
      %p67 = scmp.eq.s32.totalorder %s24, 1
      %p68 = por %p66, %p67
      %p70 = scmp.ne.s32.totalorder %s53, %s69
      %p71 = scmp.eq.s32.totalorder %s24, 0
      %p72 = por %p70, %p71
      %s73 = ssub.s32 %s18, %s25
      %p74 = scmp.eq.s32.totalorder %s73, 0
      %s76 = sadd.s32 %s75, 1
      %s77 = scalar_select %p74, %s75, %s76
      %p80 = pneg %p74
      %p81 = scmp.eq.s32.totalorder %s18, 1
      %p82 = por %p80, %p81
      %p83 = scmp.ne.s32.totalorder %s75, %s78
      %p84 = scmp.eq.s32.totalorder %s18, 0
      %p85 = por %p83, %p84
      %p86 = scmp.ne.s32.totalorder %s75, %s78
      %p87 = scmp.eq.s32.totalorder %s23, 1
      %p88 = por %p86, %p87
      %p89 = scmp.ne.s32.totalorder %s78, %s79
      %p90 = scmp.eq.s32.totalorder %s23, 0
      %p91 = por %p89, %p90
      %p92 = scmp.ne.s32.totalorder %s78, %s79
      %p93 = scmp.eq.s32.totalorder %s24, 1
      %p94 = por %p92, %p93
      %p96 = scmp.ne.s32.totalorder %s79, %s95
      %p97 = scmp.eq.s32.totalorder %s24, 0
      %p98 = por %p96, %p97
      %s100 = sadd.s32 %s99, 1
      %p103 = scmp.eq.s32.totalorder %s18, 1
      %p104 = scmp.ne.s32.totalorder %s99, %s101
      %p105 = scmp.eq.s32.totalorder %s18, 0
      %p106 = por %p104, %p105
      %p107 = scmp.ne.s32.totalorder %s99, %s101
      %p108 = scmp.eq.s32.totalorder %s23, 1
      %p109 = por %p107, %p108
      %p110 = scmp.ne.s32.totalorder %s101, %s102
      %p111 = scmp.eq.s32.totalorder %s23, 0
      %p112 = por %p110, %p111
      %p113 = scmp.ne.s32.totalorder %s101, %s102
      %p114 = scmp.eq.s32.totalorder %s24, 1
      %p115 = por %p113, %p114
      %p117 = scmp.ne.s32.totalorder %s102, %s116
      %p118 = scmp.eq.s32.totalorder %s24, 0
      %p119 = por %p117, %p118
      %s121 = sadd.s32 %s120, 1
      %p124 = scmp.eq.s32.totalorder %s18, 1
      %p125 = scmp.ne.s32.totalorder %s120, %s122
      %p126 = scmp.eq.s32.totalorder %s18, 0
      %p127 = por %p125, %p126
      %p128 = scmp.ne.s32.totalorder %s120, %s122
      %p129 = scmp.eq.s32.totalorder %s23, 1
      %p130 = por %p128, %p129
      %p131 = scmp.ne.s32.totalorder %s122, %s123
      %p132 = scmp.eq.s32.totalorder %s23, 0
      %p133 = por %p131, %p132
      %p134 = scmp.ne.s32.totalorder %s122, %s123
      %p135 = scmp.eq.s32.totalorder %s24, 1
      %p136 = por %p134, %p135
      %p138 = scmp.ne.s32.totalorder %s123, %s137
      %p139 = scmp.eq.s32.totalorder %s24, 0
      %p140 = por %p138, %p139
      %s142 = sadd.s32 %s141, 1
      %p145 = scmp.eq.s32.totalorder %s18, 1
      %p146 = scmp.ne.s32.totalorder %s141, %s143
      %p147 = scmp.eq.s32.totalorder %s18, 0
      %p148 = por %p146, %p147
      %p149 = scmp.ne.s32.totalorder %s141, %s143
      %p150 = scmp.eq.s32.totalorder %s23, 1
      %p151 = por %p149, %p150
      %p152 = scmp.ne.s32.totalorder %s143, %s144
      %p153 = scmp.eq.s32.totalorder %s23, 0
      %p154 = por %p152, %p153
      %p155 = scmp.ne.s32.totalorder %s143, %s144
      %p156 = scmp.eq.s32.totalorder %s24, 1
      %p157 = por %p155, %p156
      %p159 = scmp.ne.s32.totalorder %s144, %s158
      %p160 = scmp.eq.s32.totalorder %s24, 0
      %p161 = por %p159, %p160
      %s163 = sadd.s32 %s162, 1
      %p166 = scmp.eq.s32.totalorder %s18, 1
      %p167 = scmp.ne.s32.totalorder %s162, %s164
      %p168 = scmp.eq.s32.totalorder %s18, 0
      %p169 = por %p167, %p168
      %p170 = scmp.ne.s32.totalorder %s162, %s164
      %p171 = scmp.eq.s32.totalorder %s23, 1
      %p172 = por %p170, %p171
      %p173 = scmp.ne.s32.totalorder %s164, %s165
      %p174 = scmp.eq.s32.totalorder %s23, 0
      %p175 = por %p173, %p174
      %p176 = scmp.ne.s32.totalorder %s164, %s165
      %p177 = scmp.eq.s32.totalorder %s24, 1
      %p178 = por %p176, %p177
      %p180 = scmp.ne.s32.totalorder %s165, %s179
      %p181 = scmp.eq.s32.totalorder %s24, 0
      %p182 = por %p180, %p181
      %s184 = sadd.s32 %s183, 1
      %p187 = scmp.eq.s32.totalorder %s18, 1
      %p188 = scmp.ne.s32.totalorder %s183, %s185
      %p189 = scmp.eq.s32.totalorder %s18, 0
      %p190 = por %p188, %p189
      %p191 = scmp.ne.s32.totalorder %s183, %s185
      %p192 = scmp.eq.s32.totalorder %s23, 1
      %p193 = por %p191, %p192
      %p194 = scmp.ne.s32.totalorder %s185, %s186
      %p195 = scmp.eq.s32.totalorder %s23, 0
      %p196 = por %p194, %p195
      %p197 = scmp.ne.s32.totalorder %s185, %s186
      %p198 = scmp.eq.s32.totalorder %s24, 1
      %p199 = por %p197, %p198
      %p201 = scmp.ne.s32.totalorder %s186, %s200
      %p202 = scmp.eq.s32.totalorder %s24, 0
      %p203 = por %p201, %p202
      %s205 = sadd.s32 %s204, 1
      %p208 = scmp.eq.s32.totalorder %s18, 1
      %p209 = scmp.ne.s32.totalorder %s204, %s206
      %p210 = scmp.eq.s32.totalorder %s18, 0
      %p211 = por %p209, %p210
      %p212 = scmp.ne.s32.totalorder %s204, %s206
      %p213 = scmp.eq.s32.totalorder %s23, 1
      %p214 = por %p212, %p213
      %p215 = scmp.ne.s32.totalorder %s206, %s207
      %p216 = scmp.eq.s32.totalorder %s23, 0
      %p217 = por %p215, %p216
      %p218 = scmp.ne.s32.totalorder %s206, %s207
      %p219 = scmp.eq.s32.totalorder %s24, 1
      %p220 = por %p218, %p219
      %p222 = scmp.ne.s32.totalorder %s207, %s221
      %p223 = scmp.eq.s32.totalorder %s24, 0
      %p224 = por %p222, %p223
      %s225 = ssub.s32 %s18, %s25
      %p226 = scmp.eq.s32.totalorder %s225, 0
      %s228 = sadd.s32 %s227, 1
      %s229 = scalar_select %p226, %s227, %s228
      %p232 = pneg %p226
      %p233 = scmp.eq.s32.totalorder %s18, 1
      %p234 = por %p232, %p233
      %p235 = scmp.ne.s32.totalorder %s227, %s230
      %p236 = scmp.eq.s32.totalorder %s18, 0
      %p237 = por %p235, %p236
      %p238 = scmp.ne.s32.totalorder %s227, %s230
      %p239 = scmp.eq.s32.totalorder %s23, 1
      %p240 = por %p238, %p239
      %p241 = scmp.ne.s32.totalorder %s230, %s231
      %p242 = scmp.eq.s32.totalorder %s23, 0
      %p243 = por %p241, %p242
      %p244 = scmp.ne.s32.totalorder %s230, %s231
      %p245 = scmp.eq.s32.totalorder %s24, 1
      %p246 = por %p244, %p245
      %p248 = scmp.ne.s32.totalorder %s231, %s247
      %p249 = scmp.eq.s32.totalorder %s24, 0
      %p250 = por %p248, %p249
      %p251 = scmp.le.s32.totalorder 1, %s18
      %p252 = scmp.lt.s32.totalorder %s18, 3
      %p253 = pnand %p251, %p252
      %p254 = pneg %p253
      // Predicated region
      $region9: #{step.1} parent=5 // pred_check
        _
      $region10: #{step.1} parent=5 // pred_check_branch
        %256 = sbr.rel (%p253) target = $region12
      $region11: #{step.1} parent=5 // pred_region
        %s257 = ssub.s32 %s18, 1
        // Predicated region
        $region13: #{step.1} parent=11 // pred_check
          %p258 = pneg %p39
        $region14: #{step.1} parent=11 // pred_check_branch
          %260 = sbr.rel (%p258) target = $region16
        $region15: #{step.1} parent=11 // pred_region
          _
        $region16: #{step.1} parent=11 // pred_fallthru
          _
        // Predicated region
        $region17: #{step.1} parent=11 // pred_check
          %p261 = pneg %p112
        $region18: #{step.1} parent=11 // pred_check_branch
          %263 = sbr.rel (%p261) target = $region20
        $region19: #{step.1} parent=11 // pred_region
          %s265 = ssub.s32 96, 96
          %266 = vsyncadd [#allocation3], %s265
          %s267 = sshll.u32 [#allocation2], 4
          %s268 = int_to_ptr.vmem [resolvable:$true] %s267
          %273 = dma.hbm_to_vmem [thread:$0]  %s3, 96, %s268, [#allocation3], 32, 32, 2
        $region20: #{step.1} parent=11 // pred_fallthru
          _
        // Predicated region
        $region21: #{step.1} parent=11 // pred_check
          %p274 = pneg %p133
        $region22: #{step.1} parent=11 // pred_check_branch
          %276 = sbr.rel (%p274) target = $region24
        $region23: #{step.1} parent=11 // pred_region
          _
        $region24: #{step.1} parent=11 // pred_fallthru
          _
        // Predicated region
        $region25: #{step.1} parent=11 // pred_check
          %p277 = pneg %p154
        $region26: #{step.1} parent=11 // pred_check_branch
          %279 = sbr.rel (%p277) target = $region28
        $region27: #{step.1} parent=11 // pred_region
          %s281 = ssub.s32 96, 96
          %282 = vsyncadd [#allocation5], %s281
          %s283 = sshll.u32 [#allocation4], 4
          %s284 = int_to_ptr.vmem [resolvable:$true] %s283
          %289 = dma.hbm_to_vmem [thread:$0]  %s5, 96, %s284, [#allocation5], 32, 32, 2
        $region28: #{step.1} parent=11 // pred_fallthru
          _
        // Predicated region
        $region29: #{step.1} parent=11 // pred_check
          %p290 = pneg %p175
        $region30: #{step.1} parent=11 // pred_check_branch
          %292 = sbr.rel (%p290) target = $region32
        $region31: #{step.1} parent=11 // pred_region
          _
        $region32: #{step.1} parent=11 // pred_fallthru
          _
        // Predicated region
        $region33: #{step.1} parent=11 // pred_check
          %p293 = pneg %p196
        $region34: #{step.1} parent=11 // pred_check_branch
          %295 = sbr.rel (%p293) target = $region36
        $region35: #{step.1} parent=11 // pred_region
          %s297 = ssub.s32 16, 16
          %298 = vsyncadd [#allocation5], %s297
          %s300 = sshll.u32 [#allocation6], 4
          %s301 = int_to_ptr.vmem [resolvable:$true] %s300
          %303 = dma.hbm_to_vmem [thread:$0]  %s7, 16, %s301, [#allocation5]
        $region36: #{step.1} parent=11 // pred_fallthru
          _
        // Predicated region
        $region37: #{step.1} parent=11 // pred_check
          %p304 = pneg %p217
        $region38: #{step.1} parent=11 // pred_check_branch
          %306 = sbr.rel (%p304) target = $region40
        $region39: #{step.1} parent=11 // pred_region
          %s308 = ssub.s32 16, 16
          %309 = vsyncadd [#allocation8], %s308
          %s311 = sshll.u32 [#allocation7], 4
          %s312 = int_to_ptr.vmem [resolvable:$true] %s311
          %314 = dma.hbm_to_vmem [thread:$0]  %s8, 16, %s312, [#allocation8]
        $region40: #{step.1} parent=11 // pred_fallthru
          _
      $region12: #{step.1} parent=5 // pred_fallthru
        _
      %p315 = scmp.lt.s32.totalorder %s18, 2
      // Predicated region
      $region41: #{step.1} parent=5 // pred_check
        %p316 = pneg %p315
      $region42: #{step.1} parent=5 // pred_check_branch
        %318 = sbr.rel (%p316) target = $region44
      $region43: #{step.1} parent=5 // pred_region
        // Predicated region
        $region45: #{step.1} parent=43 // pred_check
          %p319 = pneg %p59
        $region46: #{step.1} parent=43 // pred_check_branch
          %321 = sbr.rel (%p319) target = $region48
        $region47: #{step.1} parent=43 // pred_region
          %p322 = scmp.lt.s32.totalorder %s18, 1
          %s323 = scalar_select %p322, %s18, 1
          %s324 = smul.addr %s323, 2
          %s325 = smul.addr %s324, 8
          %s326 = scalar_lea.vmem %s1, %s325
        $region48: #{step.1} parent=43 // pred_fallthru
          _
        // Predicated region
        $region49: #{step.1} parent=43 // pred_check
          %p327 = pneg %p85
        $region50: #{step.1} parent=43 // pred_check_branch
          %329 = sbr.rel (%p327) target = $region52
        $region51: #{step.1} parent=43 // pred_region
          %p330 = scmp.lt.s32.totalorder %s18, 1
          %s331 = scalar_select %p330, %s18, 1
          %s332 = smul.addr %s331, 2
          %s333 = smul.addr %s332, 8
          %s334 = scalar_lea.vmem %s2, %s333
        $region52: #{step.1} parent=43 // pred_fallthru
          _
      $region44: #{step.1} parent=5 // pred_fallthru
        _
      %p335 = scmp.le.s32.totalorder 1, %s18
      %p336 = scmp.lt.s32.totalorder %s18, 3
      %p337 = pnand %p335, %p336
      %p338 = pneg %p337
      // Predicated region
      $region53: #{step.1} parent=5 // pred_check
        _
      $region54: #{step.1} parent=5 // pred_check_branch
        %340 = sbr.rel (%p337) target = $region56
      $region55: #{step.1} parent=5 // pred_region
        %s341 = ssub.s32 %s18, 1
        // Predicated region
        $region57: #{step.1} parent=55 // pred_check
          %p342 = pneg %p112
        $region58: #{step.1} parent=55 // pred_check_branch
          %344 = sbr.rel (%p342) target = $region60
        $region59: #{step.1} parent=55 // pred_region
          %345 = dma.done [#allocation3], 96
        $region60: #{step.1} parent=55 // pred_fallthru
          _
        // Predicated region
        $region61: #{step.1} parent=55 // pred_check
          %p346 = pneg %p154
        $region62: #{step.1} parent=55 // pred_check_branch
          %348 = sbr.rel (%p346) target = $region64
        $region63: #{step.1} parent=55 // pred_region
          %349 = dma.done [#allocation5], 96
        $region64: #{step.1} parent=55 // pred_fallthru
          _
        // Predicated region
        $region65: #{step.1} parent=55 // pred_check
          %p350 = pneg %p196
        $region66: #{step.1} parent=55 // pred_check_branch
          %352 = sbr.rel (%p350) target = $region68
        $region67: #{step.1} parent=55 // pred_region
          %353 = dma.done [#allocation5], 16
        $region68: #{step.1} parent=55 // pred_fallthru
          _
        // Predicated region
        $region69: #{step.1} parent=55 // pred_check
          %p354 = pneg %p217
        $region70: #{step.1} parent=55 // pred_check_branch
          %356 = sbr.rel (%p354) target = $region72
        $region71: #{step.1} parent=55 // pred_region
          %357 = dma.done [#allocation8], 16
        $region72: #{step.1} parent=55 // pred_fallthru
          _
        %p358 = pneg %p39
        %p359 = pneg %p36
        %p360 = scmp.lt.s32.totalorder %s23, 1
        %s361 = scalar_select %p360, %s23, 1
        %s362 = smul.addr %s361, 2
        %s363 = smul.addr %s362, 8
        %s364 = scalar_lea.vmem %s1, %s363
        %p365 = pneg %p65
        %p366 = pneg %p62
        %p367 = scmp.lt.s32.totalorder %s23, 1
        %s368 = scalar_select %p367, %s23, 1
        %s369 = smul.addr %s368, 2
        %s370 = smul.addr %s369, 8
        %s371 = scalar_lea.vmem %s2, %s370
        %p372 = pneg %p91
        %p373 = pneg %p88
        %p374 = pneg %p112
        %p375 = pneg %p109
        %p376 = pneg %p133
        %p377 = pneg %p130
        %p378 = pneg %p154
        %p379 = pneg %p151
        %p380 = pneg %p175
        %p381 = pneg %p172
        %p382 = pneg %p196
        %p383 = pneg %p193
        %p384 = pneg %p217
        %p385 = pneg %p214
        %p386 = pneg %p243
        %p387 = pneg %p240
        %p388 = scmp.lt.s32.totalorder %s23, 1
        %s389 = scalar_select %p388, %s23, 1
        %s390 = smul.addr %s389, 2
        %s391 = smul.addr %s390, 8
        %s392 = scalar_lea.vmem %s9, %s391
        %p393 = scmp.lt.s32.totalorder %s23, 1
        %s394 = scalar_select %p393, %s23, 1
        %s395 = smul.addr %s394, 2
        %s396 = smul.addr %s395, 8
        %s397 = scalar_lea.vmem %s1, %s396
        %p398 = scmp.lt.s32.totalorder %s23, 1
        %s399 = scalar_select %p398, %s23, 1
        %s400 = smul.addr %s399, 2
        %s401 = smul.addr %s400, 8
        %s402 = scalar_lea.vmem %s2, %s401
        %p403 = scmp.lt.s32.totalorder %s23, 1
        %s404 = scalar_select %p403, %s23, 1
        %s405 = smul.addr %s404, 2
        %s406 = smul.addr %s405, 8
        %s407 = scalar_lea.vmem %s9, %s406
        %v409 = vld [vmem:[%s0] sm:$0xf]
        %v410 = vld [vmem:[%s0 + $0x4] sm:$0xf]
        %v411 = vld [vmem:[%s397] sm:$0xff]
        %v412 = vld [vmem:[%s397 + $0x8] sm:$0xff]
        %v413 = vld [vmem:[%s402] sm:$0xff]
        %v414 = vld [vmem:[%s402 + $0x8] sm:$0xff]
        %v415 = vpack.c.bf16 %v412, %v411
        %v416 = vld [vmem:[#allocation2] sm:$0x3]
        %v417 = vld [vmem:[#allocation4] sm:$0x3]
        %v420 = vunpack.c.l.b16 %v409
        %v421 = vunpack.c.l.b16 %v410
        %v422 = vpack.c.b16 %v421, %v420
        %vm423 = vcmask 130048
        %v425 = vsel %vm423, %v422, 0
        %427 = vmatprep.subr.bf16.mxu0 0
        %428 = vmatpush1.bf16.msra.mxu0 %v415
        %429 = vmatprep.subr.bf16.mxu0 0
        %430 = vmatpush1.bf16.msra.mxu0 0
        %431 = vmatprep.subr.bf16.mxu0 0
        %432 = vmatpush1.bf16.msra.mxu0 0
        %433 = vmatprep.subr.bf16.mxu0 0
        %434 = vmatpush1.bf16.msra.mxu0 0
        %435 = vmatprep.subr.bf16.mxu0 0
        %436 = vmatpush1.bf16.msra.mxu0 0
        %437 = vmatprep.subr.bf16.mxu0 0
        %438 = vmatpush1.bf16.msra.mxu0 0
        %439 = vmatprep.subr.bf16.mxu0 0
        %440 = vmatpush1.bf16.msra.mxu0 0
        %441 = vmatprep.subr.bf16.mxu0 0
        %442 = vmatpush1.bf16.msra.mxu0 0
        %443 = vmatprep.subr.bf16.mxu0 0
        %444 = vmatpush1.bf16.msra.mxu0 0
        %445 = vmatprep.subr.bf16.mxu0 0
        %446 = vmatpush1.bf16.msra.mxu0 0
        %447 = vmatprep.subr.bf16.mxu0 0
        %448 = vmatpush1.bf16.msra.mxu0 0
        %449 = vmatprep.subr.bf16.mxu0 0
        %450 = vmatpush1.bf16.msra.mxu0 0
        %451 = vmatprep.subr.bf16.mxu0 0
        %452 = vmatpush1.bf16.msra.mxu0 0
        %453 = vmatprep.subr.bf16.mxu0 0
        %454 = vmatpush1.bf16.msra.mxu0 0
        %455 = vmatprep.subr.bf16.mxu0 0
        %456 = vmatpush1.bf16.msra.mxu0 0
        %457 = vmatprep.subr.bf16.mxu0 0
        %458 = vmatpush1.bf16.msra.mxu0 0
        %459 = vmatprep.mubr.bf16.mxu0 0
        %460 = vmatmul.mubr.bf16.gmra.mrb[0].mxu0 %v425
        %v461 = vpop.f32.mrb[0].mxu0
        %v462 = vadd.f32 0.0, %v461
        %v463 = vpop.f32.mrb[0].mxu0
        %v464 = vpop.f32.mrb[0].mxu0
        %v465 = vadd.f32 0.0, %v464
        %v466 = vpop.f32.mrb[0].mxu0
        %467 = vdwg.mxu0
        %v468 = vpack.c.bf16 %v465, %v462
        %s469 = scalar_lea.vmem [#allocation2], 2
        %v470 = vld [vmem:[%s469] sm:$0x3]
        %vm471 = vcmask 31744
        %v473 = vsel %vm471, %v468, 0
        %vm475 = vcmask 1041408
        %v477 = vsel %vm475, %v470, 0
        %479 = vmatprep.subr.bf16.mxu0 0
        %480 = vmatpush1.bf16.msra.mxu0 %v477
        %481 = vmatprep.subr.bf16.mxu0 0
        %482 = vmatpush1.bf16.msra.mxu0 0
        %483 = vmatprep.subr.bf16.mxu0 0
        %484 = vmatpush1.bf16.msra.mxu0 0
        %485 = vmatprep.subr.bf16.mxu0 0
        %486 = vmatpush1.bf16.msra.mxu0 0
        %487 = vmatprep.subr.bf16.mxu0 0
        %488 = vmatpush1.bf16.msra.mxu0 0
        %489 = vmatprep.subr.bf16.mxu0 0
        %490 = vmatpush1.bf16.msra.mxu0 0
        %491 = vmatprep.subr.bf16.mxu0 0
        %492 = vmatpush1.bf16.msra.mxu0 0
        %493 = vmatprep.subr.bf16.mxu0 0
        %494 = vmatpush1.bf16.msra.mxu0 0
        %495 = vmatprep.subr.bf16.mxu0 0
        %496 = vmatpush1.bf16.msra.mxu0 0
        %497 = vmatprep.subr.bf16.mxu0 0
        %498 = vmatpush1.bf16.msra.mxu0 0
        %499 = vmatprep.subr.bf16.mxu0 0
        %500 = vmatpush1.bf16.msra.mxu0 0
        %501 = vmatprep.subr.bf16.mxu0 0
        %502 = vmatpush1.bf16.msra.mxu0 0
        %503 = vmatprep.subr.bf16.mxu0 0
        %504 = vmatpush1.bf16.msra.mxu0 0
        %505 = vmatprep.subr.bf16.mxu0 0
        %506 = vmatpush1.bf16.msra.mxu0 0
        %507 = vmatprep.subr.bf16.mxu0 0
        %508 = vmatpush1.bf16.msra.mxu0 0
        %509 = vmatprep.subr.bf16.mxu0 0
        %510 = vmatpush1.bf16.msra.mxu0 0
        %511 = vmatprep.mubr.bf16.mxu0 0
        %512 = vmatmul.mubr.bf16.gmra.mrb[0].mxu0 %v473
        %v513 = vpop.f32.mrb[0].mxu0
        %v514 = vadd.f32 0.0, %v513
        %v515 = vpop.f32.mrb[0].mxu0
        %v516 = vpop.f32.mrb[0].mxu0
        %v517 = vadd.f32 0.0, %v516
        %v518 = vpop.f32.mrb[0].mxu0
        %519 = vdwg.mxu0
        %v521 = vsel %vm471, %v415, 0
        %v524 = vsel %vm475, %v416, 0
        %526 = vmatprep.subr.bf16.mxu0 0
        %527 = vmatpush1.bf16.msra.mxu0 %v524
        %528 = vmatprep.subr.bf16.mxu0 0
        %529 = vmatpush1.bf16.msra.mxu0 0
        %530 = vmatprep.subr.bf16.mxu0 0
        %531 = vmatpush1.bf16.msra.mxu0 0
        %532 = vmatprep.subr.bf16.mxu0 0
        %533 = vmatpush1.bf16.msra.mxu0 0
        %534 = vmatprep.subr.bf16.mxu0 0
        %535 = vmatpush1.bf16.msra.mxu0 0
        %536 = vmatprep.subr.bf16.mxu0 0
        %537 = vmatpush1.bf16.msra.mxu0 0
        %538 = vmatprep.subr.bf16.mxu0 0
        %539 = vmatpush1.bf16.msra.mxu0 0
        %540 = vmatprep.subr.bf16.mxu0 0
        %541 = vmatpush1.bf16.msra.mxu0 0
        %542 = vmatprep.subr.bf16.mxu0 0
        %543 = vmatpush1.bf16.msra.mxu0 0
        %544 = vmatprep.subr.bf16.mxu0 0
        %545 = vmatpush1.bf16.msra.mxu0 0
        %546 = vmatprep.subr.bf16.mxu0 0
        %547 = vmatpush1.bf16.msra.mxu0 0
        %548 = vmatprep.subr.bf16.mxu0 0
        %549 = vmatpush1.bf16.msra.mxu0 0
        %550 = vmatprep.subr.bf16.mxu0 0
        %551 = vmatpush1.bf16.msra.mxu0 0
        %552 = vmatprep.subr.bf16.mxu0 0
        %553 = vmatpush1.bf16.msra.mxu0 0
        %554 = vmatprep.subr.bf16.mxu0 0
        %555 = vmatpush1.bf16.msra.mxu0 0
        %556 = vmatprep.subr.bf16.mxu0 0
        %557 = vmatpush1.bf16.msra.mxu0 0
        %558 = vmatprep.mubr.bf16.mxu0 0
        %559 = vmatmul.mubr.bf16.gmra.mrb[0].mxu0 %v521
        %v560 = vpop.f32.mrb[0].mxu0
        %v561 = vadd.f32 %v514, %v560
        %v562 = vpop.f32.mrb[0].mxu0
        %v563 = vpop.f32.mrb[0].mxu0
        %v564 = vadd.f32 %v517, %v563
        %v565 = vpop.f32.mrb[0].mxu0
        %566 = vdwg.mxu0
        %s567 = scalar_lea.vmem [#allocation4], 2
        %v568 = vld [vmem:[%s567] sm:$0x3]
        %v570 = vsel %vm475, %v568, 0
        %572 = vmatprep.subr.bf16.mxu0 0
        %573 = vmatpush1.bf16.msra.mxu0 %v570
        %574 = vmatprep.subr.bf16.mxu0 0
        %575 = vmatpush1.bf16.msra.mxu0 0
        %576 = vmatprep.subr.bf16.mxu0 0
        %577 = vmatpush1.bf16.msra.mxu0 0
        %578 = vmatprep.subr.bf16.mxu0 0
        %579 = vmatpush1.bf16.msra.mxu0 0
        %580 = vmatprep.subr.bf16.mxu0 0
        %581 = vmatpush1.bf16.msra.mxu0 0
        %582 = vmatprep.subr.bf16.mxu0 0
        %583 = vmatpush1.bf16.msra.mxu0 0
        %584 = vmatprep.subr.bf16.mxu0 0
        %585 = vmatpush1.bf16.msra.mxu0 0
        %586 = vmatprep.subr.bf16.mxu0 0
        %587 = vmatpush1.bf16.msra.mxu0 0
        %588 = vmatprep.subr.bf16.mxu0 0
        %589 = vmatpush1.bf16.msra.mxu0 0
        %590 = vmatprep.subr.bf16.mxu0 0
        %591 = vmatpush1.bf16.msra.mxu0 0
        %592 = vmatprep.subr.bf16.mxu0 0
        %593 = vmatpush1.bf16.msra.mxu0 0
        %594 = vmatprep.subr.bf16.mxu0 0
        %595 = vmatpush1.bf16.msra.mxu0 0
        %596 = vmatprep.subr.bf16.mxu0 0
        %597 = vmatpush1.bf16.msra.mxu0 0
        %598 = vmatprep.subr.bf16.mxu0 0
        %599 = vmatpush1.bf16.msra.mxu0 0
        %600 = vmatprep.subr.bf16.mxu0 0
        %601 = vmatpush1.bf16.msra.mxu0 0
        %602 = vmatprep.subr.bf16.mxu0 0
        %603 = vmatpush1.bf16.msra.mxu0 0
        %604 = vmatprep.mubr.bf16.mxu0 0
        %605 = vmatmul.mubr.bf16.gmra.mrb[0].mxu0 %v473
        %v606 = vpop.f32.mrb[0].mxu0
        %v607 = vadd.f32 0.0, %v606
        %v608 = vpop.f32.mrb[0].mxu0
        %v609 = vpop.f32.mrb[0].mxu0
        %v610 = vadd.f32 0.0, %v609
        %v611 = vpop.f32.mrb[0].mxu0
        %612 = vdwg.mxu0
        %v614 = vsel %vm475, %v417, 0
        %616 = vmatprep.subr.bf16.mxu0 0
        %617 = vmatpush1.bf16.msra.mxu0 %v614
        %618 = vmatprep.subr.bf16.mxu0 0
        %619 = vmatpush1.bf16.msra.mxu0 0
        %620 = vmatprep.subr.bf16.mxu0 0
        %621 = vmatpush1.bf16.msra.mxu0 0
        %622 = vmatprep.subr.bf16.mxu0 0
        %623 = vmatpush1.bf16.msra.mxu0 0
        %624 = vmatprep.subr.bf16.mxu0 0
        %625 = vmatpush1.bf16.msra.mxu0 0
        %626 = vmatprep.subr.bf16.mxu0 0
        %627 = vmatpush1.bf16.msra.mxu0 0
        %628 = vmatprep.subr.bf16.mxu0 0
        %629 = vmatpush1.bf16.msra.mxu0 0
        %630 = vmatprep.subr.bf16.mxu0 0
        %631 = vmatpush1.bf16.msra.mxu0 0
        %632 = vmatprep.subr.bf16.mxu0 0
        %633 = vmatpush1.bf16.msra.mxu0 0
        %634 = vmatprep.subr.bf16.mxu0 0
        %635 = vmatpush1.bf16.msra.mxu0 0
        %636 = vmatprep.subr.bf16.mxu0 0
        %637 = vmatpush1.bf16.msra.mxu0 0
        %638 = vmatprep.subr.bf16.mxu0 0
        %639 = vmatpush1.bf16.msra.mxu0 0
        %640 = vmatprep.subr.bf16.mxu0 0
        %641 = vmatpush1.bf16.msra.mxu0 0
        %642 = vmatprep.subr.bf16.mxu0 0
        %643 = vmatpush1.bf16.msra.mxu0 0
        %644 = vmatprep.subr.bf16.mxu0 0
        %645 = vmatpush1.bf16.msra.mxu0 0
        %646 = vmatprep.subr.bf16.mxu0 0
        %647 = vmatpush1.bf16.msra.mxu0 0
        %648 = vmatprep.mubr.bf16.mxu0 0
        %649 = vmatmul.mubr.bf16.gmra.mrb[0].mxu0 %v521
        %v650 = vpop.f32.mrb[0].mxu0
        %v651 = vadd.f32 %v607, %v650
        %v652 = vpop.f32.mrb[0].mxu0
        %v653 = vpop.f32.mrb[0].mxu0
        %v654 = vadd.f32 %v610, %v653
        %v655 = vpop.f32.mrb[0].mxu0
        %656 = vdwg.mxu0
        %657 = vmatprep.subr.bf16.mxu0 0
        %658 = vmatpush1.bf16.msra.mxu0 %v468
        %659 = vmatprep.subr.bf16.mxu0 0
        %660 = vmatpush1.bf16.msra.mxu0 0
        %661 = vmatprep.subr.bf16.mxu0 0
        %662 = vmatpush1.bf16.msra.mxu0 0
        %663 = vmatprep.subr.bf16.mxu0 0
        %664 = vmatpush1.bf16.msra.mxu0 0
        %665 = vmatprep.subr.bf16.mxu0 0
        %666 = vmatpush1.bf16.msra.mxu0 0
        %667 = vmatprep.subr.bf16.mxu0 0
        %668 = vmatpush1.bf16.msra.mxu0 0
        %669 = vmatprep.subr.bf16.mxu0 0
        %670 = vmatpush1.bf16.msra.mxu0 0
        %671 = vmatprep.subr.bf16.mxu0 0
        %672 = vmatpush1.bf16.msra.mxu0 0
        %673 = vmatprep.subr.bf16.mxu0 0
        %674 = vmatpush1.bf16.msra.mxu0 0
        %675 = vmatprep.subr.bf16.mxu0 0
        %676 = vmatpush1.bf16.msra.mxu0 0
        %677 = vmatprep.subr.bf16.mxu0 0
        %678 = vmatpush1.bf16.msra.mxu0 0
        %679 = vmatprep.subr.bf16.mxu0 0
        %680 = vmatpush1.bf16.msra.mxu0 0
        %681 = vmatprep.subr.bf16.mxu0 0
        %682 = vmatpush1.bf16.msra.mxu0 0
        %683 = vmatprep.subr.bf16.mxu0 0
        %684 = vmatpush1.bf16.msra.mxu0 0
        %685 = vmatprep.subr.bf16.mxu0 0
        %686 = vmatpush1.bf16.msra.mxu0 0
        %687 = vmatprep.subr.bf16.mxu0 0
        %688 = vmatpush1.bf16.msra.mxu0 0
        %689 = vmatprep.mubr.bf16.mxu0 0
        %690 = vmatmul.mubr.bf16.gmra.mrb[0].mxu0 %v425
        %v691 = vpop.f32.mrb[0].mxu0
        %v692 = vadd.f32 0.0, %v691
        %v693 = vpop.f32.mrb[0].mxu0
        %v694 = vpop.f32.mrb[0].mxu0
        %v695 = vadd.f32 0.0, %v694
        %v696 = vpop.f32.mrb[0].mxu0
        %697 = vdwg.mxu0
        %v698 = vmul.f32 %v692, 2.0
        %v699 = vmul.f32 %v695, 2.0
        %v700 = vsub.f32 %v698, %v411
        %v701 = vsub.f32 %v699, %v412
        %v702 = vpack.c.bf16 %v701, %v700
        %s703 = scalar_lea.vmem [#allocation2], 4
        %v704 = vld [vmem:[%s703] sm:$0x3]
        %v706 = vsel %vm471, %v702, 0
        %v709 = vsel %vm475, %v704, 0
        %711 = vmatprep.subr.bf16.mxu0 0
        %712 = vmatpush1.bf16.msra.mxu0 %v709
        %713 = vmatprep.subr.bf16.mxu0 0
        %714 = vmatpush1.bf16.msra.mxu0 0
        %715 = vmatprep.subr.bf16.mxu0 0
        %716 = vmatpush1.bf16.msra.mxu0 0
        %717 = vmatprep.subr.bf16.mxu0 0
        %718 = vmatpush1.bf16.msra.mxu0 0
        %719 = vmatprep.subr.bf16.mxu0 0
        %720 = vmatpush1.bf16.msra.mxu0 0
        %721 = vmatprep.subr.bf16.mxu0 0
        %722 = vmatpush1.bf16.msra.mxu0 0
        %723 = vmatprep.subr.bf16.mxu0 0
        %724 = vmatpush1.bf16.msra.mxu0 0
        %725 = vmatprep.subr.bf16.mxu0 0
        %726 = vmatpush1.bf16.msra.mxu0 0
        %727 = vmatprep.subr.bf16.mxu0 0
        %728 = vmatpush1.bf16.msra.mxu0 0
        %729 = vmatprep.subr.bf16.mxu0 0
        %730 = vmatpush1.bf16.msra.mxu0 0
        %731 = vmatprep.subr.bf16.mxu0 0
        %732 = vmatpush1.bf16.msra.mxu0 0
        %733 = vmatprep.subr.bf16.mxu0 0
        %734 = vmatpush1.bf16.msra.mxu0 0
        %735 = vmatprep.subr.bf16.mxu0 0
        %736 = vmatpush1.bf16.msra.mxu0 0
        %737 = vmatprep.subr.bf16.mxu0 0
        %738 = vmatpush1.bf16.msra.mxu0 0
        %739 = vmatprep.subr.bf16.mxu0 0
        %740 = vmatpush1.bf16.msra.mxu0 0
        %741 = vmatprep.subr.bf16.mxu0 0
        %742 = vmatpush1.bf16.msra.mxu0 0
        %743 = vmatprep.mubr.bf16.mxu0 0
        %744 = vmatmul.mubr.bf16.gmra.mrb[0].mxu0 %v706
        %v745 = vpop.f32.mrb[0].mxu0
        %v746 = vadd.f32 0.0, %v745
        %v747 = vpop.f32.mrb[0].mxu0
        %v748 = vpop.f32.mrb[0].mxu0
        %v749 = vadd.f32 0.0, %v748
        %v750 = vpop.f32.mrb[0].mxu0
        %751 = vdwg.mxu0
        %v752 = vadd.f32 %v561, %v746
        %v753 = vadd.f32 %v564, %v749
        %s754 = scalar_lea.vmem [#allocation4], 4
        %v755 = vld [vmem:[%s754] sm:$0x3]
        %v757 = vsel %vm475, %v755, 0
        %759 = vmatprep.subr.bf16.mxu0 0
        %760 = vmatpush1.bf16.msra.mxu0 %v757
        %761 = vmatprep.subr.bf16.mxu0 0
        %762 = vmatpush1.bf16.msra.mxu0 0
        %763 = vmatprep.subr.bf16.mxu0 0
        %764 = vmatpush1.bf16.msra.mxu0 0
        %765 = vmatprep.subr.bf16.mxu0 0
        %766 = vmatpush1.bf16.msra.mxu0 0
        %767 = vmatprep.subr.bf16.mxu0 0
        %768 = vmatpush1.bf16.msra.mxu0 0
        %769 = vmatprep.subr.bf16.mxu0 0
        %770 = vmatpush1.bf16.msra.mxu0 0
        %771 = vmatprep.subr.bf16.mxu0 0
        %772 = vmatpush1.bf16.msra.mxu0 0
        %773 = vmatprep.subr.bf16.mxu0 0
        %774 = vmatpush1.bf16.msra.mxu0 0
        %775 = vmatprep.subr.bf16.mxu0 0
        %776 = vmatpush1.bf16.msra.mxu0 0
        %777 = vmatprep.subr.bf16.mxu0 0
        %778 = vmatpush1.bf16.msra.mxu0 0
        %779 = vmatprep.subr.bf16.mxu0 0
        %780 = vmatpush1.bf16.msra.mxu0 0
        %781 = vmatprep.subr.bf16.mxu0 0
        %782 = vmatpush1.bf16.msra.mxu0 0
        %783 = vmatprep.subr.bf16.mxu0 0
        %784 = vmatpush1.bf16.msra.mxu0 0
        %785 = vmatprep.subr.bf16.mxu0 0
        %786 = vmatpush1.bf16.msra.mxu0 0
        %787 = vmatprep.subr.bf16.mxu0 0
        %788 = vmatpush1.bf16.msra.mxu0 0
        %789 = vmatprep.subr.bf16.mxu0 0
        %790 = vmatpush1.bf16.msra.mxu0 0
        %791 = vmatprep.mubr.bf16.mxu0 0
        %792 = vmatmul.mubr.bf16.gmra.mrb[0].mxu0 %v706
        %v793 = vpop.f32.mrb[0].mxu0
        %v794 = vadd.f32 0.0, %v793
        %v795 = vpop.f32.mrb[0].mxu0
        %v796 = vpop.f32.mrb[0].mxu0
        %v797 = vadd.f32 0.0, %v796
        %v798 = vpop.f32.mrb[0].mxu0
        %799 = vdwg.mxu0
        %v800 = vadd.f32 %v651, %v794
        %v801 = vadd.f32 %v654, %v797
        %v802 = vpack.c.bf16 %v414, %v413
        %v803 = vld [vmem:[%s4] sm:$0xf]
        %v804 = vld [vmem:[%s4 + $0x4] sm:$0xf]
        %v805 = vld [vmem:[%s4 + $0x8] sm:$0xf]
        %v806 = vld [vmem:[%s4 + $0xc] sm:$0xf]
        %v811 = vunpack.c.l.b16 %v803
        %v812 = vunpack.c.l.b16 %v804
        %v813 = vunpack.c.l.b16 %v805
        %v814 = vunpack.c.l.b16 %v806
        %v815 = vpack.c.b16 %v812, %v811
        %v816 = vpack.c.b16 %v814, %v813
        %vm819 = vcmask 261120
        %v821 = vsel %vm819, %v802, 0
        %823 = vmatprep.subr.bf16.mxu0 0
        %824 = vmatpush1.bf16.msra.mxu0 %v815
        %825 = vmatprep.subr.bf16.mxu0 0
        %826 = vmatpush1.bf16.msra.mxu0 %v816
        %827 = vmatprep.subr.bf16.mxu0 0
        %828 = vmatpush1.bf16.msra.mxu0 0
        %829 = vmatprep.subr.bf16.mxu0 0
        %830 = vmatpush1.bf16.msra.mxu0 0
        %831 = vmatprep.subr.bf16.mxu0 0
        %832 = vmatpush1.bf16.msra.mxu0 0
        %833 = vmatprep.subr.bf16.mxu0 0
        %834 = vmatpush1.bf16.msra.mxu0 0
        %835 = vmatprep.subr.bf16.mxu0 0
        %836 = vmatpush1.bf16.msra.mxu0 0
        %837 = vmatprep.subr.bf16.mxu0 0
        %838 = vmatpush1.bf16.msra.mxu0 0
        %839 = vmatprep.subr.bf16.mxu0 0
        %840 = vmatpush1.bf16.msra.mxu0 0
        %841 = vmatprep.subr.bf16.mxu0 0
        %842 = vmatpush1.bf16.msra.mxu0 0
        %843 = vmatprep.subr.bf16.mxu0 0
        %844 = vmatpush1.bf16.msra.mxu0 0
        %845 = vmatprep.subr.bf16.mxu0 0
        %846 = vmatpush1.bf16.msra.mxu0 0
        %847 = vmatprep.subr.bf16.mxu0 0
        %848 = vmatpush1.bf16.msra.mxu0 0
        %849 = vmatprep.subr.bf16.mxu0 0
        %850 = vmatpush1.bf16.msra.mxu0 0
        %851 = vmatprep.subr.bf16.mxu0 0
        %852 = vmatpush1.bf16.msra.mxu0 0
        %853 = vmatprep.subr.bf16.mxu0 0
        %854 = vmatpush1.bf16.msra.mxu0 0
        %855 = vmatprep.mubr.bf16.mxu0 0
        %856 = vmatmul.mubr.bf16.gmra.mrb[0].mxu0 %v821
        %v857 = vpop.f32.mrb[0].mxu0
        %v858 = vadd.f32 0.0, %v857
        %v859 = vpop.f32.mrb[0].mxu0
        %v860 = vpop.f32.mrb[0].mxu0
        %v861 = vadd.f32 0.0, %v860
        %v862 = vpop.f32.mrb[0].mxu0
        %863 = vdwg.mxu0
        %v864 = vadd.f32 %v752, %v858
        %v865 = vadd.f32 %v753, %v861
        %866 = vmatprep.subr.bf16.mxu0 0
        %867 = vmatpush1.bf16.msra.mxu0 %v802
        %868 = vmatprep.subr.bf16.mxu0 0
        %869 = vmatpush1.bf16.msra.mxu0 0
        %870 = vmatprep.subr.bf16.mxu0 0
        %871 = vmatpush1.bf16.msra.mxu0 0
        %872 = vmatprep.subr.bf16.mxu0 0
        %873 = vmatpush1.bf16.msra.mxu0 0
        %874 = vmatprep.subr.bf16.mxu0 0
        %875 = vmatpush1.bf16.msra.mxu0 0
        %876 = vmatprep.subr.bf16.mxu0 0
        %877 = vmatpush1.bf16.msra.mxu0 0
        %878 = vmatprep.subr.bf16.mxu0 0
        %879 = vmatpush1.bf16.msra.mxu0 0
        %880 = vmatprep.subr.bf16.mxu0 0
        %881 = vmatpush1.bf16.msra.mxu0 0
        %882 = vmatprep.subr.bf16.mxu0 0
        %883 = vmatpush1.bf16.msra.mxu0 0
        %884 = vmatprep.subr.bf16.mxu0 0
        %885 = vmatpush1.bf16.msra.mxu0 0
        %886 = vmatprep.subr.bf16.mxu0 0
        %887 = vmatpush1.bf16.msra.mxu0 0
        %888 = vmatprep.subr.bf16.mxu0 0
        %889 = vmatpush1.bf16.msra.mxu0 0
        %890 = vmatprep.subr.bf16.mxu0 0
        %891 = vmatpush1.bf16.msra.mxu0 0
        %892 = vmatprep.subr.bf16.mxu0 0
        %893 = vmatpush1.bf16.msra.mxu0 0
        %894 = vmatprep.subr.bf16.mxu0 0
        %895 = vmatpush1.bf16.msra.mxu0 0
        %896 = vmatprep.subr.bf16.mxu0 0
        %897 = vmatpush1.bf16.msra.mxu0 0
        %898 = vmatprep.mubr.bf16.mxu0 0
        %899 = vmatmul.mubr.bf16.gmra.mrb[0].mxu0 %v425
        %v900 = vpop.f32.mrb[0].mxu0
        %v901 = vadd.f32 0.0, %v900
        %v902 = vpop.f32.mrb[0].mxu0
        %v903 = vpop.f32.mrb[0].mxu0
        %v904 = vadd.f32 0.0, %v903
        %v905 = vpop.f32.mrb[0].mxu0
        %906 = vdwg.mxu0
        %v907 = vpack.c.bf16 %v904, %v901
        %s908 = scalar_lea.vmem %s4, 16
        %v909 = vld [vmem:[%s908] sm:$0xf]
        %v910 = vld [vmem:[%s908 + $0x4] sm:$0xf]
        %v911 = vld [vmem:[%s908 + $0x8] sm:$0xf]
        %v912 = vld [vmem:[%s908 + $0xc] sm:$0xf]
        %v917 = vunpack.c.l.b16 %v909
        %v918 = vunpack.c.l.b16 %v910
        %v919 = vunpack.c.l.b16 %v911
        %v920 = vunpack.c.l.b16 %v912
        %v921 = vpack.c.b16 %v918, %v917
        %v922 = vpack.c.b16 %v920, %v919
        %v926 = vsel %vm819, %v907, 0
        %928 = vmatprep.subr.bf16.mxu0 0
        %929 = vmatpush1.bf16.msra.mxu0 %v921
        %930 = vmatprep.subr.bf16.mxu0 0
        %931 = vmatpush1.bf16.msra.mxu0 %v922
        %932 = vmatprep.subr.bf16.mxu0 0
        %933 = vmatpush1.bf16.msra.mxu0 0
        %934 = vmatprep.subr.bf16.mxu0 0
        %935 = vmatpush1.bf16.msra.mxu0 0
        %936 = vmatprep.subr.bf16.mxu0 0
        %937 = vmatpush1.bf16.msra.mxu0 0
        %938 = vmatprep.subr.bf16.mxu0 0
        %939 = vmatpush1.bf16.msra.mxu0 0
        %940 = vmatprep.subr.bf16.mxu0 0
        %941 = vmatpush1.bf16.msra.mxu0 0
        %942 = vmatprep.subr.bf16.mxu0 0
        %943 = vmatpush1.bf16.msra.mxu0 0
        %944 = vmatprep.subr.bf16.mxu0 0
        %945 = vmatpush1.bf16.msra.mxu0 0
        %946 = vmatprep.subr.bf16.mxu0 0
        %947 = vmatpush1.bf16.msra.mxu0 0
        %948 = vmatprep.subr.bf16.mxu0 0
        %949 = vmatpush1.bf16.msra.mxu0 0
        %950 = vmatprep.subr.bf16.mxu0 0
        %951 = vmatpush1.bf16.msra.mxu0 0
        %952 = vmatprep.subr.bf16.mxu0 0
        %953 = vmatpush1.bf16.msra.mxu0 0
        %954 = vmatprep.subr.bf16.mxu0 0
        %955 = vmatpush1.bf16.msra.mxu0 0
        %956 = vmatprep.subr.bf16.mxu0 0
        %957 = vmatpush1.bf16.msra.mxu0 0
        %958 = vmatprep.subr.bf16.mxu0 0
        %959 = vmatpush1.bf16.msra.mxu0 0
        %960 = vmatprep.mubr.bf16.mxu0 0
        %961 = vmatmul.mubr.bf16.gmra.mrb[0].mxu0 %v926
        %v962 = vpop.f32.mrb[0].mxu0
        %v963 = vadd.f32 0.0, %v962
        %v964 = vpop.f32.mrb[0].mxu0
        %v965 = vpop.f32.mrb[0].mxu0
        %v966 = vadd.f32 0.0, %v965
        %v967 = vpop.f32.mrb[0].mxu0
        %968 = vdwg.mxu0
        %v969 = vadd.f32 %v864, %v963
        %v970 = vadd.f32 %v865, %v966
        %971 = vmatprep.subr.bf16.mxu0 0
        %972 = vmatpush1.bf16.msra.mxu0 %v907
        %973 = vmatprep.subr.bf16.mxu0 0
        %974 = vmatpush1.bf16.msra.mxu0 0
        %975 = vmatprep.subr.bf16.mxu0 0
        %976 = vmatpush1.bf16.msra.mxu0 0
        %977 = vmatprep.subr.bf16.mxu0 0
        %978 = vmatpush1.bf16.msra.mxu0 0
        %979 = vmatprep.subr.bf16.mxu0 0
        %980 = vmatpush1.bf16.msra.mxu0 0
        %981 = vmatprep.subr.bf16.mxu0 0
        %982 = vmatpush1.bf16.msra.mxu0 0
        %983 = vmatprep.subr.bf16.mxu0 0
        %984 = vmatpush1.bf16.msra.mxu0 0
        %985 = vmatprep.subr.bf16.mxu0 0
        %986 = vmatpush1.bf16.msra.mxu0 0
        %987 = vmatprep.subr.bf16.mxu0 0
        %988 = vmatpush1.bf16.msra.mxu0 0
        %989 = vmatprep.subr.bf16.mxu0 0
        %990 = vmatpush1.bf16.msra.mxu0 0
        %991 = vmatprep.subr.bf16.mxu0 0
        %992 = vmatpush1.bf16.msra.mxu0 0
        %993 = vmatprep.subr.bf16.mxu0 0
        %994 = vmatpush1.bf16.msra.mxu0 0
        %995 = vmatprep.subr.bf16.mxu0 0
        %996 = vmatpush1.bf16.msra.mxu0 0
        %997 = vmatprep.subr.bf16.mxu0 0
        %998 = vmatpush1.bf16.msra.mxu0 0
        %999 = vmatprep.subr.bf16.mxu0 0
        %1000 = vmatpush1.bf16.msra.mxu0 0
        %1001 = vmatprep.subr.bf16.mxu0 0
        %1002 = vmatpush1.bf16.msra.mxu0 0
        %1003 = vmatprep.mubr.bf16.mxu0 0
        %1004 = vmatmul.mubr.bf16.gmra.mrb[0].mxu0 %v425
        %v1005 = vpop.f32.mrb[0].mxu0
        %v1006 = vadd.f32 0.0, %v1005
        %v1007 = vpop.f32.mrb[0].mxu0
        %v1008 = vpop.f32.mrb[0].mxu0
        %v1009 = vadd.f32 0.0, %v1008
        %v1010 = vpop.f32.mrb[0].mxu0
        %1011 = vdwg.mxu0
        %v1012 = vmul.f32 %v1006, 2.0
        %v1013 = vmul.f32 %v1009, 2.0
        %v1014 = vsub.f32 %v1012, %v413
        %v1015 = vsub.f32 %v1013, %v414
        %v1016 = vpack.c.bf16 %v1015, %v1014
        %s1017 = scalar_lea.vmem %s4, 32
        %v1018 = vld [vmem:[%s1017] sm:$0xf]
        %v1019 = vld [vmem:[%s1017 + $0x4] sm:$0xf]
        %v1020 = vld [vmem:[%s1017 + $0x8] sm:$0xf]
        %v1021 = vld [vmem:[%s1017 + $0xc] sm:$0xf]
        %v1026 = vunpack.c.l.b16 %v1018
        %v1027 = vunpack.c.l.b16 %v1019
        %v1028 = vunpack.c.l.b16 %v1020
        %v1029 = vunpack.c.l.b16 %v1021
        %v1030 = vpack.c.b16 %v1027, %v1026
        %v1031 = vpack.c.b16 %v1029, %v1028
        %v1035 = vsel %vm819, %v1016, 0
        %1037 = vmatprep.subr.bf16.mxu0 0
        %1038 = vmatpush1.bf16.msra.mxu0 %v1030
        %1039 = vmatprep.subr.bf16.mxu0 0
        %1040 = vmatpush1.bf16.msra.mxu0 %v1031
        %1041 = vmatprep.subr.bf16.mxu0 0
        %1042 = vmatpush1.bf16.msra.mxu0 0
        %1043 = vmatprep.subr.bf16.mxu0 0
        %1044 = vmatpush1.bf16.msra.mxu0 0
        %1045 = vmatprep.subr.bf16.mxu0 0
        %1046 = vmatpush1.bf16.msra.mxu0 0
        %1047 = vmatprep.subr.bf16.mxu0 0
        %1048 = vmatpush1.bf16.msra.mxu0 0
        %1049 = vmatprep.subr.bf16.mxu0 0
        %1050 = vmatpush1.bf16.msra.mxu0 0
        %1051 = vmatprep.subr.bf16.mxu0 0
        %1052 = vmatpush1.bf16.msra.mxu0 0
        %1053 = vmatprep.subr.bf16.mxu0 0
        %1054 = vmatpush1.bf16.msra.mxu0 0
        %1055 = vmatprep.subr.bf16.mxu0 0
        %1056 = vmatpush1.bf16.msra.mxu0 0
        %1057 = vmatprep.subr.bf16.mxu0 0
        %1058 = vmatpush1.bf16.msra.mxu0 0
        %1059 = vmatprep.subr.bf16.mxu0 0
        %1060 = vmatpush1.bf16.msra.mxu0 0
        %1061 = vmatprep.subr.bf16.mxu0 0
        %1062 = vmatpush1.bf16.msra.mxu0 0
        %1063 = vmatprep.subr.bf16.mxu0 0
        %1064 = vmatpush1.bf16.msra.mxu0 0
        %1065 = vmatprep.subr.bf16.mxu0 0
        %1066 = vmatpush1.bf16.msra.mxu0 0
        %1067 = vmatprep.subr.bf16.mxu0 0
        %1068 = vmatpush1.bf16.msra.mxu0 0
        %1069 = vmatprep.mubr.bf16.mxu0 0
        %1070 = vmatmul.mubr.bf16.gmra.mrb[0].mxu0 %v1035
        %v1071 = vpop.f32.mrb[0].mxu0
        %v1072 = vadd.f32 0.0, %v1071
        %v1073 = vpop.f32.mrb[0].mxu0
        %v1074 = vpop.f32.mrb[0].mxu0
        %v1075 = vadd.f32 0.0, %v1074
        %v1076 = vpop.f32.mrb[0].mxu0
        %1077 = vdwg.mxu0
        %v1078 = vadd.f32 %v969, %v1072
        %v1079 = vadd.f32 %v970, %v1075
        %v1080 = vld [vmem:[#allocation6] sm:$0x1]
        %v1082 = vlaneseq
        %v1083 = vshrl.u32 %v1082, 7
        %v1084 = vsub.s32 0, %v1083
        %v1085 = vrot.slane %v1080, %v1084
        %v1087 = vadd.f32 %v1078, %v1085
        %v1088 = vadd.f32 %v1079, %v1085
        %v1089 = vxor.u32 %v1087, 2147483648
        %v1090 = vxor.u32 %v1088, 2147483648
        %v1091 = vmul.f32 %v1089, 1.442695
        %v1092 = vpow.pop %v1091
        %v1093 = vmul.f32 %v1090, 1.442695
        %v1094 = vpow.pop %v1093
        %v1095 = vadd.f32 %v1092, 1.0
        %v1096 = vadd.f32 %v1094, 1.0
        %v1097 = vrcp.pop %v1095
        %v1098 = vmul.f32 1.0, %v1097
        %v1099 = vrcp.pop %v1096
        %v1100 = vmul.f32 1.0, %v1099
        %v1101 = vmul.f32 %v1098, %v413
        %v1102 = vmul.f32 %v1100, %v414
        %v1103 = vpack.c.bf16 %v1102, %v1101
        %v1104 = vld [vmem:[%s6] sm:$0xf]
        %v1105 = vld [vmem:[%s6 + $0x4] sm:$0xf]
        %v1106 = vld [vmem:[%s6 + $0x8] sm:$0xf]
        %v1107 = vld [vmem:[%s6 + $0xc] sm:$0xf]
        %v1112 = vunpack.c.l.b16 %v1104
        %v1113 = vunpack.c.l.b16 %v1105
        %v1114 = vunpack.c.l.b16 %v1106
        %v1115 = vunpack.c.l.b16 %v1107
        %v1116 = vpack.c.b16 %v1113, %v1112
        %v1117 = vpack.c.b16 %v1115, %v1114
        %v1121 = vsel %vm819, %v1103, 0
        %1123 = vmatprep.subr.bf16.mxu0 0
        %1124 = vmatpush1.bf16.msra.mxu0 %v1116
        %1125 = vmatprep.subr.bf16.mxu0 0
        %1126 = vmatpush1.bf16.msra.mxu0 %v1117
        %1127 = vmatprep.subr.bf16.mxu0 0
        %1128 = vmatpush1.bf16.msra.mxu0 0
        %1129 = vmatprep.subr.bf16.mxu0 0
        %1130 = vmatpush1.bf16.msra.mxu0 0
        %1131 = vmatprep.subr.bf16.mxu0 0
        %1132 = vmatpush1.bf16.msra.mxu0 0
        %1133 = vmatprep.subr.bf16.mxu0 0
        %1134 = vmatpush1.bf16.msra.mxu0 0
        %1135 = vmatprep.subr.bf16.mxu0 0
        %1136 = vmatpush1.bf16.msra.mxu0 0
        %1137 = vmatprep.subr.bf16.mxu0 0
        %1138 = vmatpush1.bf16.msra.mxu0 0
        %1139 = vmatprep.subr.bf16.mxu0 0
        %1140 = vmatpush1.bf16.msra.mxu0 0
        %1141 = vmatprep.subr.bf16.mxu0 0
        %1142 = vmatpush1.bf16.msra.mxu0 0
        %1143 = vmatprep.subr.bf16.mxu0 0
        %1144 = vmatpush1.bf16.msra.mxu0 0
        %1145 = vmatprep.subr.bf16.mxu0 0
        %1146 = vmatpush1.bf16.msra.mxu0 0
        %1147 = vmatprep.subr.bf16.mxu0 0
        %1148 = vmatpush1.bf16.msra.mxu0 0
        %1149 = vmatprep.subr.bf16.mxu0 0
        %1150 = vmatpush1.bf16.msra.mxu0 0
        %1151 = vmatprep.subr.bf16.mxu0 0
        %1152 = vmatpush1.bf16.msra.mxu0 0
        %1153 = vmatprep.subr.bf16.mxu0 0
        %1154 = vmatpush1.bf16.msra.mxu0 0
        %1155 = vmatprep.mubr.bf16.mxu0 0
        %1156 = vmatmul.mubr.bf16.gmra.mrb[0].mxu0 %v1121
        %v1157 = vpop.f32.mrb[0].mxu0
        %v1158 = vadd.f32 0.0, %v1157
        %v1159 = vpop.f32.mrb[0].mxu0
        %v1160 = vpop.f32.mrb[0].mxu0
        %v1161 = vadd.f32 0.0, %v1160
        %v1162 = vpop.f32.mrb[0].mxu0
        %1163 = vdwg.mxu0
        %v1164 = vadd.f32 %v800, %v1158
        %v1165 = vadd.f32 %v801, %v1161
        %1166 = vmatprep.subr.bf16.mxu0 0
        %1167 = vmatpush1.bf16.msra.mxu0 %v1103
        %1168 = vmatprep.subr.bf16.mxu0 0
        %1169 = vmatpush1.bf16.msra.mxu0 0
        %1170 = vmatprep.subr.bf16.mxu0 0
        %1171 = vmatpush1.bf16.msra.mxu0 0
        %1172 = vmatprep.subr.bf16.mxu0 0
        %1173 = vmatpush1.bf16.msra.mxu0 0
        %1174 = vmatprep.subr.bf16.mxu0 0
        %1175 = vmatpush1.bf16.msra.mxu0 0
        %1176 = vmatprep.subr.bf16.mxu0 0
        %1177 = vmatpush1.bf16.msra.mxu0 0
        %1178 = vmatprep.subr.bf16.mxu0 0
        %1179 = vmatpush1.bf16.msra.mxu0 0
        %1180 = vmatprep.subr.bf16.mxu0 0
        %1181 = vmatpush1.bf16.msra.mxu0 0
        %1182 = vmatprep.subr.bf16.mxu0 0
        %1183 = vmatpush1.bf16.msra.mxu0 0
        %1184 = vmatprep.subr.bf16.mxu0 0
        %1185 = vmatpush1.bf16.msra.mxu0 0
        %1186 = vmatprep.subr.bf16.mxu0 0
        %1187 = vmatpush1.bf16.msra.mxu0 0
        %1188 = vmatprep.subr.bf16.mxu0 0
        %1189 = vmatpush1.bf16.msra.mxu0 0
        %1190 = vmatprep.subr.bf16.mxu0 0
        %1191 = vmatpush1.bf16.msra.mxu0 0
        %1192 = vmatprep.subr.bf16.mxu0 0
        %1193 = vmatpush1.bf16.msra.mxu0 0
        %1194 = vmatprep.subr.bf16.mxu0 0
        %1195 = vmatpush1.bf16.msra.mxu0 0
        %1196 = vmatprep.subr.bf16.mxu0 0
        %1197 = vmatpush1.bf16.msra.mxu0 0
        %1198 = vmatprep.mubr.bf16.mxu0 0
        %1199 = vmatmul.mubr.bf16.gmra.mrb[0].mxu0 %v425
        %v1200 = vpop.f32.mrb[0].mxu0
        %v1201 = vadd.f32 0.0, %v1200
        %v1202 = vpop.f32.mrb[0].mxu0
        %v1203 = vpop.f32.mrb[0].mxu0
        %v1204 = vadd.f32 0.0, %v1203
        %v1205 = vpop.f32.mrb[0].mxu0
        %1206 = vdwg.mxu0
        %v1207 = vpack.c.bf16 %v1204, %v1201
        %s1208 = scalar_lea.vmem %s6, 16
        %v1209 = vld [vmem:[%s1208] sm:$0xf]
        %v1210 = vld [vmem:[%s1208 + $0x4] sm:$0xf]
        %v1211 = vld [vmem:[%s1208 + $0x8] sm:$0xf]
        %v1212 = vld [vmem:[%s1208 + $0xc] sm:$0xf]
        %v1217 = vunpack.c.l.b16 %v1209
        %v1218 = vunpack.c.l.b16 %v1210
        %v1219 = vunpack.c.l.b16 %v1211
        %v1220 = vunpack.c.l.b16 %v1212
        %v1221 = vpack.c.b16 %v1218, %v1217
        %v1222 = vpack.c.b16 %v1220, %v1219
        %v1226 = vsel %vm819, %v1207, 0
        %1228 = vmatprep.subr.bf16.mxu0 0
        %1229 = vmatpush1.bf16.msra.mxu0 %v1221
        %1230 = vmatprep.subr.bf16.mxu0 0
        %1231 = vmatpush1.bf16.msra.mxu0 %v1222
        %1232 = vmatprep.subr.bf16.mxu0 0
        %1233 = vmatpush1.bf16.msra.mxu0 0
        %1234 = vmatprep.subr.bf16.mxu0 0
        %1235 = vmatpush1.bf16.msra.mxu0 0
        %1236 = vmatprep.subr.bf16.mxu0 0
        %1237 = vmatpush1.bf16.msra.mxu0 0
        %1238 = vmatprep.subr.bf16.mxu0 0
        %1239 = vmatpush1.bf16.msra.mxu0 0
        %1240 = vmatprep.subr.bf16.mxu0 0
        %1241 = vmatpush1.bf16.msra.mxu0 0
        %1242 = vmatprep.subr.bf16.mxu0 0
        %1243 = vmatpush1.bf16.msra.mxu0 0
        %1244 = vmatprep.subr.bf16.mxu0 0
        %1245 = vmatpush1.bf16.msra.mxu0 0
        %1246 = vmatprep.subr.bf16.mxu0 0
        %1247 = vmatpush1.bf16.msra.mxu0 0
        %1248 = vmatprep.subr.bf16.mxu0 0
        %1249 = vmatpush1.bf16.msra.mxu0 0
        %1250 = vmatprep.subr.bf16.mxu0 0
        %1251 = vmatpush1.bf16.msra.mxu0 0
        %1252 = vmatprep.subr.bf16.mxu0 0
        %1253 = vmatpush1.bf16.msra.mxu0 0
        %1254 = vmatprep.subr.bf16.mxu0 0
        %1255 = vmatpush1.bf16.msra.mxu0 0
        %1256 = vmatprep.subr.bf16.mxu0 0
        %1257 = vmatpush1.bf16.msra.mxu0 0
        %1258 = vmatprep.subr.bf16.mxu0 0
        %1259 = vmatpush1.bf16.msra.mxu0 0
        %1260 = vmatprep.mubr.bf16.mxu0 0
        %1261 = vmatmul.mubr.bf16.gmra.mrb[0].mxu0 %v1226
        %v1262 = vpop.f32.mrb[0].mxu0
        %v1263 = vadd.f32 0.0, %v1262
        %v1264 = vpop.f32.mrb[0].mxu0
        %v1265 = vpop.f32.mrb[0].mxu0
        %v1266 = vadd.f32 0.0, %v1265
        %v1267 = vpop.f32.mrb[0].mxu0
        %1268 = vdwg.mxu0
        %v1269 = vadd.f32 %v1164, %v1263
        %v1270 = vadd.f32 %v1165, %v1266
        %1271 = vmatprep.subr.bf16.mxu0 0
        %1272 = vmatpush1.bf16.msra.mxu0 %v1207
        %1273 = vmatprep.subr.bf16.mxu0 0
        %1274 = vmatpush1.bf16.msra.mxu0 0
        %1275 = vmatprep.subr.bf16.mxu0 0
        %1276 = vmatpush1.bf16.msra.mxu0 0
        %1277 = vmatprep.subr.bf16.mxu0 0
        %1278 = vmatpush1.bf16.msra.mxu0 0
        %1279 = vmatprep.subr.bf16.mxu0 0
        %1280 = vmatpush1.bf16.msra.mxu0 0
        %1281 = vmatprep.subr.bf16.mxu0 0
        %1282 = vmatpush1.bf16.msra.mxu0 0
        %1283 = vmatprep.subr.bf16.mxu0 0
        %1284 = vmatpush1.bf16.msra.mxu0 0
        %1285 = vmatprep.subr.bf16.mxu0 0
        %1286 = vmatpush1.bf16.msra.mxu0 0
        %1287 = vmatprep.subr.bf16.mxu0 0
        %1288 = vmatpush1.bf16.msra.mxu0 0
        %1289 = vmatprep.subr.bf16.mxu0 0
        %1290 = vmatpush1.bf16.msra.mxu0 0
        %1291 = vmatprep.subr.bf16.mxu0 0
        %1292 = vmatpush1.bf16.msra.mxu0 0
        %1293 = vmatprep.subr.bf16.mxu0 0
        %1294 = vmatpush1.bf16.msra.mxu0 0
        %1295 = vmatprep.subr.bf16.mxu0 0
        %1296 = vmatpush1.bf16.msra.mxu0 0
        %1297 = vmatprep.subr.bf16.mxu0 0
        %1298 = vmatpush1.bf16.msra.mxu0 0
        %1299 = vmatprep.subr.bf16.mxu0 0
        %1300 = vmatpush1.bf16.msra.mxu0 0
        %1301 = vmatprep.subr.bf16.mxu0 0
        %1302 = vmatpush1.bf16.msra.mxu0 0
        %1303 = vmatprep.mubr.bf16.mxu0 0
        %1304 = vmatmul.mubr.bf16.gmra.mrb[0].mxu0 %v425
        %v1305 = vpop.f32.mrb[0].mxu0
        %v1306 = vadd.f32 0.0, %v1305
        %v1307 = vpop.f32.mrb[0].mxu0
        %v1308 = vpop.f32.mrb[0].mxu0
        %v1309 = vadd.f32 0.0, %v1308
        %v1310 = vpop.f32.mrb[0].mxu0
        %1311 = vdwg.mxu0
        %v1312 = vmul.f32 %v1306, 2.0
        %v1313 = vmul.f32 %v1309, 2.0
        %v1314 = vsub.f32 %v1312, %v1101
        %v1315 = vsub.f32 %v1313, %v1102
        %v1316 = vpack.c.bf16 %v1315, %v1314
        %s1317 = scalar_lea.vmem %s6, 32
        %v1318 = vld [vmem:[%s1317] sm:$0xf]
        %v1319 = vld [vmem:[%s1317 + $0x4] sm:$0xf]
        %v1320 = vld [vmem:[%s1317 + $0x8] sm:$0xf]
        %v1321 = vld [vmem:[%s1317 + $0xc] sm:$0xf]
        %v1326 = vunpack.c.l.b16 %v1318
        %v1327 = vunpack.c.l.b16 %v1319
        %v1328 = vunpack.c.l.b16 %v1320
        %v1329 = vunpack.c.l.b16 %v1321
        %v1330 = vpack.c.b16 %v1327, %v1326
        %v1331 = vpack.c.b16 %v1329, %v1328
        %v1335 = vsel %vm819, %v1316, 0
        %1337 = vmatprep.subr.bf16.mxu0 0
        %1338 = vmatpush1.bf16.msra.mxu0 %v1330
        %1339 = vmatprep.subr.bf16.mxu0 0
        %1340 = vmatpush1.bf16.msra.mxu0 %v1331
        %1341 = vmatprep.subr.bf16.mxu0 0
        %1342 = vmatpush1.bf16.msra.mxu0 0
        %1343 = vmatprep.subr.bf16.mxu0 0
        %1344 = vmatpush1.bf16.msra.mxu0 0
        %1345 = vmatprep.subr.bf16.mxu0 0
        %1346 = vmatpush1.bf16.msra.mxu0 0
        %1347 = vmatprep.subr.bf16.mxu0 0
        %1348 = vmatpush1.bf16.msra.mxu0 0
        %1349 = vmatprep.subr.bf16.mxu0 0
        %1350 = vmatpush1.bf16.msra.mxu0 0
        %1351 = vmatprep.subr.bf16.mxu0 0
        %1352 = vmatpush1.bf16.msra.mxu0 0
        %1353 = vmatprep.subr.bf16.mxu0 0
        %1354 = vmatpush1.bf16.msra.mxu0 0
        %1355 = vmatprep.subr.bf16.mxu0 0
        %1356 = vmatpush1.bf16.msra.mxu0 0
        %1357 = vmatprep.subr.bf16.mxu0 0
        %1358 = vmatpush1.bf16.msra.mxu0 0
        %1359 = vmatprep.subr.bf16.mxu0 0
        %1360 = vmatpush1.bf16.msra.mxu0 0
        %1361 = vmatprep.subr.bf16.mxu0 0
        %1362 = vmatpush1.bf16.msra.mxu0 0
        %1363 = vmatprep.subr.bf16.mxu0 0
        %1364 = vmatpush1.bf16.msra.mxu0 0
        %1365 = vmatprep.subr.bf16.mxu0 0
        %1366 = vmatpush1.bf16.msra.mxu0 0
        %1367 = vmatprep.subr.bf16.mxu0 0
        %1368 = vmatpush1.bf16.msra.mxu0 0
        %1369 = vmatprep.mubr.bf16.mxu0 0
        %1370 = vmatmul.mubr.bf16.gmra.mrb[0].mxu0 %v1335
        %v1371 = vpop.f32.mrb[0].mxu0
        %v1372 = vadd.f32 0.0, %v1371
        %v1373 = vpop.f32.mrb[0].mxu0
        %v1374 = vpop.f32.mrb[0].mxu0
        %v1375 = vadd.f32 0.0, %v1374
        %v1376 = vpop.f32.mrb[0].mxu0
        %1377 = vdwg.mxu0
        %v1378 = vadd.f32 %v1269, %v1372
        %v1379 = vadd.f32 %v1270, %v1375
        %v1380 = vld [vmem:[#allocation7] sm:$0x1]
        %v1382 = vlaneseq
        %v1383 = vshrl.u32 %v1382, 7
        %v1384 = vsub.s32 0, %v1383
        %v1385 = vrot.slane %v1380, %v1384
        %v1387 = vadd.f32 %v1378, %v1385
        %v1388 = vadd.f32 %v1379, %v1385
        %v1389 = vtanh.pop %v1387
        %v1390 = vtanh.pop %v1388
        %1393 = vrot.lane.b32.xlu0 %v413, 32
        %v1394 = vpop.permute.xlu0 %1393
        %1395 = vrot.lane.b32.xlu0 %v414, 32
        %v1396 = vpop.permute.xlu0 %1395
        %v1399 = vmul.f32 %v1098, %v1394
        %v1400 = vmul.f32 %v1100, %v1396
        %v1401 = vsub.f32 1.0, %v1098
        %v1402 = vsub.f32 1.0, %v1100
        %1405 = vrot.lane.b32.xlu0 %v1389, 32
        %v1406 = vpop.permute.xlu0 %1405
        %1407 = vrot.lane.b32.xlu0 %v1390, 32
        %v1408 = vpop.permute.xlu0 %1407
        %v1411 = vmul.f32 %v1401, %v1406
        %v1412 = vmul.f32 %v1402, %v1408
        %v1413 = vadd.f32 %v1399, %v1411
        %v1414 = vadd.f32 %v1400, %v1412
        %1417 = vrot.lane.b32.xlu0 %v1413, 96
        %v1418 = vpop.permute.xlu0 %1417
        %1419 = vrot.lane.b32.xlu0 %v1414, 96
        %v1420 = vpop.permute.xlu0 %1419
        %1423 = vst.msk [vmem:[%s407] sm:$0xff] %vm819, %v1418
        %1424 = vst.msk [vmem:[%s407 + $0x8] sm:$0xff] %vm819, %v1420
        %p1425 = scmp.lt.s32.totalorder %s23, 1
        %s1426 = scalar_select %p1425, %s23, 1
        %s1427 = smul.addr %s1426, 2
        %s1428 = smul.addr %s1427, 8
        %s1429 = scalar_lea.vmem %s9, %s1428
        // Predicated region
        $region73: #{step.1} parent=55 // pred_check
          %p1430 = pneg %p240
        $region74: #{step.1} parent=55 // pred_check_branch
          %1432 = sbr.rel (%p1430) target = $region76
        $region75: #{step.1} parent=55 // pred_region
          _
        $region76: #{step.1} parent=55 // pred_fallthru
          _
      $region56: #{step.1} parent=5 // pred_fallthru
        _
      %p1433 = scmp.le.s32.totalorder 2, %s18
      // Predicated region
      $region77: #{step.1} parent=5 // pred_check
        %p1434 = pneg %p1433
      $region78: #{step.1} parent=5 // pred_check_branch
        %1436 = sbr.rel (%p1434) target = $region80
      $region79: #{step.1} parent=5 // pred_region
        %s1437 = ssub.s32 %s18, 2
        // Predicated region
        $region81: #{step.1} parent=79 // pred_check
          %p1438 = pneg %p246
        $region82: #{step.1} parent=79 // pred_check_branch
          %1440 = sbr.rel (%p1438) target = $region84
        $region83: #{step.1} parent=79 // pred_region
          %p1441 = scmp.lt.s32.totalorder %s24, 1
          %s1442 = scalar_select %p1441, %s24, 1
          %s1443 = smul.addr %s1442, 2
          %s1444 = smul.addr %s1443, 8
          %s1445 = scalar_lea.vmem %s9, %s1444
        $region84: #{step.1} parent=79 // pred_fallthru
          _
      $region80: #{step.1} parent=5 // pred_fallthru
        _
    $region6: #{step.1} parent=1 // loop_footer
      %s22 = sadd.s32 1, %s18
    $region7: #{step.1} parent=1 // loop_footer_branch
      %17 = sbr.rel target = $region3
    $region8: #{step.1} parent=1 // loop_exit
      _
    %1446 = vsyncpa [#allocation3], 1
    %s1447 = scalar_lea.sflag [#allocation3], 1
    %1448 = vsyncpa %s1447, 1
    %1449 = vsyncpa [#allocation5], 1
    %1450 = vsyncpa [#allocation8], 1

</llo_original>
